<compile_context>
chip_gen: v7x
topology: tpu7x:2x2x1
jax: 0.10.0
libtpu: 0.0.40
codegen_flags: <defaults>
</compile_context>

<pallas_src>
import jax
import jax.numpy as jnp
from jax.experimental import pallas as pl
from jax.experimental.pallas import tpu as pltpu

# ---- small problem sizes consistent with the module ----
IN_FEATURES = 4
HIDDEN = 16
SEQ = 8
NUM_PROCESS_BLOCKS = 10
D = 2 * HIDDEN          # bidirectional feature dim (decoder input width) = 32
G = 8 * HIDDEN          # fused gate width (4 gates x 2 directions)       = 128
LANES = 128
assert G == LANES and 3 * D + 2 <= LANES and IN_FEATURES + 3 <= 8

# ---- packed parameter slab row layout (all rows 128 lanes wide) ----
R_MISC = 0               # rows 0:8   : w_emb.T, b_emb, fused LSTM bias, attn/dec biases
R_WIN_F = 8              # rows 8:24  : packed input weights, forward direction  (H, 128)
R_WIN_B = 24             # rows 24:40 : packed input weights, backward direction (H, 128)
R_WREC = 40              # rows 40:72 : block-diagonal packed recurrent weights  (2H, 128)
R_ATTN = 72              # rows 72:104: [w_q.T | w_ref.T | w_d1.T | v | w_d2.T]
ROWS = 104
ROW_BEMB = IN_FEATURES   # 4
ROW_BLSTM = 5
ROW_BVEC = 6


def critic_kernel(x_ref, p_ref, out_ref, enc_ref):
    """x_ref: (S, F) state; p_ref: (ROWS, 128) packed params; out_ref: (1,1)."""
    S, H, f32 = SEQ, HIDDEN, jnp.float32

    # ---- unpack the parameter slab (loaded once, hoisted above all loops) ----
    w_emb = p_ref[0:IN_FEATURES, 0:H]                       # (F, H)
    b_emb = p_ref[ROW_BEMB:ROW_BEMB + 1, 0:H]               # (1, H)
    b_lstm = p_ref[ROW_BLSTM:ROW_BLSTM + 1, :]              # (1, 8H)  (i/f/o cols pre-scaled 0.5)
    b_q = p_ref[ROW_BVEC:ROW_BVEC + 1, 0:D]                 # (1, D)
    b_rp = p_ref[ROW_BVEC:ROW_BVEC + 1, D:2 * D]            # (1, D)
    b_d1 = p_ref[ROW_BVEC:ROW_BVEC + 1, 2 * D:3 * D]        # (1, D)
    b_d2 = p_ref[ROW_BVEC:ROW_BVEC + 1, 3 * D:3 * D + 1]    # (1, 1)
    w_in_f = p_ref[R_WIN_F:R_WIN_F + H, :]                  # (H, 8H)  (i/f/o cols pre-scaled 0.5)
    w_in_b = p_ref[R_WIN_B:R_WIN_B + H, :]                  # (H, 8H)
    w_rec = p_ref[R_WREC:R_WREC + D, :]                     # (2H, 8H) block-diag
    w_q = p_ref[R_ATTN:R_ATTN + D, 0:D]                     # (D, D)
    w_rp = p_ref[R_ATTN:R_ATTN + D, D:2 * D]                # (D, D)
    w_d1 = p_ref[R_ATTN:R_ATTN + D, 2 * D:3 * D]            # (D, D)
    v_col = p_ref[R_ATTN:R_ATTN + D, 3 * D:3 * D + 1]       # (D, 1)
    w_d2 = p_ref[R_ATTN:R_ATTN + D, 3 * D + 1:3 * D + 2]    # (D, 1)

    # ---- embedding: Linear(in_features -> hidden) per timestep ----
    emb = jnp.dot(x_ref[...], w_emb, preferred_element_type=f32) + b_emb      # (S, H)

    # ---- input contributions to all gates of BOTH directions (off the h-chain) ----
    gx_f = jnp.dot(emb, w_in_f, preferred_element_type=f32) + b_lstm          # (S, 8H)
    gx_b = jnp.dot(emb, w_in_b, preferred_element_type=f32)                   # (S, 8H)
    # merge fwd(t) + bwd(S-1-t) per fused step, hoisted off the serial recurrence
    gx_rows = [gx_f[t:t + 1, :] + gx_b[S - 1 - t:S - t, :] for t in range(S)]

    # ---- fused bidirectional LSTM: one (1,2H)@(2H,8H) matmul per step ----
    # gate column layout: [i_f i_b | f_f f_b | o_f o_b | g_f g_b]
    # i/f/o pre-activations arrive pre-scaled by 0.5 -> sigmoid(x) = 0.5*tanh(x/2)+0.5
    h = jnp.zeros((1, D), f32)   # [h_fwd | h_bwd]
    c = jnp.zeros((1, D), f32)   # [c_fwd | c_bwd]
    for t in range(S):           # static unroll; h/c stay in vregs
        gates = gx_rows[t] + jnp.dot(h, w_rec, preferred_element_type=f32)    # (1, 8H)
        tg = jnp.tanh(gates)                                                  # ONE 128-lane EUP push
        sg = 0.5 * tg[:, 0:6 * H] + 0.5                                       # sigmoid(i,f,o) via VPU fma
        g = tg[:, 6 * H:8 * H]                                                # tanh(g), both dirs
        c = sg[:, 2 * H:4 * H] * c + sg[:, 0:2 * H] * g
        h = sg[:, 4 * H:6 * H] * jnp.tanh(c)
        enc_ref[t:t + 1, 0:H] = h[:, 0:H]                # forward output at position t
        enc_ref[S - 1 - t:S - t, H:D] = h[:, H:D]        # backward output at position S-1-t

    # q0 = reshape(h_n, (1, 2H)) = [h_fwd_final | h_bwd_final] = fused carry at loop end
    q0 = h

    # ---- process block (attention glimpse), 10x, statically unrolled ----
    # Carry qp = q @ W_q + b_q instead of q (re-association); fold the next-iteration
    # projection (and the decoder's first layer for the final glimpse) into the
    # sequence-side precomputes. Exact because softmax weights sum to 1.
    enc = enc_ref[...]                                                        # (S, 2H)
    e_proj = jnp.dot(enc, w_rp, preferred_element_type=f32) + b_rp            # (S, 2H)
    e_q = jnp.dot(e_proj, w_q, preferred_element_type=f32) + b_q              # (S, 2H)
    e_d1 = jnp.dot(e_proj, w_d1, preferred_element_type=f32) + b_d1           # (S, 2H)
    ones_row = jnp.ones((1, S), f32)

    qp = jnp.dot(q0, w_q, preferred_element_type=f32) + b_q                   # (1, 2H)
    h1 = jnp.zeros((1, D), f32)
    for i in range(NUM_PROCESS_BLOCKS):
        tt = jnp.tanh(e_proj + qp)                                            # (S, 2H)
        u = jnp.dot(tt, v_col, preferred_element_type=f32)                    # (S, 1)
        # |u| <= ||v||_1 since tanh in [-1,1] -> exp cannot overflow; skip max-subtraction
        ex = jnp.exp(u)
        # deferred normalization: EUP reciprocal overlaps the MXU weighted sum
        r = pl.reciprocal(jnp.sum(ex, axis=0, keepdims=True), approx=True)    # (1, 1)
        if i < NUM_PROCESS_BLOCKS - 1:
            # qp_next = q_next @ W_q + b_q, with q_next = softmax(u) . e_proj
            qp = jnp.dot(ones_row, ex * e_q, preferred_element_type=f32) * r  # (1, 2H)
        else:
            # final glimpse fused with decoder layer 1: relu(q_final @ W_d1 + b_d1)
            h1 = jnp.maximum(
                jnp.dot(ones_row, ex * e_d1, preferred_element_type=f32) * r, 0.0)

    # ---- decoder layer 2 ----
    out_ref[...] = jnp.dot(h1, w_d2, preferred_element_type=f32) + b_d2


# ---------------- parameter construction (deterministic, synthetic) ----------------
def _uniform(key, shape, scale):
    return jax.random.uniform(key, shape, jnp.float32, minval=-scale, maxval=scale)


def make_params(key):
    H, F = HIDDEN, IN_FEATURES
    ks = jax.random.split(key, 20)
    s_emb = 1.0 / jnp.sqrt(F)
    s_lstm = 1.0 / jnp.sqrt(H)
    s_d = 1.0 / jnp.sqrt(D)
    return {
        "w_emb": _uniform(ks[0], (H, F), s_emb),
        "b_emb": _uniform(ks[1], (H,), s_emb),
        # forward LSTM (PyTorch layout: (4H, in), gate order i,f,g,o)
        "w_ih_f": _uniform(ks[2], (4 * H, H), s_lstm),
        "w_hh_f": _uniform(ks[3], (4 * H, H), s_lstm),
        "b_ih_f": _uniform(ks[4], (4 * H,), s_lstm),
        "b_hh_f": _uniform(ks[5], (4 * H,), s_lstm),
        # backward LSTM
        "w_ih_b": _uniform(ks[6], (4 * H, H), s_lstm),
        "w_hh_b": _uniform(ks[7], (4 * H, H), s_lstm),
        "b_ih_b": _uniform(ks[8], (4 * H,), s_lstm),
        "b_hh_b": _uniform(ks[9], (4 * H,), s_lstm),
        # attention (project_query Linear, project_ref Conv1d k=1, score vector v)
        "w_q": _uniform(ks[10], (D, D), s_d),
        "b_q": _uniform(ks[11], (D,), s_d),
        "w_ref": _uniform(ks[12], (D, D), s_d),
        "b_ref": _uniform(ks[13], (D,), s_d),
        "v": _uniform(ks[14], (D,), s_d),
        # decoder
        "w_d1": _uniform(ks[15], (D, D), s_d),
        "b_d1": _uniform(ks[16], (D,), s_d),
        "w_d2": _uniform(ks[17], (1, D), s_d),
        "b_d2": _uniform(ks[18], (1,), s_d),
    }


def _pack_dir(w4t, off):
    """w4t: (X, 4H) transposed weights with gate cols [i|f|g|o] (PyTorch order).
    Returns (X, 8H) in fused layout [i_f i_b | f_f f_b | o_f o_b | g_f g_b],
    filling only the columns of direction `off` (0 = fwd, H = bwd)."""
    H = HIDDEN
    out = jnp.zeros((w4t.shape[0], 8 * H), jnp.float32)
    i, f, g, o = w4t[:, 0:H], w4t[:, H:2 * H], w4t[:, 2 * H:3 * H], w4t[:, 3 * H:4 * H]
    out = out.at[:, 0 * H + off:0 * H + off + H].set(i)
    out = out.at[:, 2 * H + off:2 * H + off + H].set(f)
    out = out.at[:, 4 * H + off:4 * H + off + H].set(o)
    out = out.at[:, 6 * H + off:6 * H + off + H].set(g)
    return out


def pack_params(p):
    """Pack all Critic parameters into one (ROWS, 128) f32 slab (single DMA).
    The i/f/o gate columns of the LSTM weights/bias are pre-scaled by 0.5 so the
    kernel can recover sigmoid from a single tanh (sigmoid(x)=0.5*tanh(x/2)+0.5)."""
    H, F = HIDDEN, IN_FEATURES
    gate_scale = jnp.ones((LANES,), jnp.float32).at[0:6 * H].set(0.5)
    slab = jnp.zeros((ROWS, LANES), jnp.float32)
    # misc block (rows 0:8)
    slab = slab.at[0:F, 0:H].set(p["w_emb"].T)
    slab = slab.at[ROW_BEMB, 0:H].set(p["b_emb"])
    b_lstm = (_pack_dir((p["b_ih_f"] + p["b_hh_f"]).reshape(1, 4 * H), 0)
              + _pack_dir((p["b_ih_b"] + p["b_hh_b"]).reshape(1, 4 * H), H))
    slab = slab.at[ROW_BLSTM, :].set(b_lstm[0] * gate_scale)
    slab = slab.at[ROW_BVEC, 0:D].set(p["b_q"])
    slab = slab.at[ROW_BVEC, D:2 * D].set(p["b_ref"])
    slab = slab.at[ROW_BVEC, 2 * D:3 * D].set(p["b_d1"])
    slab = slab.at[ROW_BVEC, 3 * D].set(p["b_d2"][0])
    # LSTM input weights (packed per direction, i/f/o columns pre-scaled)
    slab = slab.at[R_WIN_F:R_WIN_F + H, :].set(_pack_dir(p["w_ih_f"].T, 0) * gate_scale)
    slab = slab.at[R_WIN_B:R_WIN_B + H, :].set(_pack_dir(p["w_ih_b"].T, H) * gate_scale)
    # block-diagonal fused recurrent weights (i/f/o columns pre-scaled)
    slab = slab.at[R_WREC:R_WREC + H, :].set(_pack_dir(p["w_hh_f"].T, 0) * gate_scale)
    slab = slab.at[R_WREC + H:R_WREC + 2 * H, :].set(_pack_dir(p["w_hh_b"].T, H) * gate_scale)
    # attention + decoder matrices packed side by side in lanes
    slab = slab.at[R_ATTN:R_ATTN + D, 0:D].set(p["w_q"].T)
    slab = slab.at[R_ATTN:R_ATTN + D, D:2 * D].set(p["w_ref"].T)
    slab = slab.at[R_ATTN:R_ATTN + D, 2 * D:3 * D].set(p["w_d1"].T)
    slab = slab.at[R_ATTN:R_ATTN + D, 3 * D:3 * D + 1].set(p["v"].reshape(D, 1))
    slab = slab.at[R_ATTN:R_ATTN + D, 3 * D + 1:3 * D + 2].set(p["w_d2"].T)
    return slab


@jax.jit
def critic_forward(param_slab, state):
    """Mirrors Critic.forward (batch=1); the extra args of the PyTorch signature are
    recomputed by the encoder inside forward() and therefore not taken."""
    # TODO(synk): the MaskedPointerNetwork half of PointerCriticArch (probs/act)
    # is a separate autoregressive decoder and is not implemented here.
    return pl.pallas_call(
        critic_kernel,
        out_shape=jax.ShapeDtypeStruct((1, 1), jnp.float32),
        in_specs=[pl.BlockSpec(memory_space=pltpu.MemorySpace.VMEM),
                  pl.BlockSpec(memory_space=pltpu.MemorySpace.VMEM)],
        out_specs=pl.BlockSpec(memory_space=pltpu.MemorySpace.VMEM),
        scratch_shapes=[pltpu.VMEM((SEQ, D), jnp.float32)],   # encoder outputs
    )(state.astype(jnp.float32), param_slab)


if __name__ == "__main__":
    key = jax.random.PRNGKey(0)
    pkey, skey = jax.random.split(key)
    params = make_params(pkey)
    slab = pack_params(params)                      # pack once, reuse every call
    state = jax.random.normal(skey, (SEQ, IN_FEATURES), jnp.float32)

    v = critic_forward(slab, state)
    jax.block_until_ready(v)
    assert v.shape == (1, 1) and bool(jnp.isfinite(v).all())
    print("KERNEL_OK")
</pallas_src>

<mosaic_0001>
module attributes {stable_mosaic.version = 11 : i64} {
  func.func @critic_kernel(%arg0: memref<8x4xf32, #tpu.memory_space<vmem>>, %arg1: memref<104x128xf32, #tpu.memory_space<vmem>>, %arg2: memref<1x1xf32, #tpu.memory_space<vmem>>, %arg3: memref<8x32xf32, #tpu.memory_space<vmem>>) attributes {dimension_semantics = [], scalar_prefetch = 0 : i64, scratch_operands = 1 : i64, tpu.core_type = #tpu.core_type<tc>} {
    %c0 = arith.constant 0 : index
    %c0_0 = arith.constant 0 : index
    %0 = vector.load %arg1[%c0, %c0_0] : memref<104x128xf32, #tpu.memory_space<vmem>>, vector<4x16xf32>
    %c4 = arith.constant 4 : index
    %c0_1 = arith.constant 0 : index
    %1 = vector.load %arg1[%c4, %c0_1] : memref<104x128xf32, #tpu.memory_space<vmem>>, vector<1x16xf32>
    %c5 = arith.constant 5 : index
    %c0_2 = arith.constant 0 : index
    %2 = vector.load %arg1[%c5, %c0_2] : memref<104x128xf32, #tpu.memory_space<vmem>>, vector<1x128xf32>
    %c6 = arith.constant 6 : index
    %c0_3 = arith.constant 0 : index
    %3 = vector.load %arg1[%c6, %c0_3] : memref<104x128xf32, #tpu.memory_space<vmem>>, vector<1x32xf32>
    %c6_4 = arith.constant 6 : index
    %c32 = arith.constant 32 : index
    %4 = vector.load %arg1[%c6_4, %c32] : memref<104x128xf32, #tpu.memory_space<vmem>>, vector<1x32xf32>
    %c6_5 = arith.constant 6 : index
    %c64 = arith.constant 64 : index
    %5 = vector.load %arg1[%c6_5, %c64] : memref<104x128xf32, #tpu.memory_space<vmem>>, vector<1x32xf32>
    %c6_6 = arith.constant 6 : index
    %c96 = arith.constant 96 : index
    %6 = vector.load %arg1[%c6_6, %c96] : memref<104x128xf32, #tpu.memory_space<vmem>>, vector<1x1xf32>
    %c8 = arith.constant 8 : index
    %c0_7 = arith.constant 0 : index
    %7 = vector.load %arg1[%c8, %c0_7] : memref<104x128xf32, #tpu.memory_space<vmem>>, vector<16x128xf32>
    %c24 = arith.constant 24 : index
    %c0_8 = arith.constant 0 : index
    %8 = vector.load %arg1[%c24, %c0_8] : memref<104x128xf32, #tpu.memory_space<vmem>>, vector<16x128xf32>
    %c40 = arith.constant 40 : index
    %c0_9 = arith.constant 0 : index
    %9 = vector.load %arg1[%c40, %c0_9] : memref<104x128xf32, #tpu.memory_space<vmem>>, vector<32x128xf32>
    %c72 = arith.constant 72 : index
    %c0_10 = arith.constant 0 : index
    %10 = vector.load %arg1[%c72, %c0_10] : memref<104x128xf32, #tpu.memory_space<vmem>>, vector<32x32xf32>
    %c72_11 = arith.constant 72 : index
    %c32_12 = arith.constant 32 : index
    %11 = vector.load %arg1[%c72_11, %c32_12] : memref<104x128xf32, #tpu.memory_space<vmem>>, vector<32x32xf32>
    %c72_13 = arith.constant 72 : index
    %c64_14 = arith.constant 64 : index
    %12 = vector.load %arg1[%c72_13, %c64_14] : memref<104x128xf32, #tpu.memory_space<vmem>>, vector<32x32xf32>
    %c72_15 = arith.constant 72 : index
    %c96_16 = arith.constant 96 : index
    %13 = vector.load %arg1[%c72_15, %c96_16] : memref<104x128xf32, #tpu.memory_space<vmem>>, vector<32x1xf32>
    %c72_17 = arith.constant 72 : index
    %c97 = arith.constant 97 : index
    %14 = vector.load %arg1[%c72_17, %c97] : memref<104x128xf32, #tpu.memory_space<vmem>>, vector<32x1xf32>
    %c0_18 = arith.constant 0 : index
    %c0_19 = arith.constant 0 : index
    %15 = vector.load %arg0[%c0_18, %c0_19] : memref<8x4xf32, #tpu.memory_space<vmem>>, vector<8x4xf32>
    %cst = arith.constant dense<0.000000e+00> : vector<8x16xf32>
    %16 = tpu.matmul %15, %0, %cst {dimension_numbers = #tpu.dot_dimension_numbers<[1], [0], [0], [1], [0, 0, 1, 1], [], []>} : vector<8x4xf32>, vector<4x16xf32>, vector<8x16xf32> -> vector<8x16xf32>
    %17 = vector.broadcast %1 : vector<1x16xf32> to vector<8x16xf32>
    %18 = arith.addf %16, %17 : vector<8x16xf32>
    %cst_20 = arith.constant dense<0.000000e+00> : vector<8x128xf32>
    %19 = tpu.matmul %18, %7, %cst_20 {dimension_numbers = #tpu.dot_dimension_numbers<[1], [0], [0], [1], [0, 0, 1, 1], [], []>} : vector<8x16xf32>, vector<16x128xf32>, vector<8x128xf32> -> vector<8x128xf32>
    %20 = vector.broadcast %2 : vector<1x128xf32> to vector<8x128xf32>
    %21 = arith.addf %19, %20 : vector<8x128xf32>
    %cst_21 = arith.constant dense<0.000000e+00> : vector<8x128xf32>
    %22 = tpu.matmul %18, %8, %cst_21 {dimension_numbers = #tpu.dot_dimension_numbers<[1], [0], [0], [1], [0, 0, 1, 1], [], []>} : vector<8x16xf32>, vector<16x128xf32>, vector<8x128xf32> -> vector<8x128xf32>
    %23 = vector.extract_strided_slice %21 {offsets = [0, 0], sizes = [1, 128], strides = [1, 1]} : vector<8x128xf32> to vector<1x128xf32>
    %24 = vector.extract_strided_slice %22 {offsets = [7, 0], sizes = [1, 128], strides = [1, 1]} : vector<8x128xf32> to vector<1x128xf32>
    %25 = arith.addf %23, %24 : vector<1x128xf32>
    %26 = vector.extract_strided_slice %21 {offsets = [1, 0], sizes = [1, 128], strides = [1, 1]} : vector<8x128xf32> to vector<1x128xf32>
    %27 = vector.extract_strided_slice %22 {offsets = [6, 0], sizes = [1, 128], strides = [1, 1]} : vector<8x128xf32> to vector<1x128xf32>
    %28 = arith.addf %26, %27 : vector<1x128xf32>
    %29 = vector.extract_strided_slice %21 {offsets = [2, 0], sizes = [1, 128], strides = [1, 1]} : vector<8x128xf32> to vector<1x128xf32>
    %30 = vector.extract_strided_slice %22 {offsets = [5, 0], sizes = [1, 128], strides = [1, 1]} : vector<8x128xf32> to vector<1x128xf32>
    %31 = arith.addf %29, %30 : vector<1x128xf32>
    %32 = vector.extract_strided_slice %21 {offsets = [3, 0], sizes = [1, 128], strides = [1, 1]} : vector<8x128xf32> to vector<1x128xf32>
    %33 = vector.extract_strided_slice %22 {offsets = [4, 0], sizes = [1, 128], strides = [1, 1]} : vector<8x128xf32> to vector<1x128xf32>
    %34 = arith.addf %32, %33 : vector<1x128xf32>
    %35 = vector.extract_strided_slice %21 {offsets = [4, 0], sizes = [1, 128], strides = [1, 1]} : vector<8x128xf32> to vector<1x128xf32>
    %36 = vector.extract_strided_slice %22 {offsets = [3, 0], sizes = [1, 128], strides = [1, 1]} : vector<8x128xf32> to vector<1x128xf32>
    %37 = arith.addf %35, %36 : vector<1x128xf32>
    %38 = vector.extract_strided_slice %21 {offsets = [5, 0], sizes = [1, 128], strides = [1, 1]} : vector<8x128xf32> to vector<1x128xf32>
    %39 = vector.extract_strided_slice %22 {offsets = [2, 0], sizes = [1, 128], strides = [1, 1]} : vector<8x128xf32> to vector<1x128xf32>
    %40 = arith.addf %38, %39 : vector<1x128xf32>
    %41 = vector.extract_strided_slice %21 {offsets = [6, 0], sizes = [1, 128], strides = [1, 1]} : vector<8x128xf32> to vector<1x128xf32>
    %42 = vector.extract_strided_slice %22 {offsets = [1, 0], sizes = [1, 128], strides = [1, 1]} : vector<8x128xf32> to vector<1x128xf32>
    %43 = arith.addf %41, %42 : vector<1x128xf32>
    %44 = vector.extract_strided_slice %21 {offsets = [7, 0], sizes = [1, 128], strides = [1, 1]} : vector<8x128xf32> to vector<1x128xf32>
    %45 = vector.extract_strided_slice %22 {offsets = [0, 0], sizes = [1, 128], strides = [1, 1]} : vector<8x128xf32> to vector<1x128xf32>
    %46 = arith.addf %44, %45 : vector<1x128xf32>
    %cst_22 = arith.constant 0.000000e+00 : f32
    %47 = vector.broadcast %cst_22 : f32 to vector<1x32xf32>
    %cst_23 = arith.constant 0.000000e+00 : f32
    %48 = vector.broadcast %cst_23 : f32 to vector<1x32xf32>
    %cst_24 = arith.constant dense<0.000000e+00> : vector<1x128xf32>
    %49 = tpu.matmul %47, %9, %cst_24 {dimension_numbers = #tpu.dot_dimension_numbers<[1], [0], [0], [1], [0, 0, 1, 1], [], []>} : vector<1x32xf32>, vector<32x128xf32>, vector<1x128xf32> -> vector<1x128xf32>
    %50 = arith.addf %25, %49 : vector<1x128xf32>
    %51 = math.tanh %50 : vector<1x128xf32>
    %52 = vector.extract_strided_slice %51 {offsets = [0, 0], sizes = [1, 96], strides = [1, 1]} : vector<1x128xf32> to vector<1x96xf32>
    %cst_25 = arith.constant 5.000000e-01 : f32
    %53 = vector.broadcast %cst_25 : f32 to vector<1x96xf32>
    %54 = arith.mulf %53, %52 : vector<1x96xf32>
    %cst_26 = arith.constant 5.000000e-01 : f32
    %55 = vector.broadcast %cst_26 : f32 to vector<1x96xf32>
    %56 = arith.addf %54, %55 : vector<1x96xf32>
    %57 = vector.extract_strided_slice %51 {offsets = [0, 96], sizes = [1, 32], strides = [1, 1]} : vector<1x128xf32> to vector<1x32xf32>
    %58 = vector.extract_strided_slice %56 {offsets = [0, 32], sizes = [1, 32], strides = [1, 1]} : vector<1x96xf32> to vector<1x32xf32>
    %59 = arith.mulf %58, %48 : vector<1x32xf32>
    %60 = vector.extract_strided_slice %56 {offsets = [0, 0], sizes = [1, 32], strides = [1, 1]} : vector<1x96xf32> to vector<1x32xf32>
    %61 = arith.mulf %60, %57 : vector<1x32xf32>
    %62 = arith.addf %59, %61 : vector<1x32xf32>
    %63 = vector.extract_strided_slice %56 {offsets = [0, 64], sizes = [1, 32], strides = [1, 1]} : vector<1x96xf32> to vector<1x32xf32>
    %64 = math.tanh %62 : vector<1x32xf32>
    %65 = arith.mulf %63, %64 : vector<1x32xf32>
    %66 = vector.extract_strided_slice %65 {offsets = [0, 0], sizes = [1, 16], strides = [1, 1]} : vector<1x32xf32> to vector<1x16xf32>
    %c0_27 = arith.constant 0 : index
    %c0_28 = arith.constant 0 : index
    %67 = vector.load %arg3[%c0_27, %c0_28] : memref<8x32xf32, #tpu.memory_space<vmem>>, vector<1x16xf32>
    tpu.vector_store %arg3[%c0_27, %c0_28], %66 {strides = array<i32>} : memref<8x32xf32, #tpu.memory_space<vmem>>, vector<1x16xf32>,
    %68 = vector.extract_strided_slice %65 {offsets = [0, 16], sizes = [1, 16], strides = [1, 1]} : vector<1x32xf32> to vector<1x16xf32>
    %c7 = arith.constant 7 : index
    %c16 = arith.constant 16 : index
    %69 = vector.load %arg3[%c7, %c16] : memref<8x32xf32, #tpu.memory_space<vmem>>, vector<1x16xf32>
    tpu.vector_store %arg3[%c7, %c16], %68 {strides = array<i32>} : memref<8x32xf32, #tpu.memory_space<vmem>>, vector<1x16xf32>,
    %cst_29 = arith.constant dense<0.000000e+00> : vector<1x128xf32>
    %70 = tpu.matmul %65, %9, %cst_29 {dimension_numbers = #tpu.dot_dimension_numbers<[1], [0], [0], [1], [0, 0, 1, 1], [], []>} : vector<1x32xf32>, vector<32x128xf32>, vector<1x128xf32> -> vector<1x128xf32>
    %71 = arith.addf %28, %70 : vector<1x128xf32>
    %72 = math.tanh %71 : vector<1x128xf32>
    %73 = vector.extract_strided_slice %72 {offsets = [0, 0], sizes = [1, 96], strides = [1, 1]} : vector<1x128xf32> to vector<1x96xf32>
    %cst_30 = arith.constant 5.000000e-01 : f32
    %74 = vector.broadcast %cst_30 : f32 to vector<1x96xf32>
    %75 = arith.mulf %74, %73 : vector<1x96xf32>
    %cst_31 = arith.constant 5.000000e-01 : f32
    %76 = vector.broadcast %cst_31 : f32 to vector<1x96xf32>
    %77 = arith.addf %75, %76 : vector<1x96xf32>
    %78 = vector.extract_strided_slice %72 {offsets = [0, 96], sizes = [1, 32], strides = [1, 1]} : vector<1x128xf32> to vector<1x32xf32>
    %79 = vector.extract_strided_slice %77 {offsets = [0, 32], sizes = [1, 32], strides = [1, 1]} : vector<1x96xf32> to vector<1x32xf32>
    %80 = arith.mulf %79, %62 : vector<1x32xf32>
    %81 = vector.extract_strided_slice %77 {offsets = [0, 0], sizes = [1, 32], strides = [1, 1]} : vector<1x96xf32> to vector<1x32xf32>
    %82 = arith.mulf %81, %78 : vector<1x32xf32>
    %83 = arith.addf %80, %82 : vector<1x32xf32>
    %84 = vector.extract_strided_slice %77 {offsets = [0, 64], sizes = [1, 32], strides = [1, 1]} : vector<1x96xf32> to vector<1x32xf32>
    %85 = math.tanh %83 : vector<1x32xf32>
    %86 = arith.mulf %84, %85 : vector<1x32xf32>
    %87 = vector.extract_strided_slice %86 {offsets = [0, 0], sizes = [1, 16], strides = [1, 1]} : vector<1x32xf32> to vector<1x16xf32>
    %c1 = arith.constant 1 : index
    %c0_32 = arith.constant 0 : index
    %88 = vector.load %arg3[%c1, %c0_32] : memref<8x32xf32, #tpu.memory_space<vmem>>, vector<1x16xf32>
    tpu.vector_store %arg3[%c1, %c0_32], %87 {strides = array<i32>} : memref<8x32xf32, #tpu.memory_space<vmem>>, vector<1x16xf32>,
    %89 = vector.extract_strided_slice %86 {offsets = [0, 16], sizes = [1, 16], strides = [1, 1]} : vector<1x32xf32> to vector<1x16xf32>
    %c6_33 = arith.constant 6 : index
    %c16_34 = arith.constant 16 : index
    %90 = vector.load %arg3[%c6_33, %c16_34] : memref<8x32xf32, #tpu.memory_space<vmem>>, vector<1x16xf32>
    tpu.vector_store %arg3[%c6_33, %c16_34], %89 {strides = array<i32>} : memref<8x32xf32, #tpu.memory_space<vmem>>, vector<1x16xf32>,
    %cst_35 = arith.constant dense<0.000000e+00> : vector<1x128xf32>
    %91 = tpu.matmul %86, %9, %cst_35 {dimension_numbers = #tpu.dot_dimension_numbers<[1], [0], [0], [1], [0, 0, 1, 1], [], []>} : vector<1x32xf32>, vector<32x128xf32>, vector<1x128xf32> -> vector<1x128xf32>
    %92 = arith.addf %31, %91 : vector<1x128xf32>
    %93 = math.tanh %92 : vector<1x128xf32>
    %94 = vector.extract_strided_slice %93 {offsets = [0, 0], sizes = [1, 96], strides = [1, 1]} : vector<1x128xf32> to vector<1x96xf32>
    %cst_36 = arith.constant 5.000000e-01 : f32
    %95 = vector.broadcast %cst_36 : f32 to vector<1x96xf32>
    %96 = arith.mulf %95, %94 : vector<1x96xf32>
    %cst_37 = arith.constant 5.000000e-01 : f32
    %97 = vector.broadcast %cst_37 : f32 to vector<1x96xf32>
    %98 = arith.addf %96, %97 : vector<1x96xf32>
    %99 = vector.extract_strided_slice %93 {offsets = [0, 96], sizes = [1, 32], strides = [1, 1]} : vector<1x128xf32> to vector<1x32xf32>
    %100 = vector.extract_strided_slice %98 {offsets = [0, 32], sizes = [1, 32], strides = [1, 1]} : vector<1x96xf32> to vector<1x32xf32>
    %101 = arith.mulf %100, %83 : vector<1x32xf32>
    %102 = vector.extract_strided_slice %98 {offsets = [0, 0], sizes = [1, 32], strides = [1, 1]} : vector<1x96xf32> to vector<1x32xf32>
    %103 = arith.mulf %102, %99 : vector<1x32xf32>
    %104 = arith.addf %101, %103 : vector<1x32xf32>
    %105 = vector.extract_strided_slice %98 {offsets = [0, 64], sizes = [1, 32], strides = [1, 1]} : vector<1x96xf32> to vector<1x32xf32>
    %106 = math.tanh %104 : vector<1x32xf32>
    %107 = arith.mulf %105, %106 : vector<1x32xf32>
    %108 = vector.extract_strided_slice %107 {offsets = [0, 0], sizes = [1, 16], strides = [1, 1]} : vector<1x32xf32> to vector<1x16xf32>
    %c2 = arith.constant 2 : index
    %c0_38 = arith.constant 0 : index
    %109 = vector.load %arg3[%c2, %c0_38] : memref<8x32xf32, #tpu.memory_space<vmem>>, vector<1x16xf32>
    tpu.vector_store %arg3[%c2, %c0_38], %108 {strides = array<i32>} : memref<8x32xf32, #tpu.memory_space<vmem>>, vector<1x16xf32>,
    %110 = vector.extract_strided_slice %107 {offsets = [0, 16], sizes = [1, 16], strides = [1, 1]} : vector<1x32xf32> to vector<1x16xf32>
    %c5_39 = arith.constant 5 : index
    %c16_40 = arith.constant 16 : index
    %111 = vector.load %arg3[%c5_39, %c16_40] : memref<8x32xf32, #tpu.memory_space<vmem>>, vector<1x16xf32>
    tpu.vector_store %arg3[%c5_39, %c16_40], %110 {strides = array<i32>} : memref<8x32xf32, #tpu.memory_space<vmem>>, vector<1x16xf32>,
    %cst_41 = arith.constant dense<0.000000e+00> : vector<1x128xf32>
    %112 = tpu.matmul %107, %9, %cst_41 {dimension_numbers = #tpu.dot_dimension_numbers<[1], [0], [0], [1], [0, 0, 1, 1], [], []>} : vector<1x32xf32>, vector<32x128xf32>, vector<1x128xf32> -> vector<1x128xf32>
    %113 = arith.addf %34, %112 : vector<1x128xf32>
    %114 = math.tanh %113 : vector<1x128xf32>
    %115 = vector.extract_strided_slice %114 {offsets = [0, 0], sizes = [1, 96], strides = [1, 1]} : vector<1x128xf32> to vector<1x96xf32>
    %cst_42 = arith.constant 5.000000e-01 : f32
    %116 = vector.broadcast %cst_42 : f32 to vector<1x96xf32>
    %117 = arith.mulf %116, %115 : vector<1x96xf32>
    %cst_43 = arith.constant 5.000000e-01 : f32
    %118 = vector.broadcast %cst_43 : f32 to vector<1x96xf32>
    %119 = arith.addf %117, %118 : vector<1x96xf32>
    %120 = vector.extract_strided_slice %114 {offsets = [0, 96], sizes = [1, 32], strides = [1, 1]} : vector<1x128xf32> to vector<1x32xf32>
    %121 = vector.extract_strided_slice %119 {offsets = [0, 32], sizes = [1, 32], strides = [1, 1]} : vector<1x96xf32> to vector<1x32xf32>
    %122 = arith.mulf %121, %104 : vector<1x32xf32>
    %123 = vector.extract_strided_slice %119 {offsets = [0, 0], sizes = [1, 32], strides = [1, 1]} : vector<1x96xf32> to vector<1x32xf32>
    %124 = arith.mulf %123, %120 : vector<1x32xf32>
    %125 = arith.addf %122, %124 : vector<1x32xf32>
    %126 = vector.extract_strided_slice %119 {offsets = [0, 64], sizes = [1, 32], strides = [1, 1]} : vector<1x96xf32> to vector<1x32xf32>
    %127 = math.tanh %125 : vector<1x32xf32>
    %128 = arith.mulf %126, %127 : vector<1x32xf32>
    %129 = vector.extract_strided_slice %128 {offsets = [0, 0], sizes = [1, 16], strides = [1, 1]} : vector<1x32xf32> to vector<1x16xf32>
    %c3 = arith.constant 3 : index
    %c0_44 = arith.constant 0 : index
    %130 = vector.load %arg3[%c3, %c0_44] : memref<8x32xf32, #tpu.memory_space<vmem>>, vector<1x16xf32>
    tpu.vector_store %arg3[%c3, %c0_44], %129 {strides = array<i32>} : memref<8x32xf32, #tpu.memory_space<vmem>>, vector<1x16xf32>,
    %131 = vector.extract_strided_slice %128 {offsets = [0, 16], sizes = [1, 16], strides = [1, 1]} : vector<1x32xf32> to vector<1x16xf32>
    %c4_45 = arith.constant 4 : index
    %c16_46 = arith.constant 16 : index
    %132 = vector.load %arg3[%c4_45, %c16_46] : memref<8x32xf32, #tpu.memory_space<vmem>>, vector<1x16xf32>
    tpu.vector_store %arg3[%c4_45, %c16_46], %131 {strides = array<i32>} : memref<8x32xf32, #tpu.memory_space<vmem>>, vector<1x16xf32>,
    %cst_47 = arith.constant dense<0.000000e+00> : vector<1x128xf32>
    %133 = tpu.matmul %128, %9, %cst_47 {dimension_numbers = #tpu.dot_dimension_numbers<[1], [0], [0], [1], [0, 0, 1, 1], [], []>} : vector<1x32xf32>, vector<32x128xf32>, vector<1x128xf32> -> vector<1x128xf32>
    %134 = arith.addf %37, %133 : vector<1x128xf32>
    %135 = math.tanh %134 : vector<1x128xf32>
    %136 = vector.extract_strided_slice %135 {offsets = [0, 0], sizes = [1, 96], strides = [1, 1]} : vector<1x128xf32> to vector<1x96xf32>
    %cst_48 = arith.constant 5.000000e-01 : f32
    %137 = vector.broadcast %cst_48 : f32 to vector<1x96xf32>
    %138 = arith.mulf %137, %136 : vector<1x96xf32>
    %cst_49 = arith.constant 5.000000e-01 : f32
    %139 = vector.broadcast %cst_49 : f32 to vector<1x96xf32>
    %140 = arith.addf %138, %139 : vector<1x96xf32>
    %141 = vector.extract_strided_slice %135 {offsets = [0, 96], sizes = [1, 32], strides = [1, 1]} : vector<1x128xf32> to vector<1x32xf32>
    %142 = vector.extract_strided_slice %140 {offsets = [0, 32], sizes = [1, 32], strides = [1, 1]} : vector<1x96xf32> to vector<1x32xf32>
    %143 = arith.mulf %142, %125 : vector<1x32xf32>
    %144 = vector.extract_strided_slice %140 {offsets = [0, 0], sizes = [1, 32], strides = [1, 1]} : vector<1x96xf32> to vector<1x32xf32>
    %145 = arith.mulf %144, %141 : vector<1x32xf32>
    %146 = arith.addf %143, %145 : vector<1x32xf32>
    %147 = vector.extract_strided_slice %140 {offsets = [0, 64], sizes = [1, 32], strides = [1, 1]} : vector<1x96xf32> to vector<1x32xf32>
    %148 = math.tanh %146 : vector<1x32xf32>
    %149 = arith.mulf %147, %148 : vector<1x32xf32>
    %150 = vector.extract_strided_slice %149 {offsets = [0, 0], sizes = [1, 16], strides = [1, 1]} : vector<1x32xf32> to vector<1x16xf32>
    %c4_50 = arith.constant 4 : index
    %c0_51 = arith.constant 0 : index
    %151 = vector.load %arg3[%c4_50, %c0_51] : memref<8x32xf32, #tpu.memory_space<vmem>>, vector<1x16xf32>
    tpu.vector_store %arg3[%c4_50, %c0_51], %150 {strides = array<i32>} : memref<8x32xf32, #tpu.memory_space<vmem>>, vector<1x16xf32>,
    %152 = vector.extract_strided_slice %149 {offsets = [0, 16], sizes = [1, 16], strides = [1, 1]} : vector<1x32xf32> to vector<1x16xf32>
    %c3_52 = arith.constant 3 : index
    %c16_53 = arith.constant 16 : index
    %153 = vector.load %arg3[%c3_52, %c16_53] : memref<8x32xf32, #tpu.memory_space<vmem>>, vector<1x16xf32>
    tpu.vector_store %arg3[%c3_52, %c16_53], %152 {strides = array<i32>} : memref<8x32xf32, #tpu.memory_space<vmem>>, vector<1x16xf32>,
    %cst_54 = arith.constant dense<0.000000e+00> : vector<1x128xf32>
    %154 = tpu.matmul %149, %9, %cst_54 {dimension_numbers = #tpu.dot_dimension_numbers<[1], [0], [0], [1], [0, 0, 1, 1], [], []>} : vector<1x32xf32>, vector<32x128xf32>, vector<1x128xf32> -> vector<1x128xf32>
    %155 = arith.addf %40, %154 : vector<1x128xf32>
    %156 = math.tanh %155 : vector<1x128xf32>
    %157 = vector.extract_strided_slice %156 {offsets = [0, 0], sizes = [1, 96], strides = [1, 1]} : vector<1x128xf32> to vector<1x96xf32>
    %cst_55 = arith.constant 5.000000e-01 : f32
    %158 = vector.broadcast %cst_55 : f32 to vector<1x96xf32>
    %159 = arith.mulf %158, %157 : vector<1x96xf32>
    %cst_56 = arith.constant 5.000000e-01 : f32
    %160 = vector.broadcast %cst_56 : f32 to vector<1x96xf32>
    %161 = arith.addf %159, %160 : vector<1x96xf32>
    %162 = vector.extract_strided_slice %156 {offsets = [0, 96], sizes = [1, 32], strides = [1, 1]} : vector<1x128xf32> to vector<1x32xf32>
    %163 = vector.extract_strided_slice %161 {offsets = [0, 32], sizes = [1, 32], strides = [1, 1]} : vector<1x96xf32> to vector<1x32xf32>
    %164 = arith.mulf %163, %146 : vector<1x32xf32>
    %165 = vector.extract_strided_slice %161 {offsets = [0, 0], sizes = [1, 32], strides = [1, 1]} : vector<1x96xf32> to vector<1x32xf32>
    %166 = arith.mulf %165, %162 : vector<1x32xf32>
    %167 = arith.addf %164, %166 : vector<1x32xf32>
    %168 = vector.extract_strided_slice %161 {offsets = [0, 64], sizes = [1, 32], strides = [1, 1]} : vector<1x96xf32> to vector<1x32xf32>
    %169 = math.tanh %167 : vector<1x32xf32>
    %170 = arith.mulf %168, %169 : vector<1x32xf32>
    %171 = vector.extract_strided_slice %170 {offsets = [0, 0], sizes = [1, 16], strides = [1, 1]} : vector<1x32xf32> to vector<1x16xf32>
    %c5_57 = arith.constant 5 : index
    %c0_58 = arith.constant 0 : index
    %172 = vector.load %arg3[%c5_57, %c0_58] : memref<8x32xf32, #tpu.memory_space<vmem>>, vector<1x16xf32>
    tpu.vector_store %arg3[%c5_57, %c0_58], %171 {strides = array<i32>} : memref<8x32xf32, #tpu.memory_space<vmem>>, vector<1x16xf32>,
    %173 = vector.extract_strided_slice %170 {offsets = [0, 16], sizes = [1, 16], strides = [1, 1]} : vector<1x32xf32> to vector<1x16xf32>
    %c2_59 = arith.constant 2 : index
    %c16_60 = arith.constant 16 : index
    %174 = vector.load %arg3[%c2_59, %c16_60] : memref<8x32xf32, #tpu.memory_space<vmem>>, vector<1x16xf32>
    tpu.vector_store %arg3[%c2_59, %c16_60], %173 {strides = array<i32>} : memref<8x32xf32, #tpu.memory_space<vmem>>, vector<1x16xf32>,
    %cst_61 = arith.constant dense<0.000000e+00> : vector<1x128xf32>
    %175 = tpu.matmul %170, %9, %cst_61 {dimension_numbers = #tpu.dot_dimension_numbers<[1], [0], [0], [1], [0, 0, 1, 1], [], []>} : vector<1x32xf32>, vector<32x128xf32>, vector<1x128xf32> -> vector<1x128xf32>
    %176 = arith.addf %43, %175 : vector<1x128xf32>
    %177 = math.tanh %176 : vector<1x128xf32>
    %178 = vector.extract_strided_slice %177 {offsets = [0, 0], sizes = [1, 96], strides = [1, 1]} : vector<1x128xf32> to vector<1x96xf32>
    %cst_62 = arith.constant 5.000000e-01 : f32
    %179 = vector.broadcast %cst_62 : f32 to vector<1x96xf32>
    %180 = arith.mulf %179, %178 : vector<1x96xf32>
    %cst_63 = arith.constant 5.000000e-01 : f32
    %181 = vector.broadcast %cst_63 : f32 to vector<1x96xf32>
    %182 = arith.addf %180, %181 : vector<1x96xf32>
    %183 = vector.extract_strided_slice %177 {offsets = [0, 96], sizes = [1, 32], strides = [1, 1]} : vector<1x128xf32> to vector<1x32xf32>
    %184 = vector.extract_strided_slice %182 {offsets = [0, 32], sizes = [1, 32], strides = [1, 1]} : vector<1x96xf32> to vector<1x32xf32>
    %185 = arith.mulf %184, %167 : vector<1x32xf32>
    %186 = vector.extract_strided_slice %182 {offsets = [0, 0], sizes = [1, 32], strides = [1, 1]} : vector<1x96xf32> to vector<1x32xf32>
    %187 = arith.mulf %186, %183 : vector<1x32xf32>
    %188 = arith.addf %185, %187 : vector<1x32xf32>
    %189 = vector.extract_strided_slice %182 {offsets = [0, 64], sizes = [1, 32], strides = [1, 1]} : vector<1x96xf32> to vector<1x32xf32>
    %190 = math.tanh %188 : vector<1x32xf32>
    %191 = arith.mulf %189, %190 : vector<1x32xf32>
    %192 = vector.extract_strided_slice %191 {offsets = [0, 0], sizes = [1, 16], strides = [1, 1]} : vector<1x32xf32> to vector<1x16xf32>
    %c6_64 = arith.constant 6 : index
    %c0_65 = arith.constant 0 : index
    %193 = vector.load %arg3[%c6_64, %c0_65] : memref<8x32xf32, #tpu.memory_space<vmem>>, vector<1x16xf32>
    tpu.vector_store %arg3[%c6_64, %c0_65], %192 {strides = array<i32>} : memref<8x32xf32, #tpu.memory_space<vmem>>, vector<1x16xf32>,
    %194 = vector.extract_strided_slice %191 {offsets = [0, 16], sizes = [1, 16], strides = [1, 1]} : vector<1x32xf32> to vector<1x16xf32>
    %c1_66 = arith.constant 1 : index
    %c16_67 = arith.constant 16 : index
    %195 = vector.load %arg3[%c1_66, %c16_67] : memref<8x32xf32, #tpu.memory_space<vmem>>, vector<1x16xf32>
    tpu.vector_store %arg3[%c1_66, %c16_67], %194 {strides = array<i32>} : memref<8x32xf32, #tpu.memory_space<vmem>>, vector<1x16xf32>,
    %cst_68 = arith.constant dense<0.000000e+00> : vector<1x128xf32>
    %196 = tpu.matmul %191, %9, %cst_68 {dimension_numbers = #tpu.dot_dimension_numbers<[1], [0], [0], [1], [0, 0, 1, 1], [], []>} : vector<1x32xf32>, vector<32x128xf32>, vector<1x128xf32> -> vector<1x128xf32>
    %197 = arith.addf %46, %196 : vector<1x128xf32>
    %198 = math.tanh %197 : vector<1x128xf32>
    %199 = vector.extract_strided_slice %198 {offsets = [0, 0], sizes = [1, 96], strides = [1, 1]} : vector<1x128xf32> to vector<1x96xf32>
    %cst_69 = arith.constant 5.000000e-01 : f32
    %200 = vector.broadcast %cst_69 : f32 to vector<1x96xf32>
    %201 = arith.mulf %200, %199 : vector<1x96xf32>
    %cst_70 = arith.constant 5.000000e-01 : f32
    %202 = vector.broadcast %cst_70 : f32 to vector<1x96xf32>
    %203 = arith.addf %201, %202 : vector<1x96xf32>
    %204 = vector.extract_strided_slice %198 {offsets = [0, 96], sizes = [1, 32], strides = [1, 1]} : vector<1x128xf32> to vector<1x32xf32>
    %205 = vector.extract_strided_slice %203 {offsets = [0, 32], sizes = [1, 32], strides = [1, 1]} : vector<1x96xf32> to vector<1x32xf32>
    %206 = arith.mulf %205, %188 : vector<1x32xf32>
    %207 = vector.extract_strided_slice %203 {offsets = [0, 0], sizes = [1, 32], strides = [1, 1]} : vector<1x96xf32> to vector<1x32xf32>
    %208 = arith.mulf %207, %204 : vector<1x32xf32>
    %209 = arith.addf %206, %208 : vector<1x32xf32>
    %210 = vector.extract_strided_slice %203 {offsets = [0, 64], sizes = [1, 32], strides = [1, 1]} : vector<1x96xf32> to vector<1x32xf32>
    %211 = math.tanh %209 : vector<1x32xf32>
    %212 = arith.mulf %210, %211 : vector<1x32xf32>
    %213 = vector.extract_strided_slice %212 {offsets = [0, 0], sizes = [1, 16], strides = [1, 1]} : vector<1x32xf32> to vector<1x16xf32>
    %c7_71 = arith.constant 7 : index
    %c0_72 = arith.constant 0 : index
    %214 = vector.load %arg3[%c7_71, %c0_72] : memref<8x32xf32, #tpu.memory_space<vmem>>, vector<1x16xf32>
    tpu.vector_store %arg3[%c7_71, %c0_72], %213 {strides = array<i32>} : memref<8x32xf32, #tpu.memory_space<vmem>>, vector<1x16xf32>,
    %215 = vector.extract_strided_slice %212 {offsets = [0, 16], sizes = [1, 16], strides = [1, 1]} : vector<1x32xf32> to vector<1x16xf32>
    %c0_73 = arith.constant 0 : index
    %c16_74 = arith.constant 16 : index
    %216 = vector.load %arg3[%c0_73, %c16_74] : memref<8x32xf32, #tpu.memory_space<vmem>>, vector<1x16xf32>
    tpu.vector_store %arg3[%c0_73, %c16_74], %215 {strides = array<i32>} : memref<8x32xf32, #tpu.memory_space<vmem>>, vector<1x16xf32>,
    %c0_75 = arith.constant 0 : index
    %c0_76 = arith.constant 0 : index
    %217 = vector.load %arg3[%c0_75, %c0_76] : memref<8x32xf32, #tpu.memory_space<vmem>>, vector<8x32xf32>
    %cst_77 = arith.constant dense<0.000000e+00> : vector<8x32xf32>
    %218 = tpu.matmul %217, %11, %cst_77 {dimension_numbers = #tpu.dot_dimension_numbers<[1], [0], [0], [1], [0, 0, 1, 1], [], []>} : vector<8x32xf32>, vector<32x32xf32>, vector<8x32xf32> -> vector<8x32xf32>
    %219 = vector.broadcast %4 : vector<1x32xf32> to vector<8x32xf32>
    %220 = arith.addf %218, %219 : vector<8x32xf32>
    %cst_78 = arith.constant dense<0.000000e+00> : vector<8x32xf32>
    %221 = tpu.matmul %220, %10, %cst_78 {dimension_numbers = #tpu.dot_dimension_numbers<[1], [0], [0], [1], [0, 0, 1, 1], [], []>} : vector<8x32xf32>, vector<32x32xf32>, vector<8x32xf32> -> vector<8x32xf32>
    %222 = vector.broadcast %3 : vector<1x32xf32> to vector<8x32xf32>
    %223 = arith.addf %221, %222 : vector<8x32xf32>
    %cst_79 = arith.constant dense<0.000000e+00> : vector<8x32xf32>
    %224 = tpu.matmul %220, %12, %cst_79 {dimension_numbers = #tpu.dot_dimension_numbers<[1], [0], [0], [1], [0, 0, 1, 1], [], []>} : vector<8x32xf32>, vector<32x32xf32>, vector<8x32xf32> -> vector<8x32xf32>
    %225 = vector.broadcast %5 : vector<1x32xf32> to vector<8x32xf32>
    %226 = arith.addf %224, %225 : vector<8x32xf32>
    %cst_80 = arith.constant 1.000000e+00 : f32
    %227 = vector.broadcast %cst_80 : f32 to vector<1x8xf32>
    %cst_81 = arith.constant dense<0.000000e+00> : vector<1x32xf32>
    %228 = tpu.matmul %212, %10, %cst_81 {dimension_numbers = #tpu.dot_dimension_numbers<[1], [0], [0], [1], [0, 0, 1, 1], [], []>} : vector<1x32xf32>, vector<32x32xf32>, vector<1x32xf32> -> vector<1x32xf32>
    %229 = arith.addf %228, %3 : vector<1x32xf32>
    %230 = vector.broadcast %229 : vector<1x32xf32> to vector<8x32xf32>
    %231 = arith.addf %220, %230 : vector<8x32xf32>
    %232 = math.tanh %231 : vector<8x32xf32>
    %cst_82 = arith.constant dense<0.000000e+00> : vector<8x1xf32>
    %233 = tpu.matmul %232, %13, %cst_82 {dimension_numbers = #tpu.dot_dimension_numbers<[1], [0], [0], [1], [0, 0, 1, 1], [], []>} : vector<8x32xf32>, vector<32x1xf32>, vector<8x1xf32> -> vector<8x1xf32>
    %234 = math.exp %233 : vector<8x1xf32>
    %cst_83 = arith.constant dense<0.000000e+00> : vector<1xf32>
    %235 = vector.multi_reduction <add>, %234, %cst_83 [0] : vector<8x1xf32> to vector<1xf32>
    %236 = vector.shape_cast %235 : vector<1xf32> to vector<1x1xf32>
    %237 = tpu.reciprocal %236 {approx = true} : vector<1x1xf32> -> vector<1x1xf32>
    %238 = vector.broadcast %234 : vector<8x1xf32> to vector<8x32xf32>
    %239 = arith.mulf %238, %223 : vector<8x32xf32>
    %cst_84 = arith.constant dense<0.000000e+00> : vector<1x32xf32>
    %240 = tpu.matmul %227, %239, %cst_84 {dimension_numbers = #tpu.dot_dimension_numbers<[1], [0], [0], [1], [0, 0, 1, 1], [], []>} : vector<1x8xf32>, vector<8x32xf32>, vector<1x32xf32> -> vector<1x32xf32>
    %241 = vector.broadcast %237 : vector<1x1xf32> to vector<1x32xf32>
    %242 = arith.mulf %240, %241 : vector<1x32xf32>
    %243 = vector.broadcast %242 : vector<1x32xf32> to vector<8x32xf32>
    %244 = arith.addf %220, %243 : vector<8x32xf32>
    %245 = math.tanh %244 : vector<8x32xf32>
    %cst_85 = arith.constant dense<0.000000e+00> : vector<8x1xf32>
    %246 = tpu.matmul %245, %13, %cst_85 {dimension_numbers = #tpu.dot_dimension_numbers<[1], [0], [0], [1], [0, 0, 1, 1], [], []>} : vector<8x32xf32>, vector<32x1xf32>, vector<8x1xf32> -> vector<8x1xf32>
    %247 = math.exp %246 : vector<8x1xf32>
    %cst_86 = arith.constant dense<0.000000e+00> : vector<1xf32>
    %248 = vector.multi_reduction <add>, %247, %cst_86 [0] : vector<8x1xf32> to vector<1xf32>
    %249 = vector.shape_cast %248 : vector<1xf32> to vector<1x1xf32>
    %250 = tpu.reciprocal %249 {approx = true} : vector<1x1xf32> -> vector<1x1xf32>
    %251 = vector.broadcast %247 : vector<8x1xf32> to vector<8x32xf32>
    %252 = arith.mulf %251, %223 : vector<8x32xf32>
    %cst_87 = arith.constant dense<0.000000e+00> : vector<1x32xf32>
    %253 = tpu.matmul %227, %252, %cst_87 {dimension_numbers = #tpu.dot_dimension_numbers<[1], [0], [0], [1], [0, 0, 1, 1], [], []>} : vector<1x8xf32>, vector<8x32xf32>, vector<1x32xf32> -> vector<1x32xf32>
    %254 = vector.broadcast %250 : vector<1x1xf32> to vector<1x32xf32>
    %255 = arith.mulf %253, %254 : vector<1x32xf32>
    %256 = vector.broadcast %255 : vector<1x32xf32> to vector<8x32xf32>
    %257 = arith.addf %220, %256 : vector<8x32xf32>
    %258 = math.tanh %257 : vector<8x32xf32>
    %cst_88 = arith.constant dense<0.000000e+00> : vector<8x1xf32>
    %259 = tpu.matmul %258, %13, %cst_88 {dimension_numbers = #tpu.dot_dimension_numbers<[1], [0], [0], [1], [0, 0, 1, 1], [], []>} : vector<8x32xf32>, vector<32x1xf32>, vector<8x1xf32> -> vector<8x1xf32>
    %260 = math.exp %259 : vector<8x1xf32>
    %cst_89 = arith.constant dense<0.000000e+00> : vector<1xf32>
    %261 = vector.multi_reduction <add>, %260, %cst_89 [0] : vector<8x1xf32> to vector<1xf32>
    %262 = vector.shape_cast %261 : vector<1xf32> to vector<1x1xf32>
    %263 = tpu.reciprocal %262 {approx = true} : vector<1x1xf32> -> vector<1x1xf32>
    %264 = vector.broadcast %260 : vector<8x1xf32> to vector<8x32xf32>
    %265 = arith.mulf %264, %223 : vector<8x32xf32>
    %cst_90 = arith.constant dense<0.000000e+00> : vector<1x32xf32>
    %266 = tpu.matmul %227, %265, %cst_90 {dimension_numbers = #tpu.dot_dimension_numbers<[1], [0], [0], [1], [0, 0, 1, 1], [], []>} : vector<1x8xf32>, vector<8x32xf32>, vector<1x32xf32> -> vector<1x32xf32>
    %267 = vector.broadcast %263 : vector<1x1xf32> to vector<1x32xf32>
    %268 = arith.mulf %266, %267 : vector<1x32xf32>
    %269 = vector.broadcast %268 : vector<1x32xf32> to vector<8x32xf32>
    %270 = arith.addf %220, %269 : vector<8x32xf32>
    %271 = math.tanh %270 : vector<8x32xf32>
    %cst_91 = arith.constant dense<0.000000e+00> : vector<8x1xf32>
    %272 = tpu.matmul %271, %13, %cst_91 {dimension_numbers = #tpu.dot_dimension_numbers<[1], [0], [0], [1], [0, 0, 1, 1], [], []>} : vector<8x32xf32>, vector<32x1xf32>, vector<8x1xf32> -> vector<8x1xf32>
    %273 = math.exp %272 : vector<8x1xf32>
    %cst_92 = arith.constant dense<0.000000e+00> : vector<1xf32>
    %274 = vector.multi_reduction <add>, %273, %cst_92 [0] : vector<8x1xf32> to vector<1xf32>
    %275 = vector.shape_cast %274 : vector<1xf32> to vector<1x1xf32>
    %276 = tpu.reciprocal %275 {approx = true} : vector<1x1xf32> -> vector<1x1xf32>
    %277 = vector.broadcast %273 : vector<8x1xf32> to vector<8x32xf32>
    %278 = arith.mulf %277, %223 : vector<8x32xf32>
    %cst_93 = arith.constant dense<0.000000e+00> : vector<1x32xf32>
    %279 = tpu.matmul %227, %278, %cst_93 {dimension_numbers = #tpu.dot_dimension_numbers<[1], [0], [0], [1], [0, 0, 1, 1], [], []>} : vector<1x8xf32>, vector<8x32xf32>, vector<1x32xf32> -> vector<1x32xf32>
    %280 = vector.broadcast %276 : vector<1x1xf32> to vector<1x32xf32>
    %281 = arith.mulf %279, %280 : vector<1x32xf32>
    %282 = vector.broadcast %281 : vector<1x32xf32> to vector<8x32xf32>
    %283 = arith.addf %220, %282 : vector<8x32xf32>
    %284 = math.tanh %283 : vector<8x32xf32>
    %cst_94 = arith.constant dense<0.000000e+00> : vector<8x1xf32>
    %285 = tpu.matmul %284, %13, %cst_94 {dimension_numbers = #tpu.dot_dimension_numbers<[1], [0], [0], [1], [0, 0, 1, 1], [], []>} : vector<8x32xf32>, vector<32x1xf32>, vector<8x1xf32> -> vector<8x1xf32>
    %286 = math.exp %285 : vector<8x1xf32>
    %cst_95 = arith.constant dense<0.000000e+00> : vector<1xf32>
    %287 = vector.multi_reduction <add>, %286, %cst_95 [0] : vector<8x1xf32> to vector<1xf32>
    %288 = vector.shape_cast %287 : vector<1xf32> to vector<1x1xf32>
    %289 = tpu.reciprocal %288 {approx = true} : vector<1x1xf32> -> vector<1x1xf32>
    %290 = vector.broadcast %286 : vector<8x1xf32> to vector<8x32xf32>
    %291 = arith.mulf %290, %223 : vector<8x32xf32>
    %cst_96 = arith.constant dense<0.000000e+00> : vector<1x32xf32>
    %292 = tpu.matmul %227, %291, %cst_96 {dimension_numbers = #tpu.dot_dimension_numbers<[1], [0], [0], [1], [0, 0, 1, 1], [], []>} : vector<1x8xf32>, vector<8x32xf32>, vector<1x32xf32> -> vector<1x32xf32>
    %293 = vector.broadcast %289 : vector<1x1xf32> to vector<1x32xf32>
    %294 = arith.mulf %292, %293 : vector<1x32xf32>
    %295 = vector.broadcast %294 : vector<1x32xf32> to vector<8x32xf32>
    %296 = arith.addf %220, %295 : vector<8x32xf32>
    %297 = math.tanh %296 : vector<8x32xf32>
    %cst_97 = arith.constant dense<0.000000e+00> : vector<8x1xf32>
    %298 = tpu.matmul %297, %13, %cst_97 {dimension_numbers = #tpu.dot_dimension_numbers<[1], [0], [0], [1], [0, 0, 1, 1], [], []>} : vector<8x32xf32>, vector<32x1xf32>, vector<8x1xf32> -> vector<8x1xf32>
    %299 = math.exp %298 : vector<8x1xf32>
    %cst_98 = arith.constant dense<0.000000e+00> : vector<1xf32>
    %300 = vector.multi_reduction <add>, %299, %cst_98 [0] : vector<8x1xf32> to vector<1xf32>
    %301 = vector.shape_cast %300 : vector<1xf32> to vector<1x1xf32>
    %302 = tpu.reciprocal %301 {approx = true} : vector<1x1xf32> -> vector<1x1xf32>
    %303 = vector.broadcast %299 : vector<8x1xf32> to vector<8x32xf32>
    %304 = arith.mulf %303, %223 : vector<8x32xf32>
    %cst_99 = arith.constant dense<0.000000e+00> : vector<1x32xf32>
    %305 = tpu.matmul %227, %304, %cst_99 {dimension_numbers = #tpu.dot_dimension_numbers<[1], [0], [0], [1], [0, 0, 1, 1], [], []>} : vector<1x8xf32>, vector<8x32xf32>, vector<1x32xf32> -> vector<1x32xf32>
    %306 = vector.broadcast %302 : vector<1x1xf32> to vector<1x32xf32>
    %307 = arith.mulf %305, %306 : vector<1x32xf32>
    %308 = vector.broadcast %307 : vector<1x32xf32> to vector<8x32xf32>
    %309 = arith.addf %220, %308 : vector<8x32xf32>
    %310 = math.tanh %309 : vector<8x32xf32>
    %cst_100 = arith.constant dense<0.000000e+00> : vector<8x1xf32>
    %311 = tpu.matmul %310, %13, %cst_100 {dimension_numbers = #tpu.dot_dimension_numbers<[1], [0], [0], [1], [0, 0, 1, 1], [], []>} : vector<8x32xf32>, vector<32x1xf32>, vector<8x1xf32> -> vector<8x1xf32>
    %312 = math.exp %311 : vector<8x1xf32>
    %cst_101 = arith.constant dense<0.000000e+00> : vector<1xf32>
    %313 = vector.multi_reduction <add>, %312, %cst_101 [0] : vector<8x1xf32> to vector<1xf32>
    %314 = vector.shape_cast %313 : vector<1xf32> to vector<1x1xf32>
    %315 = tpu.reciprocal %314 {approx = true} : vector<1x1xf32> -> vector<1x1xf32>
    %316 = vector.broadcast %312 : vector<8x1xf32> to vector<8x32xf32>
    %317 = arith.mulf %316, %223 : vector<8x32xf32>
    %cst_102 = arith.constant dense<0.000000e+00> : vector<1x32xf32>
    %318 = tpu.matmul %227, %317, %cst_102 {dimension_numbers = #tpu.dot_dimension_numbers<[1], [0], [0], [1], [0, 0, 1, 1], [], []>} : vector<1x8xf32>, vector<8x32xf32>, vector<1x32xf32> -> vector<1x32xf32>
    %319 = vector.broadcast %315 : vector<1x1xf32> to vector<1x32xf32>
    %320 = arith.mulf %318, %319 : vector<1x32xf32>
    %321 = vector.broadcast %320 : vector<1x32xf32> to vector<8x32xf32>
    %322 = arith.addf %220, %321 : vector<8x32xf32>
    %323 = math.tanh %322 : vector<8x32xf32>
    %cst_103 = arith.constant dense<0.000000e+00> : vector<8x1xf32>
    %324 = tpu.matmul %323, %13, %cst_103 {dimension_numbers = #tpu.dot_dimension_numbers<[1], [0], [0], [1], [0, 0, 1, 1], [], []>} : vector<8x32xf32>, vector<32x1xf32>, vector<8x1xf32> -> vector<8x1xf32>
    %325 = math.exp %324 : vector<8x1xf32>
    %cst_104 = arith.constant dense<0.000000e+00> : vector<1xf32>
    %326 = vector.multi_reduction <add>, %325, %cst_104 [0] : vector<8x1xf32> to vector<1xf32>
    %327 = vector.shape_cast %326 : vector<1xf32> to vector<1x1xf32>
    %328 = tpu.reciprocal %327 {approx = true} : vector<1x1xf32> -> vector<1x1xf32>
    %329 = vector.broadcast %325 : vector<8x1xf32> to vector<8x32xf32>
    %330 = arith.mulf %329, %223 : vector<8x32xf32>
    %cst_105 = arith.constant dense<0.000000e+00> : vector<1x32xf32>
    %331 = tpu.matmul %227, %330, %cst_105 {dimension_numbers = #tpu.dot_dimension_numbers<[1], [0], [0], [1], [0, 0, 1, 1], [], []>} : vector<1x8xf32>, vector<8x32xf32>, vector<1x32xf32> -> vector<1x32xf32>
    %332 = vector.broadcast %328 : vector<1x1xf32> to vector<1x32xf32>
    %333 = arith.mulf %331, %332 : vector<1x32xf32>
    %334 = vector.broadcast %333 : vector<1x32xf32> to vector<8x32xf32>
    %335 = arith.addf %220, %334 : vector<8x32xf32>
    %336 = math.tanh %335 : vector<8x32xf32>
    %cst_106 = arith.constant dense<0.000000e+00> : vector<8x1xf32>
    %337 = tpu.matmul %336, %13, %cst_106 {dimension_numbers = #tpu.dot_dimension_numbers<[1], [0], [0], [1], [0, 0, 1, 1], [], []>} : vector<8x32xf32>, vector<32x1xf32>, vector<8x1xf32> -> vector<8x1xf32>
    %338 = math.exp %337 : vector<8x1xf32>
    %cst_107 = arith.constant dense<0.000000e+00> : vector<1xf32>
    %339 = vector.multi_reduction <add>, %338, %cst_107 [0] : vector<8x1xf32> to vector<1xf32>
    %340 = vector.shape_cast %339 : vector<1xf32> to vector<1x1xf32>
    %341 = tpu.reciprocal %340 {approx = true} : vector<1x1xf32> -> vector<1x1xf32>
    %342 = vector.broadcast %338 : vector<8x1xf32> to vector<8x32xf32>
    %343 = arith.mulf %342, %223 : vector<8x32xf32>
    %cst_108 = arith.constant dense<0.000000e+00> : vector<1x32xf32>
    %344 = tpu.matmul %227, %343, %cst_108 {dimension_numbers = #tpu.dot_dimension_numbers<[1], [0], [0], [1], [0, 0, 1, 1], [], []>} : vector<1x8xf32>, vector<8x32xf32>, vector<1x32xf32> -> vector<1x32xf32>
    %345 = vector.broadcast %341 : vector<1x1xf32> to vector<1x32xf32>
    %346 = arith.mulf %344, %345 : vector<1x32xf32>
    %347 = vector.broadcast %346 : vector<1x32xf32> to vector<8x32xf32>
    %348 = arith.addf %220, %347 : vector<8x32xf32>
    %349 = math.tanh %348 : vector<8x32xf32>
    %cst_109 = arith.constant dense<0.000000e+00> : vector<8x1xf32>
    %350 = tpu.matmul %349, %13, %cst_109 {dimension_numbers = #tpu.dot_dimension_numbers<[1], [0], [0], [1], [0, 0, 1, 1], [], []>} : vector<8x32xf32>, vector<32x1xf32>, vector<8x1xf32> -> vector<8x1xf32>
    %351 = math.exp %350 : vector<8x1xf32>
    %cst_110 = arith.constant dense<0.000000e+00> : vector<1xf32>
    %352 = vector.multi_reduction <add>, %351, %cst_110 [0] : vector<8x1xf32> to vector<1xf32>
    %353 = vector.shape_cast %352 : vector<1xf32> to vector<1x1xf32>
    %354 = tpu.reciprocal %353 {approx = true} : vector<1x1xf32> -> vector<1x1xf32>
    %355 = vector.broadcast %351 : vector<8x1xf32> to vector<8x32xf32>
    %356 = arith.mulf %355, %226 : vector<8x32xf32>
    %cst_111 = arith.constant dense<0.000000e+00> : vector<1x32xf32>
    %357 = tpu.matmul %227, %356, %cst_111 {dimension_numbers = #tpu.dot_dimension_numbers<[1], [0], [0], [1], [0, 0, 1, 1], [], []>} : vector<1x8xf32>, vector<8x32xf32>, vector<1x32xf32> -> vector<1x32xf32>
    %358 = vector.broadcast %354 : vector<1x1xf32> to vector<1x32xf32>
    %359 = arith.mulf %357, %358 : vector<1x32xf32>
    %cst_112 = arith.constant 0.000000e+00 : f32
    %360 = vector.broadcast %cst_112 : f32 to vector<1x32xf32>
    %361 = arith.maximumf %359, %360 : vector<1x32xf32>
    %cst_113 = arith.constant dense<0.000000e+00> : vector<1x1xf32>
    %362 = tpu.matmul %361, %14, %cst_113 {dimension_numbers = #tpu.dot_dimension_numbers<[1], [0], [0], [1], [0, 0, 1, 1], [], []>} : vector<1x32xf32>, vector<32x1xf32>, vector<1x1xf32> -> vector<1x1xf32>
    %363 = arith.addf %362, %6 : vector<1x1xf32>
    %c0_114 = arith.constant 0 : index
    %c0_115 = arith.constant 0 : index
    %364 = vector.load %arg2[%c0_114, %c0_115] : memref<1x1xf32, #tpu.memory_space<vmem>>, vector<1x1xf32>
    tpu.vector_store %arg2[%c0_114, %c0_115], %363 {strides = array<i32>} : memref<1x1xf32, #tpu.memory_space<vmem>>, vector<1x1xf32>,
    return
  }
}

</mosaic_0001>

<llo_original>
// kernel: critic_forward.1
$region0: #{critic_forward.1}
  #allocation0 [shape = 'u32[]', space=smem, size = 0x4, offset = 0x4, fixed_abs, tag = 'smem constant byte address 0x4 - core index']
  #allocation1 [shape = 'u32[144,128]{1,0:T(1,128)}', space=vmem, size = 0x12000, scoped, tag = 'internal scratch']
  #allocation2 [shape = 'f32[8,32]{1,0:T(8,128)}', space=vmem, size = 0x1000, scoped, tag = 'scratch operand']
  %s0 = inlined_call_operand.vmem [shape: f32[8,4], index: 0, kind: input, shape index: {}]
  %s1 = inlined_call_operand.hbm [shape: f32[104,128], index: 1, kind: input, shape index: {}]
  %s2 = inlined_call_operand.hbm [shape: f32[1,1], index: 2, kind: output, shape index: {}]
  %s3 = sld [smem:[#allocation0]]
  $region22: #{critic_forward.1} parent=0
    _
  %s5 = ssub.s32 1, %s3
  %s6 = scalar_select 0, %s5, %s3
  $region1: #{critic_forward.1} parent=0
    #allocation3 [shape = 'u8[53248]{0}', space=vmem, size = 0xd000, scoped, tag = 'input window, operand 1, single buffered']
    #allocation4 [shape = 's32[1]{0}', space=sflag, size = 0x4, scoped, tag = 'scoped memory for critic_forward.1']
    #allocation5 [shape = 's32[1]{0}', space=sflag, size = 0x4, scoped, tag = 'scoped memory for critic_forward.1']
    #allocation6 [shape = 'u8[512]{0}', space=vmem, size = 0x400, scoped, tag = 'output window, operand 0, single buffered']
    %7 = vsyncpa [#allocation4], 0
    %8 = vsyncpa [#allocation5], 0
    // Predicated region
    $region2: #{critic_forward.1} parent=1 // pred_check
      _
    $region3: #{critic_forward.1} parent=1 // pred_check_branch
      %10 = sbr.rel (0) target = $region5
    $region4: #{critic_forward.1} parent=1 // pred_region
      _
    $region5: #{critic_forward.1} parent=1 // pred_fallthru
      _
    // Predicated region
    $region6: #{critic_forward.1} parent=1 // pred_check
      _
    $region7: #{critic_forward.1} parent=1 // pred_check_branch
      %12 = sbr.rel (0) target = $region9
    $region8: #{critic_forward.1} parent=1 // pred_region
      %s14 = ssub.s32 1664, 1664
      %15 = vsyncadd [#allocation4], %s14
      %s16 = sshll.u32 [#allocation3], 4
      %s17 = int_to_ptr.vmem [resolvable:$true] %s16
      %22 = dma.hbm_to_vmem [thread:$0]  %s1, 1664, %s17, [#allocation4], 128, 128, 8
    $region9: #{critic_forward.1} parent=1 // pred_fallthru
      _
    // Predicated region
    $region10: #{critic_forward.1} parent=1 // pred_check
      _
    $region11: #{critic_forward.1} parent=1 // pred_check_branch
      %24 = sbr.rel (0) target = $region13
    $region12: #{critic_forward.1} parent=1 // pred_region
      %25 = dma.done [#allocation4], 1664
    $region13: #{critic_forward.1} parent=1 // pred_fallthru
      _
    %v26 = vld [vmem:[#allocation3] sm:$0xf]
    %v27 = vld [vmem:[#allocation3 + $0x4] sm:$0x1]
    %v28 = vld [vmem:[#allocation3 + $0x5] sm:$0x1]
    %v29 = vld [vmem:[#allocation3 + $0x6] sm:$0x1]
    %v30 = vld [vmem:[#allocation3 + $0x8] sm:$0xff]
    %v31 = vld [vmem:[#allocation3 + $0x10] sm:$0xff]
    %v32 = vld [vmem:[#allocation3 + $0x18] sm:$0xff]
    %v33 = vld [vmem:[#allocation3 + $0x20] sm:$0xff]
    %v34 = vld [vmem:[#allocation3 + $0x28] sm:$0xff]
    %v35 = vld [vmem:[#allocation3 + $0x30] sm:$0xff]
    %v36 = vld [vmem:[#allocation3 + $0x38] sm:$0xff]
    %v37 = vld [vmem:[#allocation3 + $0x40] sm:$0xff]
    %v38 = vld [vmem:[#allocation3 + $0x48] sm:$0xff]
    %v39 = vld [vmem:[#allocation3 + $0x50] sm:$0xff]
    %v40 = vld [vmem:[#allocation3 + $0x58] sm:$0xff]
    %v41 = vld [vmem:[#allocation3 + $0x60] sm:$0xff]
    %v42 = vld [vmem:[%s0] sm:$0xff]
    %v43 = vlaneseq
    %v44 = vshrl.u32 %v43, 7
    %v45 = vsub.s32 0, %v44
    %v46 = vrot.slane %v27, %v45
    %vm47 = vcmask 31744
    %v49 = vsel %vm47, %v42, 0
    %vm51 = vcmask 1043456
    %v53 = vsel %vm51, %v26, 0
    %55 = vmatprep.subr.mxu0 0.0
    %56 = vmatpush1.msra.mxu0 %v53
    %57 = vmatprep.subr.mxu0 0.0
    %58 = vmatpush1.msra.mxu0 0.0
    %59 = vmatprep.subr.mxu0 0.0
    %60 = vmatpush1.msra.mxu0 0.0
    %61 = vmatprep.subr.mxu0 0.0
    %62 = vmatpush1.msra.mxu0 0.0
    %63 = vmatprep.subr.mxu0 0.0
    %64 = vmatpush1.msra.mxu0 0.0
    %65 = vmatprep.subr.mxu0 0.0
    %66 = vmatpush1.msra.mxu0 0.0
    %67 = vmatprep.subr.mxu0 0.0
    %68 = vmatpush1.msra.mxu0 0.0
    %69 = vmatprep.subr.mxu0 0.0
    %70 = vmatpush1.msra.mxu0 0.0
    %71 = vmatprep.subr.mxu0 0.0
    %72 = vmatpush1.msra.mxu0 0.0
    %73 = vmatprep.subr.mxu0 0.0
    %74 = vmatpush1.msra.mxu0 0.0
    %75 = vmatprep.subr.mxu0 0.0
    %76 = vmatpush1.msra.mxu0 0.0
    %77 = vmatprep.subr.mxu0 0.0
    %78 = vmatpush1.msra.mxu0 0.0
    %79 = vmatprep.subr.mxu0 0.0
    %80 = vmatpush1.msra.mxu0 0.0
    %81 = vmatprep.subr.mxu0 0.0
    %82 = vmatpush1.msra.mxu0 0.0
    %83 = vmatprep.subr.mxu0 0.0
    %84 = vmatpush1.msra.mxu0 0.0
    %85 = vmatprep.subr.mxu0 0.0
    %86 = vmatpush1.msra.mxu0 0.0
    %87 = vmatprep.subr.mxu0 0.0
    %88 = vmatpush1.msra.mxu0 0.0
    %89 = vmatprep.subr.mxu0 0.0
    %90 = vmatpush1.msra.mxu0 0.0
    %91 = vmatprep.subr.mxu0 0.0
    %92 = vmatpush1.msra.mxu0 0.0
    %93 = vmatprep.subr.mxu0 0.0
    %94 = vmatpush1.msra.mxu0 0.0
    %95 = vmatprep.subr.mxu0 0.0
    %96 = vmatpush1.msra.mxu0 0.0
    %97 = vmatprep.subr.mxu0 0.0
    %98 = vmatpush1.msra.mxu0 0.0
    %99 = vmatprep.subr.mxu0 0.0
    %100 = vmatpush1.msra.mxu0 0.0
    %101 = vmatprep.subr.mxu0 0.0
    %102 = vmatpush1.msra.mxu0 0.0
    %103 = vmatprep.subr.mxu0 0.0
    %104 = vmatpush1.msra.mxu0 0.0
    %105 = vmatprep.subr.mxu0 0.0
    %106 = vmatpush1.msra.mxu0 0.0
    %107 = vmatprep.subr.mxu0 0.0
    %108 = vmatpush1.msra.mxu0 0.0
    %109 = vmatprep.subr.mxu0 0.0
    %110 = vmatpush1.msra.mxu0 0.0
    %111 = vmatprep.subr.mxu0 0.0
    %112 = vmatpush1.msra.mxu0 0.0
    %113 = vmatprep.subr.mxu0 0.0
    %114 = vmatpush1.msra.mxu0 0.0
    %115 = vmatprep.subr.mxu0 0.0
    %116 = vmatpush1.msra.mxu0 0.0
    %117 = vmatprep.subr.mxu0 0.0
    %118 = vmatpush1.msra.mxu0 0.0
    %119 = vmatprep.mubr.f32.mxu0 0.0
    %120 = vmatmul.mubr.f32.gmra.mrb[0].mxu0 %v49
    %v121 = vpop.f32.mrb[0].mxu0
    %v122 = vadd.f32 %v46, %v121
    %v123 = vpop.f32.mrb[0].mxu0
    %124 = vdwg.mxu0
    %v125 = vlaneseq
    %v126 = vshrl.u32 %v125, 7
    %v127 = vsub.s32 0, %v126
    %v128 = vrot.slane %v28, %v127
    %vm129 = vcmask 130048
    %v131 = vsel %vm129, %v122, 0
    %133 = vmatprep.subr.mxu0 0.0
    %134 = vmatpush1.msra.mxu0 %v30
    %135 = vmatprep.subr.mxu0 0.0
    %136 = vmatpush1.msra.mxu0 %v31
    %137 = vmatprep.subr.mxu0 0.0
    %138 = vmatpush1.msra.mxu0 0.0
    %139 = vmatprep.subr.mxu0 0.0
    %140 = vmatpush1.msra.mxu0 0.0
    %141 = vmatprep.subr.mxu0 0.0
    %142 = vmatpush1.msra.mxu0 0.0
    %143 = vmatprep.subr.mxu0 0.0
    %144 = vmatpush1.msra.mxu0 0.0
    %145 = vmatprep.subr.mxu0 0.0
    %146 = vmatpush1.msra.mxu0 0.0
    %147 = vmatprep.subr.mxu0 0.0
    %148 = vmatpush1.msra.mxu0 0.0
    %149 = vmatprep.subr.mxu0 0.0
    %150 = vmatpush1.msra.mxu0 0.0
    %151 = vmatprep.subr.mxu0 0.0
    %152 = vmatpush1.msra.mxu0 0.0
    %153 = vmatprep.subr.mxu0 0.0
    %154 = vmatpush1.msra.mxu0 0.0
    %155 = vmatprep.subr.mxu0 0.0
    %156 = vmatpush1.msra.mxu0 0.0
    %157 = vmatprep.subr.mxu0 0.0
    %158 = vmatpush1.msra.mxu0 0.0
    %159 = vmatprep.subr.mxu0 0.0
    %160 = vmatpush1.msra.mxu0 0.0
    %161 = vmatprep.subr.mxu0 0.0
    %162 = vmatpush1.msra.mxu0 0.0
    %163 = vmatprep.subr.mxu0 0.0
    %164 = vmatpush1.msra.mxu0 0.0
    %165 = vmatprep.subr.mxu0 0.0
    %166 = vmatpush1.msra.mxu0 0.0
    %167 = vmatprep.subr.mxu0 0.0
    %168 = vmatpush1.msra.mxu0 0.0
    %169 = vmatprep.subr.mxu0 0.0
    %170 = vmatpush1.msra.mxu0 0.0
    %171 = vmatprep.subr.mxu0 0.0
    %172 = vmatpush1.msra.mxu0 0.0
    %173 = vmatprep.subr.mxu0 0.0
    %174 = vmatpush1.msra.mxu0 0.0
    %175 = vmatprep.subr.mxu0 0.0
    %176 = vmatpush1.msra.mxu0 0.0
    %177 = vmatprep.subr.mxu0 0.0
    %178 = vmatpush1.msra.mxu0 0.0
    %179 = vmatprep.subr.mxu0 0.0
    %180 = vmatpush1.msra.mxu0 0.0
    %181 = vmatprep.subr.mxu0 0.0
    %182 = vmatpush1.msra.mxu0 0.0
    %183 = vmatprep.subr.mxu0 0.0
    %184 = vmatpush1.msra.mxu0 0.0
    %185 = vmatprep.subr.mxu0 0.0
    %186 = vmatpush1.msra.mxu0 0.0
    %187 = vmatprep.subr.mxu0 0.0
    %188 = vmatpush1.msra.mxu0 0.0
    %189 = vmatprep.subr.mxu0 0.0
    %190 = vmatpush1.msra.mxu0 0.0
    %191 = vmatprep.subr.mxu0 0.0
    %192 = vmatpush1.msra.mxu0 0.0
    %193 = vmatprep.subr.mxu0 0.0
    %194 = vmatpush1.msra.mxu0 0.0
    %195 = vmatprep.subr.mxu0 0.0
    %196 = vmatpush1.msra.mxu0 0.0
    %197 = vmatprep.mubr.f32.mxu0 0.0
    %198 = vmatmul.mubr.f32.gmra.mrb[0].mxu0 %v131
    %v199 = vpop.f32.mrb[0].mxu0
    %v200 = vadd.f32 %v128, %v199
    %v201 = vpop.f32.mrb[0].mxu0
    %202 = vdwg.mxu0
    %203 = vmatprep.subr.mxu0 0.0
    %204 = vmatpush1.msra.mxu0 %v32
    %205 = vmatprep.subr.mxu0 0.0
    %206 = vmatpush1.msra.mxu0 %v33
    %207 = vmatprep.subr.mxu0 0.0
    %208 = vmatpush1.msra.mxu0 0.0
    %209 = vmatprep.subr.mxu0 0.0
    %210 = vmatpush1.msra.mxu0 0.0
    %211 = vmatprep.subr.mxu0 0.0
    %212 = vmatpush1.msra.mxu0 0.0
    %213 = vmatprep.subr.mxu0 0.0
    %214 = vmatpush1.msra.mxu0 0.0
    %215 = vmatprep.subr.mxu0 0.0
    %216 = vmatpush1.msra.mxu0 0.0
    %217 = vmatprep.subr.mxu0 0.0
    %218 = vmatpush1.msra.mxu0 0.0
    %219 = vmatprep.subr.mxu0 0.0
    %220 = vmatpush1.msra.mxu0 0.0
    %221 = vmatprep.subr.mxu0 0.0
    %222 = vmatpush1.msra.mxu0 0.0
    %223 = vmatprep.subr.mxu0 0.0
    %224 = vmatpush1.msra.mxu0 0.0
    %225 = vmatprep.subr.mxu0 0.0
    %226 = vmatpush1.msra.mxu0 0.0
    %227 = vmatprep.subr.mxu0 0.0
    %228 = vmatpush1.msra.mxu0 0.0
    %229 = vmatprep.subr.mxu0 0.0
    %230 = vmatpush1.msra.mxu0 0.0
    %231 = vmatprep.subr.mxu0 0.0
    %232 = vmatpush1.msra.mxu0 0.0
    %233 = vmatprep.subr.mxu0 0.0
    %234 = vmatpush1.msra.mxu0 0.0
    %235 = vmatprep.subr.mxu0 0.0
    %236 = vmatpush1.msra.mxu0 0.0
    %237 = vmatprep.subr.mxu0 0.0
    %238 = vmatpush1.msra.mxu0 0.0
    %239 = vmatprep.subr.mxu0 0.0
    %240 = vmatpush1.msra.mxu0 0.0
    %241 = vmatprep.subr.mxu0 0.0
    %242 = vmatpush1.msra.mxu0 0.0
    %243 = vmatprep.subr.mxu0 0.0
    %244 = vmatpush1.msra.mxu0 0.0
    %245 = vmatprep.subr.mxu0 0.0
    %246 = vmatpush1.msra.mxu0 0.0
    %247 = vmatprep.subr.mxu0 0.0
    %248 = vmatpush1.msra.mxu0 0.0
    %249 = vmatprep.subr.mxu0 0.0
    %250 = vmatpush1.msra.mxu0 0.0
    %251 = vmatprep.subr.mxu0 0.0
    %252 = vmatpush1.msra.mxu0 0.0
    %253 = vmatprep.subr.mxu0 0.0
    %254 = vmatpush1.msra.mxu0 0.0
    %255 = vmatprep.subr.mxu0 0.0
    %256 = vmatpush1.msra.mxu0 0.0
    %257 = vmatprep.subr.mxu0 0.0
    %258 = vmatpush1.msra.mxu0 0.0
    %259 = vmatprep.subr.mxu0 0.0
    %260 = vmatpush1.msra.mxu0 0.0
    %261 = vmatprep.subr.mxu0 0.0
    %262 = vmatpush1.msra.mxu0 0.0
    %263 = vmatprep.subr.mxu0 0.0
    %264 = vmatpush1.msra.mxu0 0.0
    %265 = vmatprep.subr.mxu0 0.0
    %266 = vmatpush1.msra.mxu0 0.0
    %267 = vmatprep.mubr.f32.mxu0 0.0
    %268 = vmatmul.mubr.f32.gmra.mrb[0].mxu0 %v131
    %v269 = vpop.f32.mrb[0].mxu0
    %v270 = vadd.f32 0.0, %v269
    %v271 = vpop.f32.mrb[0].mxu0
    %272 = vdwg.mxu0
    %v274 = vrot.slane %v270, 7
    %v276 = vadd.f32 %v200, %v274
    %v277 = vrot.slane %v270, 5
    %v279 = vadd.f32 %v200, %v277
    %v280 = vrot.slane %v270, 3
    %v282 = vadd.f32 %v200, %v280
    %v283 = vrot.slane %v270, 1
    %v285 = vadd.f32 %v200, %v283
    %vm286 = vcmask 261120
    %v288 = vsel %vm286, 0.0, 0
    %290 = vmatprep.subr.mxu0 0.0
    %291 = vmatpush1.msra.mxu0 %v34
    %292 = vmatprep.subr.mxu0 0.0
    %293 = vmatpush1.msra.mxu0 %v35
    %294 = vmatprep.subr.mxu0 0.0
    %295 = vmatpush1.msra.mxu0 %v36
    %296 = vmatprep.subr.mxu0 0.0
    %297 = vmatpush1.msra.mxu0 %v37
    %298 = vmatprep.subr.mxu0 0.0
    %299 = vmatpush1.msra.mxu0 0.0
    %300 = vmatprep.subr.mxu0 0.0
    %301 = vmatpush1.msra.mxu0 0.0
    %302 = vmatprep.subr.mxu0 0.0
    %303 = vmatpush1.msra.mxu0 0.0
    %304 = vmatprep.subr.mxu0 0.0
    %305 = vmatpush1.msra.mxu0 0.0
    %306 = vmatprep.subr.mxu0 0.0
    %307 = vmatpush1.msra.mxu0 0.0
    %308 = vmatprep.subr.mxu0 0.0
    %309 = vmatpush1.msra.mxu0 0.0
    %310 = vmatprep.subr.mxu0 0.0
    %311 = vmatpush1.msra.mxu0 0.0
    %312 = vmatprep.subr.mxu0 0.0
    %313 = vmatpush1.msra.mxu0 0.0
    %314 = vmatprep.subr.mxu0 0.0
    %315 = vmatpush1.msra.mxu0 0.0
    %316 = vmatprep.subr.mxu0 0.0
    %317 = vmatpush1.msra.mxu0 0.0
    %318 = vmatprep.subr.mxu0 0.0
    %319 = vmatpush1.msra.mxu0 0.0
    %320 = vmatprep.subr.mxu0 0.0
    %321 = vmatpush1.msra.mxu0 0.0
    %322 = vmatprep.subr.mxu0 0.0
    %323 = vmatpush1.msra.mxu0 0.0
    %324 = vmatprep.subr.mxu0 0.0
    %325 = vmatpush1.msra.mxu0 0.0
    %326 = vmatprep.subr.mxu0 0.0
    %327 = vmatpush1.msra.mxu0 0.0
    %328 = vmatprep.subr.mxu0 0.0
    %329 = vmatpush1.msra.mxu0 0.0
    %330 = vmatprep.subr.mxu0 0.0
    %331 = vmatpush1.msra.mxu0 0.0
    %332 = vmatprep.subr.mxu0 0.0
    %333 = vmatpush1.msra.mxu0 0.0
    %334 = vmatprep.subr.mxu0 0.0
    %335 = vmatpush1.msra.mxu0 0.0
    %336 = vmatprep.subr.mxu0 0.0
    %337 = vmatpush1.msra.mxu0 0.0
    %338 = vmatprep.subr.mxu0 0.0
    %339 = vmatpush1.msra.mxu0 0.0
    %340 = vmatprep.subr.mxu0 0.0
    %341 = vmatpush1.msra.mxu0 0.0
    %342 = vmatprep.subr.mxu0 0.0
    %343 = vmatpush1.msra.mxu0 0.0
    %344 = vmatprep.subr.mxu0 0.0
    %345 = vmatpush1.msra.mxu0 0.0
    %346 = vmatprep.subr.mxu0 0.0
    %347 = vmatpush1.msra.mxu0 0.0
    %348 = vmatprep.subr.mxu0 0.0
    %349 = vmatpush1.msra.mxu0 0.0
    %350 = vmatprep.subr.mxu0 0.0
    %351 = vmatpush1.msra.mxu0 0.0
    %352 = vmatprep.subr.mxu0 0.0
    %353 = vmatpush1.msra.mxu0 0.0
    %354 = vmatprep.mubr.f32.mxu0 0.0
    %355 = vmatmul.mubr.f32.gmra.mrb[0].mxu0 %v288
    %v356 = vpop.f32.mrb[0].mxu0
    %v357 = vadd.f32 0.0, %v356
    %v358 = vpop.f32.mrb[0].mxu0
    %359 = vdwg.mxu0
    %v360 = vadd.f32 %v276, %v357
    %v361 = vtanh.pop %v360
    %v362 = vmul.f32 %v361, 0.5
    %v363 = vadd.f32 %v362, 0.5
    %v364 = vmul.f32 %v363, 0.0
    %366 = vrot.lane.b32.xlu0 %v361, 32
    %v367 = vpop.permute.xlu0 %366
    %v369 = vmul.f32 %v363, %v367
    %371 = vrot.lane.b32.xlu0 %v369, 32
    %v372 = vpop.permute.xlu0 %371
    %v374 = vadd.f32 %v364, %v372
    %v375 = vtanh.pop %v374
    %377 = vrot.lane.b32.xlu0 %v375, 32
    %v378 = vpop.permute.xlu0 %377
    %v380 = vmul.f32 %v363, %v378
    %382 = vrot.lane.b32.xlu0 %v380, 64
    %v383 = vpop.permute.xlu0 %382
    %vm385 = vcmask 122880
    %386 = vst.msk [vmem:[#allocation2] sm:$0x1] %vm385, %v383
    %vm387 = vcmask 254080
    %388 = vst.msk [vmem:[#allocation2 + $0x7] sm:$0x1] %vm387, %v383
    %v389 = vsel %vm286, %v383, 0
    %391 = vmatprep.subr.mxu0 0.0
    %392 = vmatpush1.msra.mxu0 %v34
    %393 = vmatprep.subr.mxu0 0.0
    %394 = vmatpush1.msra.mxu0 %v35
    %395 = vmatprep.subr.mxu0 0.0
    %396 = vmatpush1.msra.mxu0 %v36
    %397 = vmatprep.subr.mxu0 0.0
    %398 = vmatpush1.msra.mxu0 %v37
    %399 = vmatprep.subr.mxu0 0.0
    %400 = vmatpush1.msra.mxu0 0.0
    %401 = vmatprep.subr.mxu0 0.0
    %402 = vmatpush1.msra.mxu0 0.0
    %403 = vmatprep.subr.mxu0 0.0
    %404 = vmatpush1.msra.mxu0 0.0
    %405 = vmatprep.subr.mxu0 0.0
    %406 = vmatpush1.msra.mxu0 0.0
    %407 = vmatprep.subr.mxu0 0.0
    %408 = vmatpush1.msra.mxu0 0.0
    %409 = vmatprep.subr.mxu0 0.0
    %410 = vmatpush1.msra.mxu0 0.0
    %411 = vmatprep.subr.mxu0 0.0
    %412 = vmatpush1.msra.mxu0 0.0
    %413 = vmatprep.subr.mxu0 0.0
    %414 = vmatpush1.msra.mxu0 0.0
    %415 = vmatprep.subr.mxu0 0.0
    %416 = vmatpush1.msra.mxu0 0.0
    %417 = vmatprep.subr.mxu0 0.0
    %418 = vmatpush1.msra.mxu0 0.0
    %419 = vmatprep.subr.mxu0 0.0
    %420 = vmatpush1.msra.mxu0 0.0
    %421 = vmatprep.subr.mxu0 0.0
    %422 = vmatpush1.msra.mxu0 0.0
    %423 = vmatprep.subr.mxu0 0.0
    %424 = vmatpush1.msra.mxu0 0.0
    %425 = vmatprep.subr.mxu0 0.0
    %426 = vmatpush1.msra.mxu0 0.0
    %427 = vmatprep.subr.mxu0 0.0
    %428 = vmatpush1.msra.mxu0 0.0
    %429 = vmatprep.subr.mxu0 0.0
    %430 = vmatpush1.msra.mxu0 0.0
    %431 = vmatprep.subr.mxu0 0.0
    %432 = vmatpush1.msra.mxu0 0.0
    %433 = vmatprep.subr.mxu0 0.0
    %434 = vmatpush1.msra.mxu0 0.0
    %435 = vmatprep.subr.mxu0 0.0
    %436 = vmatpush1.msra.mxu0 0.0
    %437 = vmatprep.subr.mxu0 0.0
    %438 = vmatpush1.msra.mxu0 0.0
    %439 = vmatprep.subr.mxu0 0.0
    %440 = vmatpush1.msra.mxu0 0.0
    %441 = vmatprep.subr.mxu0 0.0
    %442 = vmatpush1.msra.mxu0 0.0
    %443 = vmatprep.subr.mxu0 0.0
    %444 = vmatpush1.msra.mxu0 0.0
    %445 = vmatprep.subr.mxu0 0.0
    %446 = vmatpush1.msra.mxu0 0.0
    %447 = vmatprep.subr.mxu0 0.0
    %448 = vmatpush1.msra.mxu0 0.0
    %449 = vmatprep.subr.mxu0 0.0
    %450 = vmatpush1.msra.mxu0 0.0
    %451 = vmatprep.subr.mxu0 0.0
    %452 = vmatpush1.msra.mxu0 0.0
    %453 = vmatprep.subr.mxu0 0.0
    %454 = vmatpush1.msra.mxu0 0.0
    %455 = vmatprep.mubr.f32.mxu0 0.0
    %456 = vmatmul.mubr.f32.gmra.mrb[0].mxu0 %v389
    %v457 = vpop.f32.mrb[0].mxu0
    %v458 = vadd.f32 0.0, %v457
    %v459 = vpop.f32.mrb[0].mxu0
    %460 = vdwg.mxu0
    %v462 = vrot.slane %v458, 7
    %v464 = vadd.f32 %v279, %v462
    %v465 = vtanh.pop %v464
    %v466 = vmul.f32 %v465, 0.5
    %v467 = vadd.f32 %v466, 0.5
    %v469 = vrot.slane %v374, 7
    %v471 = vmul.f32 %v467, %v469
    %473 = vrot.lane.b32.xlu0 %v465, 32
    %v474 = vpop.permute.xlu0 %473
    %v476 = vmul.f32 %v467, %v474
    %478 = vrot.lane.b32.xlu0 %v476, 32
    %v479 = vpop.permute.xlu0 %478
    %v481 = vadd.f32 %v471, %v479
    %v482 = vtanh.pop %v481
    %484 = vrot.lane.b32.xlu0 %v482, 32
    %v485 = vpop.permute.xlu0 %484
    %v487 = vmul.f32 %v467, %v485
    %489 = vrot.lane.b32.xlu0 %v487, 64
    %v490 = vpop.permute.xlu0 %489
    %vm492 = vcmask 123905
    %493 = vst.msk [vmem:[#allocation2] sm:$0x2] %vm492, %v490
    %vm494 = vcmask 255105
    %495 = vst.msk [vmem:[#allocation2 + $0x5] sm:$0x2] %vm494, %v490
    %v496 = vrot.slane %v487, 1
    %497 = vrot.lane.b32.xlu0 %v496, 64
    %v498 = vpop.permute.xlu0 %497
    %v499 = vsel %vm286, %v498, 0
    %501 = vmatprep.subr.mxu0 0.0
    %502 = vmatpush1.msra.mxu0 %v34
    %503 = vmatprep.subr.mxu0 0.0
    %504 = vmatpush1.msra.mxu0 %v35
    %505 = vmatprep.subr.mxu0 0.0
    %506 = vmatpush1.msra.mxu0 %v36
    %507 = vmatprep.subr.mxu0 0.0
    %508 = vmatpush1.msra.mxu0 %v37
    %509 = vmatprep.subr.mxu0 0.0
    %510 = vmatpush1.msra.mxu0 0.0
    %511 = vmatprep.subr.mxu0 0.0
    %512 = vmatpush1.msra.mxu0 0.0
    %513 = vmatprep.subr.mxu0 0.0
    %514 = vmatpush1.msra.mxu0 0.0
    %515 = vmatprep.subr.mxu0 0.0
    %516 = vmatpush1.msra.mxu0 0.0
    %517 = vmatprep.subr.mxu0 0.0
    %518 = vmatpush1.msra.mxu0 0.0
    %519 = vmatprep.subr.mxu0 0.0
    %520 = vmatpush1.msra.mxu0 0.0
    %521 = vmatprep.subr.mxu0 0.0
    %522 = vmatpush1.msra.mxu0 0.0
    %523 = vmatprep.subr.mxu0 0.0
    %524 = vmatpush1.msra.mxu0 0.0
    %525 = vmatprep.subr.mxu0 0.0
    %526 = vmatpush1.msra.mxu0 0.0
    %527 = vmatprep.subr.mxu0 0.0
    %528 = vmatpush1.msra.mxu0 0.0
    %529 = vmatprep.subr.mxu0 0.0
    %530 = vmatpush1.msra.mxu0 0.0
    %531 = vmatprep.subr.mxu0 0.0
    %532 = vmatpush1.msra.mxu0 0.0
    %533 = vmatprep.subr.mxu0 0.0
    %534 = vmatpush1.msra.mxu0 0.0
    %535 = vmatprep.subr.mxu0 0.0
    %536 = vmatpush1.msra.mxu0 0.0
    %537 = vmatprep.subr.mxu0 0.0
    %538 = vmatpush1.msra.mxu0 0.0
    %539 = vmatprep.subr.mxu0 0.0
    %540 = vmatpush1.msra.mxu0 0.0
    %541 = vmatprep.subr.mxu0 0.0
    %542 = vmatpush1.msra.mxu0 0.0
    %543 = vmatprep.subr.mxu0 0.0
    %544 = vmatpush1.msra.mxu0 0.0
    %545 = vmatprep.subr.mxu0 0.0
    %546 = vmatpush1.msra.mxu0 0.0
    %547 = vmatprep.subr.mxu0 0.0
    %548 = vmatpush1.msra.mxu0 0.0
    %549 = vmatprep.subr.mxu0 0.0
    %550 = vmatpush1.msra.mxu0 0.0
    %551 = vmatprep.subr.mxu0 0.0
    %552 = vmatpush1.msra.mxu0 0.0
    %553 = vmatprep.subr.mxu0 0.0
    %554 = vmatpush1.msra.mxu0 0.0
    %555 = vmatprep.subr.mxu0 0.0
    %556 = vmatpush1.msra.mxu0 0.0
    %557 = vmatprep.subr.mxu0 0.0
    %558 = vmatpush1.msra.mxu0 0.0
    %559 = vmatprep.subr.mxu0 0.0
    %560 = vmatpush1.msra.mxu0 0.0
    %561 = vmatprep.subr.mxu0 0.0
    %562 = vmatpush1.msra.mxu0 0.0
    %563 = vmatprep.subr.mxu0 0.0
    %564 = vmatpush1.msra.mxu0 0.0
    %565 = vmatprep.mubr.f32.mxu0 0.0
    %566 = vmatmul.mubr.f32.gmra.mrb[0].mxu0 %v499
    %v567 = vpop.f32.mrb[0].mxu0
    %v568 = vadd.f32 0.0, %v567
    %v569 = vpop.f32.mrb[0].mxu0
    %570 = vdwg.mxu0
    %v572 = vrot.slane %v568, 6
    %v574 = vadd.f32 %v282, %v572
    %v575 = vtanh.pop %v574
    %v576 = vmul.f32 %v575, 0.5
    %v577 = vadd.f32 %v576, 0.5
    %v579 = vrot.slane %v481, 7
    %v581 = vmul.f32 %v577, %v579
    %583 = vrot.lane.b32.xlu0 %v575, 32
    %v584 = vpop.permute.xlu0 %583
    %v586 = vmul.f32 %v577, %v584
    %588 = vrot.lane.b32.xlu0 %v586, 32
    %v589 = vpop.permute.xlu0 %588
    %v591 = vadd.f32 %v581, %v589
    %v592 = vtanh.pop %v591
    %594 = vrot.lane.b32.xlu0 %v592, 32
    %v595 = vpop.permute.xlu0 %594
    %v597 = vmul.f32 %v577, %v595
    %599 = vrot.lane.b32.xlu0 %v597, 64
    %v600 = vpop.permute.xlu0 %599
    %vm602 = vcmask 124930
    %603 = vst.msk [vmem:[#allocation2] sm:$0x4] %vm602, %v600
    %vm604 = vcmask 256130
    %605 = vst.msk [vmem:[#allocation2 + $0x3] sm:$0x4] %vm604, %v600
    %v606 = vrot.slane %v597, 2
    %607 = vrot.lane.b32.xlu0 %v606, 64
    %v608 = vpop.permute.xlu0 %607
    %v609 = vsel %vm286, %v608, 0
    %611 = vmatprep.subr.mxu0 0.0
    %612 = vmatpush1.msra.mxu0 %v34
    %613 = vmatprep.subr.mxu0 0.0
    %614 = vmatpush1.msra.mxu0 %v35
    %615 = vmatprep.subr.mxu0 0.0
    %616 = vmatpush1.msra.mxu0 %v36
    %617 = vmatprep.subr.mxu0 0.0
    %618 = vmatpush1.msra.mxu0 %v37
    %619 = vmatprep.subr.mxu0 0.0
    %620 = vmatpush1.msra.mxu0 0.0
    %621 = vmatprep.subr.mxu0 0.0
    %622 = vmatpush1.msra.mxu0 0.0
    %623 = vmatprep.subr.mxu0 0.0
    %624 = vmatpush1.msra.mxu0 0.0
    %625 = vmatprep.subr.mxu0 0.0
    %626 = vmatpush1.msra.mxu0 0.0
    %627 = vmatprep.subr.mxu0 0.0
    %628 = vmatpush1.msra.mxu0 0.0
    %629 = vmatprep.subr.mxu0 0.0
    %630 = vmatpush1.msra.mxu0 0.0
    %631 = vmatprep.subr.mxu0 0.0
    %632 = vmatpush1.msra.mxu0 0.0
    %633 = vmatprep.subr.mxu0 0.0
    %634 = vmatpush1.msra.mxu0 0.0
    %635 = vmatprep.subr.mxu0 0.0
    %636 = vmatpush1.msra.mxu0 0.0
    %637 = vmatprep.subr.mxu0 0.0
    %638 = vmatpush1.msra.mxu0 0.0
    %639 = vmatprep.subr.mxu0 0.0
    %640 = vmatpush1.msra.mxu0 0.0
    %641 = vmatprep.subr.mxu0 0.0
    %642 = vmatpush1.msra.mxu0 0.0
    %643 = vmatprep.subr.mxu0 0.0
    %644 = vmatpush1.msra.mxu0 0.0
    %645 = vmatprep.subr.mxu0 0.0
    %646 = vmatpush1.msra.mxu0 0.0
    %647 = vmatprep.subr.mxu0 0.0
    %648 = vmatpush1.msra.mxu0 0.0
    %649 = vmatprep.subr.mxu0 0.0
    %650 = vmatpush1.msra.mxu0 0.0
    %651 = vmatprep.subr.mxu0 0.0
    %652 = vmatpush1.msra.mxu0 0.0
    %653 = vmatprep.subr.mxu0 0.0
    %654 = vmatpush1.msra.mxu0 0.0
    %655 = vmatprep.subr.mxu0 0.0
    %656 = vmatpush1.msra.mxu0 0.0
    %657 = vmatprep.subr.mxu0 0.0
    %658 = vmatpush1.msra.mxu0 0.0
    %659 = vmatprep.subr.mxu0 0.0
    %660 = vmatpush1.msra.mxu0 0.0
    %661 = vmatprep.subr.mxu0 0.0
    %662 = vmatpush1.msra.mxu0 0.0
    %663 = vmatprep.subr.mxu0 0.0
    %664 = vmatpush1.msra.mxu0 0.0
    %665 = vmatprep.subr.mxu0 0.0
    %666 = vmatpush1.msra.mxu0 0.0
    %667 = vmatprep.subr.mxu0 0.0
    %668 = vmatpush1.msra.mxu0 0.0
    %669 = vmatprep.subr.mxu0 0.0
    %670 = vmatpush1.msra.mxu0 0.0
    %671 = vmatprep.subr.mxu0 0.0
    %672 = vmatpush1.msra.mxu0 0.0
    %673 = vmatprep.subr.mxu0 0.0
    %674 = vmatpush1.msra.mxu0 0.0
    %675 = vmatprep.mubr.f32.mxu0 0.0
    %676 = vmatmul.mubr.f32.gmra.mrb[0].mxu0 %v609
    %v677 = vpop.f32.mrb[0].mxu0
    %v678 = vadd.f32 0.0, %v677
    %v679 = vpop.f32.mrb[0].mxu0
    %680 = vdwg.mxu0
    %v682 = vrot.slane %v678, 5
    %v684 = vadd.f32 %v285, %v682
    %v685 = vtanh.pop %v684
    %v686 = vmul.f32 %v685, 0.5
    %v687 = vadd.f32 %v686, 0.5
    %v689 = vrot.slane %v591, 7
    %v691 = vmul.f32 %v687, %v689
    %693 = vrot.lane.b32.xlu0 %v685, 32
    %v694 = vpop.permute.xlu0 %693
    %v696 = vmul.f32 %v687, %v694
    %698 = vrot.lane.b32.xlu0 %v696, 32
    %v699 = vpop.permute.xlu0 %698
    %v701 = vadd.f32 %v691, %v699
    %v702 = vtanh.pop %v701
    %704 = vrot.lane.b32.xlu0 %v702, 32
    %v705 = vpop.permute.xlu0 %704
    %v707 = vmul.f32 %v687, %v705
    %709 = vrot.lane.b32.xlu0 %v707, 64
    %v710 = vpop.permute.xlu0 %709
    %vm712 = vcmask 125955
    %713 = vst.msk [vmem:[#allocation2] sm:$0x8] %vm712, %v710
    %vm714 = vcmask 257155
    %715 = vst.msk [vmem:[#allocation2 + $0x1] sm:$0x8] %vm714, %v710
    %v716 = vrot.slane %v707, 3
    %717 = vrot.lane.b32.xlu0 %v716, 64
    %v718 = vpop.permute.xlu0 %717
    %v719 = vsel %vm286, %v718, 0
    %721 = vmatprep.subr.mxu0 0.0
    %722 = vmatpush1.msra.mxu0 %v34
    %723 = vmatprep.subr.mxu0 0.0
    %724 = vmatpush1.msra.mxu0 %v35
    %725 = vmatprep.subr.mxu0 0.0
    %726 = vmatpush1.msra.mxu0 %v36
    %727 = vmatprep.subr.mxu0 0.0
    %728 = vmatpush1.msra.mxu0 %v37
    %729 = vmatprep.subr.mxu0 0.0
    %730 = vmatpush1.msra.mxu0 0.0
    %731 = vmatprep.subr.mxu0 0.0
    %732 = vmatpush1.msra.mxu0 0.0
    %733 = vmatprep.subr.mxu0 0.0
    %734 = vmatpush1.msra.mxu0 0.0
    %735 = vmatprep.subr.mxu0 0.0
    %736 = vmatpush1.msra.mxu0 0.0
    %737 = vmatprep.subr.mxu0 0.0
    %738 = vmatpush1.msra.mxu0 0.0
    %739 = vmatprep.subr.mxu0 0.0
    %740 = vmatpush1.msra.mxu0 0.0
    %741 = vmatprep.subr.mxu0 0.0
    %742 = vmatpush1.msra.mxu0 0.0
    %743 = vmatprep.subr.mxu0 0.0
    %744 = vmatpush1.msra.mxu0 0.0
    %745 = vmatprep.subr.mxu0 0.0
    %746 = vmatpush1.msra.mxu0 0.0
    %747 = vmatprep.subr.mxu0 0.0
    %748 = vmatpush1.msra.mxu0 0.0
    %749 = vmatprep.subr.mxu0 0.0
    %750 = vmatpush1.msra.mxu0 0.0
    %751 = vmatprep.subr.mxu0 0.0
    %752 = vmatpush1.msra.mxu0 0.0
    %753 = vmatprep.subr.mxu0 0.0
    %754 = vmatpush1.msra.mxu0 0.0
    %755 = vmatprep.subr.mxu0 0.0
    %756 = vmatpush1.msra.mxu0 0.0
    %757 = vmatprep.subr.mxu0 0.0
    %758 = vmatpush1.msra.mxu0 0.0
    %759 = vmatprep.subr.mxu0 0.0
    %760 = vmatpush1.msra.mxu0 0.0
    %761 = vmatprep.subr.mxu0 0.0
    %762 = vmatpush1.msra.mxu0 0.0
    %763 = vmatprep.subr.mxu0 0.0
    %764 = vmatpush1.msra.mxu0 0.0
    %765 = vmatprep.subr.mxu0 0.0
    %766 = vmatpush1.msra.mxu0 0.0
    %767 = vmatprep.subr.mxu0 0.0
    %768 = vmatpush1.msra.mxu0 0.0
    %769 = vmatprep.subr.mxu0 0.0
    %770 = vmatpush1.msra.mxu0 0.0
    %771 = vmatprep.subr.mxu0 0.0
    %772 = vmatpush1.msra.mxu0 0.0
    %773 = vmatprep.subr.mxu0 0.0
    %774 = vmatpush1.msra.mxu0 0.0
    %775 = vmatprep.subr.mxu0 0.0
    %776 = vmatpush1.msra.mxu0 0.0
    %777 = vmatprep.subr.mxu0 0.0
    %778 = vmatpush1.msra.mxu0 0.0
    %779 = vmatprep.subr.mxu0 0.0
    %780 = vmatpush1.msra.mxu0 0.0
    %781 = vmatprep.subr.mxu0 0.0
    %782 = vmatpush1.msra.mxu0 0.0
    %783 = vmatprep.subr.mxu0 0.0
    %784 = vmatpush1.msra.mxu0 0.0
    %785 = vmatprep.mubr.f32.mxu0 0.0
    %786 = vmatmul.mubr.f32.gmra.mrb[0].mxu0 %v719
    %v787 = vpop.f32.mrb[0].mxu0
    %v788 = vadd.f32 0.0, %v787
    %v789 = vpop.f32.mrb[0].mxu0
    %790 = vdwg.mxu0
    %v792 = vrot.slane %v788, 4
    %v794 = vadd.f32 %v276, %v792
    %v795 = vtanh.pop %v794
    %v796 = vmul.f32 %v795, 0.5
    %v797 = vadd.f32 %v796, 0.5
    %v799 = vrot.slane %v701, 7
    %v801 = vmul.f32 %v797, %v799
    %803 = vrot.lane.b32.xlu0 %v795, 32
    %v804 = vpop.permute.xlu0 %803
    %v806 = vmul.f32 %v797, %v804
    %808 = vrot.lane.b32.xlu0 %v806, 32
    %v809 = vpop.permute.xlu0 %808
    %v811 = vadd.f32 %v801, %v809
    %v812 = vtanh.pop %v811
    %814 = vrot.lane.b32.xlu0 %v812, 32
    %v815 = vpop.permute.xlu0 %814
    %v817 = vmul.f32 %v797, %v815
    %819 = vrot.lane.b32.xlu0 %v817, 64
    %v820 = vpop.permute.xlu0 %819
    %vm822 = vcmask 126980
    %823 = vst.msk [vmem:[#allocation2] sm:$0x10] %vm822, %v820
    %vm824 = vcmask 258180
    %825 = vst.msk [vmem:[#allocation2 - $0x1] sm:$0x10] %vm824, %v820
    %v826 = vrot.slane %v817, 4
    %827 = vrot.lane.b32.xlu0 %v826, 64
    %v828 = vpop.permute.xlu0 %827
    %v829 = vsel %vm286, %v828, 0
    %831 = vmatprep.subr.mxu0 0.0
    %832 = vmatpush1.msra.mxu0 %v34
    %833 = vmatprep.subr.mxu0 0.0
    %834 = vmatpush1.msra.mxu0 %v35
    %835 = vmatprep.subr.mxu0 0.0
    %836 = vmatpush1.msra.mxu0 %v36
    %837 = vmatprep.subr.mxu0 0.0
    %838 = vmatpush1.msra.mxu0 %v37
    %839 = vmatprep.subr.mxu0 0.0
    %840 = vmatpush1.msra.mxu0 0.0
    %841 = vmatprep.subr.mxu0 0.0
    %842 = vmatpush1.msra.mxu0 0.0
    %843 = vmatprep.subr.mxu0 0.0
    %844 = vmatpush1.msra.mxu0 0.0
    %845 = vmatprep.subr.mxu0 0.0
    %846 = vmatpush1.msra.mxu0 0.0
    %847 = vmatprep.subr.mxu0 0.0
    %848 = vmatpush1.msra.mxu0 0.0
    %849 = vmatprep.subr.mxu0 0.0
    %850 = vmatpush1.msra.mxu0 0.0
    %851 = vmatprep.subr.mxu0 0.0
    %852 = vmatpush1.msra.mxu0 0.0
    %853 = vmatprep.subr.mxu0 0.0
    %854 = vmatpush1.msra.mxu0 0.0
    %855 = vmatprep.subr.mxu0 0.0
    %856 = vmatpush1.msra.mxu0 0.0
    %857 = vmatprep.subr.mxu0 0.0
    %858 = vmatpush1.msra.mxu0 0.0
    %859 = vmatprep.subr.mxu0 0.0
    %860 = vmatpush1.msra.mxu0 0.0
    %861 = vmatprep.subr.mxu0 0.0
    %862 = vmatpush1.msra.mxu0 0.0
    %863 = vmatprep.subr.mxu0 0.0
    %864 = vmatpush1.msra.mxu0 0.0
    %865 = vmatprep.subr.mxu0 0.0
    %866 = vmatpush1.msra.mxu0 0.0
    %867 = vmatprep.subr.mxu0 0.0
    %868 = vmatpush1.msra.mxu0 0.0
    %869 = vmatprep.subr.mxu0 0.0
    %870 = vmatpush1.msra.mxu0 0.0
    %871 = vmatprep.subr.mxu0 0.0
    %872 = vmatpush1.msra.mxu0 0.0
    %873 = vmatprep.subr.mxu0 0.0
    %874 = vmatpush1.msra.mxu0 0.0
    %875 = vmatprep.subr.mxu0 0.0
    %876 = vmatpush1.msra.mxu0 0.0
    %877 = vmatprep.subr.mxu0 0.0
    %878 = vmatpush1.msra.mxu0 0.0
    %879 = vmatprep.subr.mxu0 0.0
    %880 = vmatpush1.msra.mxu0 0.0
    %881 = vmatprep.subr.mxu0 0.0
    %882 = vmatpush1.msra.mxu0 0.0
    %883 = vmatprep.subr.mxu0 0.0
    %884 = vmatpush1.msra.mxu0 0.0
    %885 = vmatprep.subr.mxu0 0.0
    %886 = vmatpush1.msra.mxu0 0.0
    %887 = vmatprep.subr.mxu0 0.0
    %888 = vmatpush1.msra.mxu0 0.0
    %889 = vmatprep.subr.mxu0 0.0
    %890 = vmatpush1.msra.mxu0 0.0
    %891 = vmatprep.subr.mxu0 0.0
    %892 = vmatpush1.msra.mxu0 0.0
    %893 = vmatprep.subr.mxu0 0.0
    %894 = vmatpush1.msra.mxu0 0.0
    %895 = vmatprep.mubr.f32.mxu0 0.0
    %896 = vmatmul.mubr.f32.gmra.mrb[0].mxu0 %v829
    %v897 = vpop.f32.mrb[0].mxu0
    %v898 = vadd.f32 0.0, %v897
    %v899 = vpop.f32.mrb[0].mxu0
    %900 = vdwg.mxu0
    %v902 = vrot.slane %v898, 3
    %v904 = vadd.f32 %v279, %v902
    %v905 = vtanh.pop %v904
    %v906 = vmul.f32 %v905, 0.5
    %v907 = vadd.f32 %v906, 0.5
    %v909 = vrot.slane %v811, 7
    %v911 = vmul.f32 %v907, %v909
    %913 = vrot.lane.b32.xlu0 %v905, 32
    %v914 = vpop.permute.xlu0 %913
    %v916 = vmul.f32 %v907, %v914
    %918 = vrot.lane.b32.xlu0 %v916, 32
    %v919 = vpop.permute.xlu0 %918
    %v921 = vadd.f32 %v911, %v919
    %v922 = vtanh.pop %v921
    %924 = vrot.lane.b32.xlu0 %v922, 32
    %v925 = vpop.permute.xlu0 %924
    %v927 = vmul.f32 %v907, %v925
    %929 = vrot.lane.b32.xlu0 %v927, 64
    %v930 = vpop.permute.xlu0 %929
    %vm932 = vcmask 128005
    %933 = vst.msk [vmem:[#allocation2] sm:$0x20] %vm932, %v930
    %vm934 = vcmask 259205
    %935 = vst.msk [vmem:[#allocation2 - $0x3] sm:$0x20] %vm934, %v930
    %v936 = vrot.slane %v927, 5
    %937 = vrot.lane.b32.xlu0 %v936, 64
    %v938 = vpop.permute.xlu0 %937
    %v939 = vsel %vm286, %v938, 0
    %941 = vmatprep.subr.mxu0 0.0
    %942 = vmatpush1.msra.mxu0 %v34
    %943 = vmatprep.subr.mxu0 0.0
    %944 = vmatpush1.msra.mxu0 %v35
    %945 = vmatprep.subr.mxu0 0.0
    %946 = vmatpush1.msra.mxu0 %v36
    %947 = vmatprep.subr.mxu0 0.0
    %948 = vmatpush1.msra.mxu0 %v37
    %949 = vmatprep.subr.mxu0 0.0
    %950 = vmatpush1.msra.mxu0 0.0
    %951 = vmatprep.subr.mxu0 0.0
    %952 = vmatpush1.msra.mxu0 0.0
    %953 = vmatprep.subr.mxu0 0.0
    %954 = vmatpush1.msra.mxu0 0.0
    %955 = vmatprep.subr.mxu0 0.0
    %956 = vmatpush1.msra.mxu0 0.0
    %957 = vmatprep.subr.mxu0 0.0
    %958 = vmatpush1.msra.mxu0 0.0
    %959 = vmatprep.subr.mxu0 0.0
    %960 = vmatpush1.msra.mxu0 0.0
    %961 = vmatprep.subr.mxu0 0.0
    %962 = vmatpush1.msra.mxu0 0.0
    %963 = vmatprep.subr.mxu0 0.0
    %964 = vmatpush1.msra.mxu0 0.0
    %965 = vmatprep.subr.mxu0 0.0
    %966 = vmatpush1.msra.mxu0 0.0
    %967 = vmatprep.subr.mxu0 0.0
    %968 = vmatpush1.msra.mxu0 0.0
    %969 = vmatprep.subr.mxu0 0.0
    %970 = vmatpush1.msra.mxu0 0.0
    %971 = vmatprep.subr.mxu0 0.0
    %972 = vmatpush1.msra.mxu0 0.0
    %973 = vmatprep.subr.mxu0 0.0
    %974 = vmatpush1.msra.mxu0 0.0
    %975 = vmatprep.subr.mxu0 0.0
    %976 = vmatpush1.msra.mxu0 0.0
    %977 = vmatprep.subr.mxu0 0.0
    %978 = vmatpush1.msra.mxu0 0.0
    %979 = vmatprep.subr.mxu0 0.0
    %980 = vmatpush1.msra.mxu0 0.0
    %981 = vmatprep.subr.mxu0 0.0
    %982 = vmatpush1.msra.mxu0 0.0
    %983 = vmatprep.subr.mxu0 0.0
    %984 = vmatpush1.msra.mxu0 0.0
    %985 = vmatprep.subr.mxu0 0.0
    %986 = vmatpush1.msra.mxu0 0.0
    %987 = vmatprep.subr.mxu0 0.0
    %988 = vmatpush1.msra.mxu0 0.0
    %989 = vmatprep.subr.mxu0 0.0
    %990 = vmatpush1.msra.mxu0 0.0
    %991 = vmatprep.subr.mxu0 0.0
    %992 = vmatpush1.msra.mxu0 0.0
    %993 = vmatprep.subr.mxu0 0.0
    %994 = vmatpush1.msra.mxu0 0.0
    %995 = vmatprep.subr.mxu0 0.0
    %996 = vmatpush1.msra.mxu0 0.0
    %997 = vmatprep.subr.mxu0 0.0
    %998 = vmatpush1.msra.mxu0 0.0
    %999 = vmatprep.subr.mxu0 0.0
    %1000 = vmatpush1.msra.mxu0 0.0
    %1001 = vmatprep.subr.mxu0 0.0
    %1002 = vmatpush1.msra.mxu0 0.0
    %1003 = vmatprep.subr.mxu0 0.0
    %1004 = vmatpush1.msra.mxu0 0.0
    %1005 = vmatprep.mubr.f32.mxu0 0.0
    %1006 = vmatmul.mubr.f32.gmra.mrb[0].mxu0 %v939
    %v1007 = vpop.f32.mrb[0].mxu0
    %v1008 = vadd.f32 0.0, %v1007
    %v1009 = vpop.f32.mrb[0].mxu0
    %1010 = vdwg.mxu0
    %v1012 = vrot.slane %v1008, 2
    %v1014 = vadd.f32 %v282, %v1012
    %v1015 = vtanh.pop %v1014
    %v1016 = vmul.f32 %v1015, 0.5
    %v1017 = vadd.f32 %v1016, 0.5
    %v1019 = vrot.slane %v921, 7
    %v1021 = vmul.f32 %v1017, %v1019
    %1023 = vrot.lane.b32.xlu0 %v1015, 32
    %v1024 = vpop.permute.xlu0 %1023
    %v1026 = vmul.f32 %v1017, %v1024
    %1028 = vrot.lane.b32.xlu0 %v1026, 32
    %v1029 = vpop.permute.xlu0 %1028
    %v1031 = vadd.f32 %v1021, %v1029
    %v1032 = vtanh.pop %v1031
    %1034 = vrot.lane.b32.xlu0 %v1032, 32
    %v1035 = vpop.permute.xlu0 %1034
    %v1037 = vmul.f32 %v1017, %v1035
    %1039 = vrot.lane.b32.xlu0 %v1037, 64
    %v1040 = vpop.permute.xlu0 %1039
    %vm1042 = vcmask 129030
    %1043 = vst.msk [vmem:[#allocation2] sm:$0x40] %vm1042, %v1040
    %vm1044 = vcmask 260230
    %1045 = vst.msk [vmem:[#allocation2 - $0x5] sm:$0x40] %vm1044, %v1040
    %v1046 = vrot.slane %v1037, 6
    %1047 = vrot.lane.b32.xlu0 %v1046, 64
    %v1048 = vpop.permute.xlu0 %1047
    %v1049 = vsel %vm286, %v1048, 0
    %1051 = vmatprep.subr.mxu0 0.0
    %1052 = vmatpush1.msra.mxu0 %v34
    %1053 = vmatprep.subr.mxu0 0.0
    %1054 = vmatpush1.msra.mxu0 %v35
    %1055 = vmatprep.subr.mxu0 0.0
    %1056 = vmatpush1.msra.mxu0 %v36
    %1057 = vmatprep.subr.mxu0 0.0
    %1058 = vmatpush1.msra.mxu0 %v37
    %1059 = vmatprep.subr.mxu0 0.0
    %1060 = vmatpush1.msra.mxu0 0.0
    %1061 = vmatprep.subr.mxu0 0.0
    %1062 = vmatpush1.msra.mxu0 0.0
    %1063 = vmatprep.subr.mxu0 0.0
    %1064 = vmatpush1.msra.mxu0 0.0
    %1065 = vmatprep.subr.mxu0 0.0
    %1066 = vmatpush1.msra.mxu0 0.0
    %1067 = vmatprep.subr.mxu0 0.0
    %1068 = vmatpush1.msra.mxu0 0.0
    %1069 = vmatprep.subr.mxu0 0.0
    %1070 = vmatpush1.msra.mxu0 0.0
    %1071 = vmatprep.subr.mxu0 0.0
    %1072 = vmatpush1.msra.mxu0 0.0
    %1073 = vmatprep.subr.mxu0 0.0
    %1074 = vmatpush1.msra.mxu0 0.0
    %1075 = vmatprep.subr.mxu0 0.0
    %1076 = vmatpush1.msra.mxu0 0.0
    %1077 = vmatprep.subr.mxu0 0.0
    %1078 = vmatpush1.msra.mxu0 0.0
    %1079 = vmatprep.subr.mxu0 0.0
    %1080 = vmatpush1.msra.mxu0 0.0
    %1081 = vmatprep.subr.mxu0 0.0
    %1082 = vmatpush1.msra.mxu0 0.0
    %1083 = vmatprep.subr.mxu0 0.0
    %1084 = vmatpush1.msra.mxu0 0.0
    %1085 = vmatprep.subr.mxu0 0.0
    %1086 = vmatpush1.msra.mxu0 0.0
    %1087 = vmatprep.subr.mxu0 0.0
    %1088 = vmatpush1.msra.mxu0 0.0
    %1089 = vmatprep.subr.mxu0 0.0
    %1090 = vmatpush1.msra.mxu0 0.0
    %1091 = vmatprep.subr.mxu0 0.0
    %1092 = vmatpush1.msra.mxu0 0.0
    %1093 = vmatprep.subr.mxu0 0.0
    %1094 = vmatpush1.msra.mxu0 0.0
    %1095 = vmatprep.subr.mxu0 0.0
    %1096 = vmatpush1.msra.mxu0 0.0
    %1097 = vmatprep.subr.mxu0 0.0
    %1098 = vmatpush1.msra.mxu0 0.0
    %1099 = vmatprep.subr.mxu0 0.0
    %1100 = vmatpush1.msra.mxu0 0.0
    %1101 = vmatprep.subr.mxu0 0.0
    %1102 = vmatpush1.msra.mxu0 0.0
    %1103 = vmatprep.subr.mxu0 0.0
    %1104 = vmatpush1.msra.mxu0 0.0
    %1105 = vmatprep.subr.mxu0 0.0
    %1106 = vmatpush1.msra.mxu0 0.0
    %1107 = vmatprep.subr.mxu0 0.0
    %1108 = vmatpush1.msra.mxu0 0.0
    %1109 = vmatprep.subr.mxu0 0.0
    %1110 = vmatpush1.msra.mxu0 0.0
    %1111 = vmatprep.subr.mxu0 0.0
    %1112 = vmatpush1.msra.mxu0 0.0
    %1113 = vmatprep.subr.mxu0 0.0
    %1114 = vmatpush1.msra.mxu0 0.0
    %1115 = vmatprep.mubr.f32.mxu0 0.0
    %1116 = vmatmul.mubr.f32.gmra.mrb[0].mxu0 %v1049
    %v1117 = vpop.f32.mrb[0].mxu0
    %v1118 = vadd.f32 0.0, %v1117
    %v1119 = vpop.f32.mrb[0].mxu0
    %1120 = vdwg.mxu0
    %v1122 = vrot.slane %v1118, 1
    %v1124 = vadd.f32 %v285, %v1122
    %v1125 = vtanh.pop %v1124
    %v1126 = vmul.f32 %v1125, 0.5
    %v1127 = vadd.f32 %v1126, 0.5
    %v1129 = vrot.slane %v1031, 7
    %v1131 = vmul.f32 %v1127, %v1129
    %1133 = vrot.lane.b32.xlu0 %v1125, 32
    %v1134 = vpop.permute.xlu0 %1133
    %v1136 = vmul.f32 %v1127, %v1134
    %1138 = vrot.lane.b32.xlu0 %v1136, 32
    %v1139 = vpop.permute.xlu0 %1138
    %v1141 = vadd.f32 %v1131, %v1139
    %v1142 = vtanh.pop %v1141
    %1144 = vrot.lane.b32.xlu0 %v1142, 32
    %v1145 = vpop.permute.xlu0 %1144
    %v1147 = vmul.f32 %v1127, %v1145
    %1149 = vrot.lane.b32.xlu0 %v1147, 64
    %v1150 = vpop.permute.xlu0 %1149
    %vm1152 = vcmask 130055
    %1153 = vst.msk [vmem:[#allocation2] sm:$0x80] %vm1152, %v1150
    %vm1154 = vcmask 261255
    %1155 = vst.msk [vmem:[#allocation2 - $0x7] sm:$0x80] %vm1154, %v1150
    %v1156 = vld [vmem:[#allocation2] sm:$0xff]
    %v1157 = vlaneseq
    %v1158 = vshrl.u32 %v1157, 7
    %v1159 = vsub.s32 0, %v1158
    %v1160 = vrot.slane %v29, %v1159
    %1165 = vrot.lane.b32.xlu0 %v38, 96
    %v1166 = vpop.permute.xlu0 %1165
    %1167 = vrot.lane.b32.xlu0 %v39, 96
    %v1168 = vpop.permute.xlu0 %1167
    %1169 = vrot.lane.b32.xlu0 %v40, 96
    %v1170 = vpop.permute.xlu0 %1169
    %1171 = vrot.lane.b32.xlu0 %v41, 96
    %v1172 = vpop.permute.xlu0 %1171
    %1178 = vrot.lane.b32.xlu0 %v1160, 96
    %v1179 = vpop.permute.xlu0 %1178
    %v1182 = vsel %vm286, %v1156, 0
    %1184 = vmatprep.subr.mxu0 0.0
    %1185 = vmatpush1.msra.mxu0 %v1166
    %1186 = vmatprep.subr.mxu0 0.0
    %1187 = vmatpush1.msra.mxu0 %v1168
    %1188 = vmatprep.subr.mxu0 0.0
    %1189 = vmatpush1.msra.mxu0 %v1170
    %1190 = vmatprep.subr.mxu0 0.0
    %1191 = vmatpush1.msra.mxu0 %v1172
    %1192 = vmatprep.subr.mxu0 0.0
    %1193 = vmatpush1.msra.mxu0 0.0
    %1194 = vmatprep.subr.mxu0 0.0
    %1195 = vmatpush1.msra.mxu0 0.0
    %1196 = vmatprep.subr.mxu0 0.0
    %1197 = vmatpush1.msra.mxu0 0.0
    %1198 = vmatprep.subr.mxu0 0.0
    %1199 = vmatpush1.msra.mxu0 0.0
    %1200 = vmatprep.subr.mxu0 0.0
    %1201 = vmatpush1.msra.mxu0 0.0
    %1202 = vmatprep.subr.mxu0 0.0
    %1203 = vmatpush1.msra.mxu0 0.0
    %1204 = vmatprep.subr.mxu0 0.0
    %1205 = vmatpush1.msra.mxu0 0.0
    %1206 = vmatprep.subr.mxu0 0.0
    %1207 = vmatpush1.msra.mxu0 0.0
    %1208 = vmatprep.subr.mxu0 0.0
    %1209 = vmatpush1.msra.mxu0 0.0
    %1210 = vmatprep.subr.mxu0 0.0
    %1211 = vmatpush1.msra.mxu0 0.0
    %1212 = vmatprep.subr.mxu0 0.0
    %1213 = vmatpush1.msra.mxu0 0.0
    %1214 = vmatprep.subr.mxu0 0.0
    %1215 = vmatpush1.msra.mxu0 0.0
    %1216 = vmatprep.subr.mxu0 0.0
    %1217 = vmatpush1.msra.mxu0 0.0
    %1218 = vmatprep.subr.mxu0 0.0
    %1219 = vmatpush1.msra.mxu0 0.0
    %1220 = vmatprep.subr.mxu0 0.0
    %1221 = vmatpush1.msra.mxu0 0.0
    %1222 = vmatprep.subr.mxu0 0.0
    %1223 = vmatpush1.msra.mxu0 0.0
    %1224 = vmatprep.subr.mxu0 0.0
    %1225 = vmatpush1.msra.mxu0 0.0
    %1226 = vmatprep.subr.mxu0 0.0
    %1227 = vmatpush1.msra.mxu0 0.0
    %1228 = vmatprep.subr.mxu0 0.0
    %1229 = vmatpush1.msra.mxu0 0.0
    %1230 = vmatprep.subr.mxu0 0.0
    %1231 = vmatpush1.msra.mxu0 0.0
    %1232 = vmatprep.subr.mxu0 0.0
    %1233 = vmatpush1.msra.mxu0 0.0
    %1234 = vmatprep.subr.mxu0 0.0
    %1235 = vmatpush1.msra.mxu0 0.0
    %1236 = vmatprep.subr.mxu0 0.0
    %1237 = vmatpush1.msra.mxu0 0.0
    %1238 = vmatprep.subr.mxu0 0.0
    %1239 = vmatpush1.msra.mxu0 0.0
    %1240 = vmatprep.subr.mxu0 0.0
    %1241 = vmatpush1.msra.mxu0 0.0
    %1242 = vmatprep.subr.mxu0 0.0
    %1243 = vmatpush1.msra.mxu0 0.0
    %1244 = vmatprep.subr.mxu0 0.0
    %1245 = vmatpush1.msra.mxu0 0.0
    %1246 = vmatprep.subr.mxu0 0.0
    %1247 = vmatpush1.msra.mxu0 0.0
    %1248 = vmatprep.mubr.f32.mxu0 0.0
    %1249 = vmatmul.mubr.f32.gmra.mrb[0].mxu0 %v1182
    %v1250 = vpop.f32.mrb[0].mxu0
    %v1251 = vadd.f32 %v1179, %v1250
    %v1252 = vpop.f32.mrb[0].mxu0
    %1253 = vdwg.mxu0
    %v1255 = vsel %vm286, %v1251, 0
    %1257 = vmatprep.subr.mxu0 0.0
    %1258 = vmatpush1.msra.mxu0 %v38
    %1259 = vmatprep.subr.mxu0 0.0
    %1260 = vmatpush1.msra.mxu0 %v39
    %1261 = vmatprep.subr.mxu0 0.0
    %1262 = vmatpush1.msra.mxu0 %v40
    %1263 = vmatprep.subr.mxu0 0.0
    %1264 = vmatpush1.msra.mxu0 %v41
    %1265 = vmatprep.subr.mxu0 0.0
    %1266 = vmatpush1.msra.mxu0 0.0
    %1267 = vmatprep.subr.mxu0 0.0
    %1268 = vmatpush1.msra.mxu0 0.0
    %1269 = vmatprep.subr.mxu0 0.0
    %1270 = vmatpush1.msra.mxu0 0.0
    %1271 = vmatprep.subr.mxu0 0.0
    %1272 = vmatpush1.msra.mxu0 0.0
    %1273 = vmatprep.subr.mxu0 0.0
    %1274 = vmatpush1.msra.mxu0 0.0
    %1275 = vmatprep.subr.mxu0 0.0
    %1276 = vmatpush1.msra.mxu0 0.0
    %1277 = vmatprep.subr.mxu0 0.0
    %1278 = vmatpush1.msra.mxu0 0.0
    %1279 = vmatprep.subr.mxu0 0.0
    %1280 = vmatpush1.msra.mxu0 0.0
    %1281 = vmatprep.subr.mxu0 0.0
    %1282 = vmatpush1.msra.mxu0 0.0
    %1283 = vmatprep.subr.mxu0 0.0
    %1284 = vmatpush1.msra.mxu0 0.0
    %1285 = vmatprep.subr.mxu0 0.0
    %1286 = vmatpush1.msra.mxu0 0.0
    %1287 = vmatprep.subr.mxu0 0.0
    %1288 = vmatpush1.msra.mxu0 0.0
    %1289 = vmatprep.subr.mxu0 0.0
    %1290 = vmatpush1.msra.mxu0 0.0
    %1291 = vmatprep.subr.mxu0 0.0
    %1292 = vmatpush1.msra.mxu0 0.0
    %1293 = vmatprep.subr.mxu0 0.0
    %1294 = vmatpush1.msra.mxu0 0.0
    %1295 = vmatprep.subr.mxu0 0.0
    %1296 = vmatpush1.msra.mxu0 0.0
    %1297 = vmatprep.subr.mxu0 0.0
    %1298 = vmatpush1.msra.mxu0 0.0
    %1299 = vmatprep.subr.mxu0 0.0
    %1300 = vmatpush1.msra.mxu0 0.0
    %1301 = vmatprep.subr.mxu0 0.0
    %1302 = vmatpush1.msra.mxu0 0.0
    %1303 = vmatprep.subr.mxu0 0.0
    %1304 = vmatpush1.msra.mxu0 0.0
    %1305 = vmatprep.subr.mxu0 0.0
    %1306 = vmatpush1.msra.mxu0 0.0
    %1307 = vmatprep.subr.mxu0 0.0
    %1308 = vmatpush1.msra.mxu0 0.0
    %1309 = vmatprep.subr.mxu0 0.0
    %1310 = vmatpush1.msra.mxu0 0.0
    %1311 = vmatprep.subr.mxu0 0.0
    %1312 = vmatpush1.msra.mxu0 0.0
    %1313 = vmatprep.subr.mxu0 0.0
    %1314 = vmatpush1.msra.mxu0 0.0
    %1315 = vmatprep.subr.mxu0 0.0
    %1316 = vmatpush1.msra.mxu0 0.0
    %1317 = vmatprep.subr.mxu0 0.0
    %1318 = vmatpush1.msra.mxu0 0.0
    %1319 = vmatprep.subr.mxu0 0.0
    %1320 = vmatpush1.msra.mxu0 0.0
    %1321 = vmatprep.mubr.f32.mxu0 0.0
    %1322 = vmatmul.mubr.f32.gmra.mrb[0].mxu0 %v1255
    %v1323 = vpop.f32.mrb[0].mxu0
    %v1324 = vadd.f32 %v1160, %v1323
    %v1325 = vpop.f32.mrb[0].mxu0
    %1326 = vdwg.mxu0
    %1327 = vrot.lane.b32.xlu0 %v38, 64
    %v1328 = vpop.permute.xlu0 %1327
    %1329 = vrot.lane.b32.xlu0 %v39, 64
    %v1330 = vpop.permute.xlu0 %1329
    %1331 = vrot.lane.b32.xlu0 %v40, 64
    %v1332 = vpop.permute.xlu0 %1331
    %1333 = vrot.lane.b32.xlu0 %v41, 64
    %v1334 = vpop.permute.xlu0 %1333
    %1339 = vrot.lane.b32.xlu0 %v1160, 64
    %v1340 = vpop.permute.xlu0 %1339
    %1342 = vmatprep.subr.mxu0 0.0
    %1343 = vmatpush1.msra.mxu0 %v1328
    %1344 = vmatprep.subr.mxu0 0.0
    %1345 = vmatpush1.msra.mxu0 %v1330
    %1346 = vmatprep.subr.mxu0 0.0
    %1347 = vmatpush1.msra.mxu0 %v1332
    %1348 = vmatprep.subr.mxu0 0.0
    %1349 = vmatpush1.msra.mxu0 %v1334
    %1350 = vmatprep.subr.mxu0 0.0
    %1351 = vmatpush1.msra.mxu0 0.0
    %1352 = vmatprep.subr.mxu0 0.0
    %1353 = vmatpush1.msra.mxu0 0.0
    %1354 = vmatprep.subr.mxu0 0.0
    %1355 = vmatpush1.msra.mxu0 0.0
    %1356 = vmatprep.subr.mxu0 0.0
    %1357 = vmatpush1.msra.mxu0 0.0
    %1358 = vmatprep.subr.mxu0 0.0
    %1359 = vmatpush1.msra.mxu0 0.0
    %1360 = vmatprep.subr.mxu0 0.0
    %1361 = vmatpush1.msra.mxu0 0.0
    %1362 = vmatprep.subr.mxu0 0.0
    %1363 = vmatpush1.msra.mxu0 0.0
    %1364 = vmatprep.subr.mxu0 0.0
    %1365 = vmatpush1.msra.mxu0 0.0
    %1366 = vmatprep.subr.mxu0 0.0
    %1367 = vmatpush1.msra.mxu0 0.0
    %1368 = vmatprep.subr.mxu0 0.0
    %1369 = vmatpush1.msra.mxu0 0.0
    %1370 = vmatprep.subr.mxu0 0.0
    %1371 = vmatpush1.msra.mxu0 0.0
    %1372 = vmatprep.subr.mxu0 0.0
    %1373 = vmatpush1.msra.mxu0 0.0
    %1374 = vmatprep.subr.mxu0 0.0
    %1375 = vmatpush1.msra.mxu0 0.0
    %1376 = vmatprep.subr.mxu0 0.0
    %1377 = vmatpush1.msra.mxu0 0.0
    %1378 = vmatprep.subr.mxu0 0.0
    %1379 = vmatpush1.msra.mxu0 0.0
    %1380 = vmatprep.subr.mxu0 0.0
    %1381 = vmatpush1.msra.mxu0 0.0
    %1382 = vmatprep.subr.mxu0 0.0
    %1383 = vmatpush1.msra.mxu0 0.0
    %1384 = vmatprep.subr.mxu0 0.0
    %1385 = vmatpush1.msra.mxu0 0.0
    %1386 = vmatprep.subr.mxu0 0.0
    %1387 = vmatpush1.msra.mxu0 0.0
    %1388 = vmatprep.subr.mxu0 0.0
    %1389 = vmatpush1.msra.mxu0 0.0
    %1390 = vmatprep.subr.mxu0 0.0
    %1391 = vmatpush1.msra.mxu0 0.0
    %1392 = vmatprep.subr.mxu0 0.0
    %1393 = vmatpush1.msra.mxu0 0.0
    %1394 = vmatprep.subr.mxu0 0.0
    %1395 = vmatpush1.msra.mxu0 0.0
    %1396 = vmatprep.subr.mxu0 0.0
    %1397 = vmatpush1.msra.mxu0 0.0
    %1398 = vmatprep.subr.mxu0 0.0
    %1399 = vmatpush1.msra.mxu0 0.0
    %1400 = vmatprep.subr.mxu0 0.0
    %1401 = vmatpush1.msra.mxu0 0.0
    %1402 = vmatprep.subr.mxu0 0.0
    %1403 = vmatpush1.msra.mxu0 0.0
    %1404 = vmatprep.subr.mxu0 0.0
    %1405 = vmatpush1.msra.mxu0 0.0
    %1406 = vmatprep.mubr.f32.mxu0 0.0
    %1407 = vmatmul.mubr.f32.gmra.mrb[0].mxu0 %v1255
    %v1408 = vpop.f32.mrb[0].mxu0
    %v1409 = vadd.f32 %v1340, %v1408
    %v1410 = vpop.f32.mrb[0].mxu0
    %1411 = vdwg.mxu0
    %v1412 = vrot.slane %v1147, 7
    %1413 = vrot.lane.b32.xlu0 %v1412, 64
    %v1414 = vpop.permute.xlu0 %1413
    %v1415 = vsel %vm286, %v1414, 0
    %1417 = vmatprep.subr.mxu0 0.0
    %1418 = vmatpush1.msra.mxu0 %v38
    %1419 = vmatprep.subr.mxu0 0.0
    %1420 = vmatpush1.msra.mxu0 %v39
    %1421 = vmatprep.subr.mxu0 0.0
    %1422 = vmatpush1.msra.mxu0 %v40
    %1423 = vmatprep.subr.mxu0 0.0
    %1424 = vmatpush1.msra.mxu0 %v41
    %1425 = vmatprep.subr.mxu0 0.0
    %1426 = vmatpush1.msra.mxu0 0.0
    %1427 = vmatprep.subr.mxu0 0.0
    %1428 = vmatpush1.msra.mxu0 0.0
    %1429 = vmatprep.subr.mxu0 0.0
    %1430 = vmatpush1.msra.mxu0 0.0
    %1431 = vmatprep.subr.mxu0 0.0
    %1432 = vmatpush1.msra.mxu0 0.0
    %1433 = vmatprep.subr.mxu0 0.0
    %1434 = vmatpush1.msra.mxu0 0.0
    %1435 = vmatprep.subr.mxu0 0.0
    %1436 = vmatpush1.msra.mxu0 0.0
    %1437 = vmatprep.subr.mxu0 0.0
    %1438 = vmatpush1.msra.mxu0 0.0
    %1439 = vmatprep.subr.mxu0 0.0
    %1440 = vmatpush1.msra.mxu0 0.0
    %1441 = vmatprep.subr.mxu0 0.0
    %1442 = vmatpush1.msra.mxu0 0.0
    %1443 = vmatprep.subr.mxu0 0.0
    %1444 = vmatpush1.msra.mxu0 0.0
    %1445 = vmatprep.subr.mxu0 0.0
    %1446 = vmatpush1.msra.mxu0 0.0
    %1447 = vmatprep.subr.mxu0 0.0
    %1448 = vmatpush1.msra.mxu0 0.0
    %1449 = vmatprep.subr.mxu0 0.0
    %1450 = vmatpush1.msra.mxu0 0.0
    %1451 = vmatprep.subr.mxu0 0.0
    %1452 = vmatpush1.msra.mxu0 0.0
    %1453 = vmatprep.subr.mxu0 0.0
    %1454 = vmatpush1.msra.mxu0 0.0
    %1455 = vmatprep.subr.mxu0 0.0
    %1456 = vmatpush1.msra.mxu0 0.0
    %1457 = vmatprep.subr.mxu0 0.0
    %1458 = vmatpush1.msra.mxu0 0.0
    %1459 = vmatprep.subr.mxu0 0.0
    %1460 = vmatpush1.msra.mxu0 0.0
    %1461 = vmatprep.subr.mxu0 0.0
    %1462 = vmatpush1.msra.mxu0 0.0
    %1463 = vmatprep.subr.mxu0 0.0
    %1464 = vmatpush1.msra.mxu0 0.0
    %1465 = vmatprep.subr.mxu0 0.0
    %1466 = vmatpush1.msra.mxu0 0.0
    %1467 = vmatprep.subr.mxu0 0.0
    %1468 = vmatpush1.msra.mxu0 0.0
    %1469 = vmatprep.subr.mxu0 0.0
    %1470 = vmatpush1.msra.mxu0 0.0
    %1471 = vmatprep.subr.mxu0 0.0
    %1472 = vmatpush1.msra.mxu0 0.0
    %1473 = vmatprep.subr.mxu0 0.0
    %1474 = vmatpush1.msra.mxu0 0.0
    %1475 = vmatprep.subr.mxu0 0.0
    %1476 = vmatpush1.msra.mxu0 0.0
    %1477 = vmatprep.subr.mxu0 0.0
    %1478 = vmatpush1.msra.mxu0 0.0
    %1479 = vmatprep.subr.mxu0 0.0
    %1480 = vmatpush1.msra.mxu0 0.0
    %1481 = vmatprep.mubr.f32.mxu0 0.0
    %1482 = vmatmul.mubr.f32.gmra.mrb[0].mxu0 %v1415
    %v1483 = vpop.f32.mrb[0].mxu0
    %v1484 = vadd.f32 %v29, %v1483
    %v1485 = vpop.f32.mrb[0].mxu0
    %1486 = vdwg.mxu0
    %v1487 = vlaneseq
    %v1488 = vshrl.u32 %v1487, 7
    %v1489 = vsub.s32 0, %v1488
    %v1490 = vrot.slane %v1484, %v1489
    %v1491 = vadd.f32 %v1251, %v1490
    %v1492 = vtanh.pop %v1491
    %1493 = vrot.lane.b32.xlu0 %v38, 32
    %v1494 = vpop.permute.xlu0 %1493
    %1495 = vrot.lane.b32.xlu0 %v39, 32
    %v1496 = vpop.permute.xlu0 %1495
    %1497 = vrot.lane.b32.xlu0 %v40, 32
    %v1498 = vpop.permute.xlu0 %1497
    %1499 = vrot.lane.b32.xlu0 %v41, 32
    %v1500 = vpop.permute.xlu0 %1499
    %v1506 = vsel %vm286, %v1492, 0
    %1508 = vmatprep.subr.mxu0 0.0
    %1509 = vmatpush1.msra.mxu0 %v1494
    %1510 = vmatprep.subr.mxu0 0.0
    %1511 = vmatpush1.msra.mxu0 %v1496
    %1512 = vmatprep.subr.mxu0 0.0
    %1513 = vmatpush1.msra.mxu0 %v1498
    %1514 = vmatprep.subr.mxu0 0.0
    %1515 = vmatpush1.msra.mxu0 %v1500
    %1516 = vmatprep.subr.mxu0 0.0
    %1517 = vmatpush1.msra.mxu0 0.0
    %1518 = vmatprep.subr.mxu0 0.0
    %1519 = vmatpush1.msra.mxu0 0.0
    %1520 = vmatprep.subr.mxu0 0.0
    %1521 = vmatpush1.msra.mxu0 0.0
    %1522 = vmatprep.subr.mxu0 0.0
    %1523 = vmatpush1.msra.mxu0 0.0
    %1524 = vmatprep.subr.mxu0 0.0
    %1525 = vmatpush1.msra.mxu0 0.0
    %1526 = vmatprep.subr.mxu0 0.0
    %1527 = vmatpush1.msra.mxu0 0.0
    %1528 = vmatprep.subr.mxu0 0.0
    %1529 = vmatpush1.msra.mxu0 0.0
    %1530 = vmatprep.subr.mxu0 0.0
    %1531 = vmatpush1.msra.mxu0 0.0
    %1532 = vmatprep.subr.mxu0 0.0
    %1533 = vmatpush1.msra.mxu0 0.0
    %1534 = vmatprep.subr.mxu0 0.0
    %1535 = vmatpush1.msra.mxu0 0.0
    %1536 = vmatprep.subr.mxu0 0.0
    %1537 = vmatpush1.msra.mxu0 0.0
    %1538 = vmatprep.subr.mxu0 0.0
    %1539 = vmatpush1.msra.mxu0 0.0
    %1540 = vmatprep.subr.mxu0 0.0
    %1541 = vmatpush1.msra.mxu0 0.0
    %1542 = vmatprep.subr.mxu0 0.0
    %1543 = vmatpush1.msra.mxu0 0.0
    %1544 = vmatprep.subr.mxu0 0.0
    %1545 = vmatpush1.msra.mxu0 0.0
    %1546 = vmatprep.subr.mxu0 0.0
    %1547 = vmatpush1.msra.mxu0 0.0
    %1548 = vmatprep.subr.mxu0 0.0
    %1549 = vmatpush1.msra.mxu0 0.0
    %1550 = vmatprep.subr.mxu0 0.0
    %1551 = vmatpush1.msra.mxu0 0.0
    %1552 = vmatprep.subr.mxu0 0.0
    %1553 = vmatpush1.msra.mxu0 0.0
    %1554 = vmatprep.subr.mxu0 0.0
    %1555 = vmatpush1.msra.mxu0 0.0
    %1556 = vmatprep.subr.mxu0 0.0
    %1557 = vmatpush1.msra.mxu0 0.0
    %1558 = vmatprep.subr.mxu0 0.0
    %1559 = vmatpush1.msra.mxu0 0.0
    %1560 = vmatprep.subr.mxu0 0.0
    %1561 = vmatpush1.msra.mxu0 0.0
    %1562 = vmatprep.subr.mxu0 0.0
    %1563 = vmatpush1.msra.mxu0 0.0
    %1564 = vmatprep.subr.mxu0 0.0
    %1565 = vmatpush1.msra.mxu0 0.0
    %1566 = vmatprep.subr.mxu0 0.0
    %1567 = vmatpush1.msra.mxu0 0.0
    %1568 = vmatprep.subr.mxu0 0.0
    %1569 = vmatpush1.msra.mxu0 0.0
    %1570 = vmatprep.subr.mxu0 0.0
    %1571 = vmatpush1.msra.mxu0 0.0
    %1572 = vmatprep.mubr.f32.mxu0 0.0
    %1573 = vmatmul.mubr.f32.gmra.mrb[0].mxu0 %v1506
    %v1574 = vpop.f32.mrb[0].mxu0
    %v1575 = vadd.f32 0.0, %v1574
    %v1576 = vpop.f32.mrb[0].mxu0
    %1577 = vdwg.mxu0
    %v1578 = vmul.f32 %v1575, 1.442695
    %v1579 = vpow.pop %v1578
    %vm1580 = vcmask 7168
    %v1581 = vsel %vm1580, %v1579, 0.0
    %v1582 = vrot.slane %v1581, 4
    %v1583 = vadd.f32 %v1581, %v1582
    %v1584 = vrot.slane %v1583, 2
    %v1585 = vadd.f32 %v1583, %v1584
    %v1586 = vrot.slane %v1585, 1
    %v1587 = vadd.f32 %v1585, %v1586
    %v1588 = vrcp.pop %v1587
    %1590 = vset.pattern.permute.xlu0 0
    %1591 = vperm.xlu0 %1590, %v1579
    %v1592 = vpop.permute.xlu0 %1591
    %v1594 = vmul.f32 %v1592, %v1324
    %vm1595 = vcmask 64512
    %v1597 = vsel %vm1595, 1.0, 0
    %1599 = vmatprep.subr.mxu0 0.0
    %1600 = vmatpush1.msra.mxu0 %v1594
    %1601 = vmatprep.subr.mxu0 0.0
    %1602 = vmatpush1.msra.mxu0 0.0
    %1603 = vmatprep.subr.mxu0 0.0
    %1604 = vmatpush1.msra.mxu0 0.0
    %1605 = vmatprep.subr.mxu0 0.0
    %1606 = vmatpush1.msra.mxu0 0.0
    %1607 = vmatprep.subr.mxu0 0.0
    %1608 = vmatpush1.msra.mxu0 0.0
    %1609 = vmatprep.subr.mxu0 0.0
    %1610 = vmatpush1.msra.mxu0 0.0
    %1611 = vmatprep.subr.mxu0 0.0
    %1612 = vmatpush1.msra.mxu0 0.0
    %1613 = vmatprep.subr.mxu0 0.0
    %1614 = vmatpush1.msra.mxu0 0.0
    %1615 = vmatprep.subr.mxu0 0.0
    %1616 = vmatpush1.msra.mxu0 0.0
    %1617 = vmatprep.subr.mxu0 0.0
    %1618 = vmatpush1.msra.mxu0 0.0
    %1619 = vmatprep.subr.mxu0 0.0
    %1620 = vmatpush1.msra.mxu0 0.0
    %1621 = vmatprep.subr.mxu0 0.0
    %1622 = vmatpush1.msra.mxu0 0.0
    %1623 = vmatprep.subr.mxu0 0.0
    %1624 = vmatpush1.msra.mxu0 0.0
    %1625 = vmatprep.subr.mxu0 0.0
    %1626 = vmatpush1.msra.mxu0 0.0
    %1627 = vmatprep.subr.mxu0 0.0
    %1628 = vmatpush1.msra.mxu0 0.0
    %1629 = vmatprep.subr.mxu0 0.0
    %1630 = vmatpush1.msra.mxu0 0.0
    %1631 = vmatprep.subr.mxu0 0.0
    %1632 = vmatpush1.msra.mxu0 0.0
    %1633 = vmatprep.subr.mxu0 0.0
    %1634 = vmatpush1.msra.mxu0 0.0
    %1635 = vmatprep.subr.mxu0 0.0
    %1636 = vmatpush1.msra.mxu0 0.0
    %1637 = vmatprep.subr.mxu0 0.0
    %1638 = vmatpush1.msra.mxu0 0.0
    %1639 = vmatprep.subr.mxu0 0.0
    %1640 = vmatpush1.msra.mxu0 0.0
    %1641 = vmatprep.subr.mxu0 0.0
    %1642 = vmatpush1.msra.mxu0 0.0
    %1643 = vmatprep.subr.mxu0 0.0
    %1644 = vmatpush1.msra.mxu0 0.0
    %1645 = vmatprep.subr.mxu0 0.0
    %1646 = vmatpush1.msra.mxu0 0.0
    %1647 = vmatprep.subr.mxu0 0.0
    %1648 = vmatpush1.msra.mxu0 0.0
    %1649 = vmatprep.subr.mxu0 0.0
    %1650 = vmatpush1.msra.mxu0 0.0
    %1651 = vmatprep.subr.mxu0 0.0
    %1652 = vmatpush1.msra.mxu0 0.0
    %1653 = vmatprep.subr.mxu0 0.0
    %1654 = vmatpush1.msra.mxu0 0.0
    %1655 = vmatprep.subr.mxu0 0.0
    %1656 = vmatpush1.msra.mxu0 0.0
    %1657 = vmatprep.subr.mxu0 0.0
    %1658 = vmatpush1.msra.mxu0 0.0
    %1659 = vmatprep.subr.mxu0 0.0
    %1660 = vmatpush1.msra.mxu0 0.0
    %1661 = vmatprep.subr.mxu0 0.0
    %1662 = vmatpush1.msra.mxu0 0.0
    %1663 = vmatprep.mubr.f32.mxu0 0.0
    %1664 = vmatmul.mubr.f32.gmra.mrb[0].mxu0 %v1597
    %v1665 = vpop.f32.mrb[0].mxu0
    %v1666 = vadd.f32 0.0, %v1665
    %v1667 = vpop.f32.mrb[0].mxu0
    %1668 = vdwg.mxu0
    %1670 = vset.pattern.permute.xlu0 0
    %1671 = vperm.xlu0 %1670, %v1588
    %v1672 = vpop.permute.xlu0 %1671
    %v1674 = vmul.f32 %v1666, %v1672
    %v1675 = vlaneseq
    %v1676 = vshrl.u32 %v1675, 7
    %v1677 = vsub.s32 0, %v1676
    %v1678 = vrot.slane %v1674, %v1677
    %v1679 = vadd.f32 %v1251, %v1678
    %v1680 = vtanh.pop %v1679
    %v1682 = vsel %vm286, %v1680, 0
    %1684 = vmatprep.subr.mxu0 0.0
    %1685 = vmatpush1.msra.mxu0 %v1494
    %1686 = vmatprep.subr.mxu0 0.0
    %1687 = vmatpush1.msra.mxu0 %v1496
    %1688 = vmatprep.subr.mxu0 0.0
    %1689 = vmatpush1.msra.mxu0 %v1498
    %1690 = vmatprep.subr.mxu0 0.0
    %1691 = vmatpush1.msra.mxu0 %v1500
    %1692 = vmatprep.subr.mxu0 0.0
    %1693 = vmatpush1.msra.mxu0 0.0
    %1694 = vmatprep.subr.mxu0 0.0
    %1695 = vmatpush1.msra.mxu0 0.0
    %1696 = vmatprep.subr.mxu0 0.0
    %1697 = vmatpush1.msra.mxu0 0.0
    %1698 = vmatprep.subr.mxu0 0.0
    %1699 = vmatpush1.msra.mxu0 0.0
    %1700 = vmatprep.subr.mxu0 0.0
    %1701 = vmatpush1.msra.mxu0 0.0
    %1702 = vmatprep.subr.mxu0 0.0
    %1703 = vmatpush1.msra.mxu0 0.0
    %1704 = vmatprep.subr.mxu0 0.0
    %1705 = vmatpush1.msra.mxu0 0.0
    %1706 = vmatprep.subr.mxu0 0.0
    %1707 = vmatpush1.msra.mxu0 0.0
    %1708 = vmatprep.subr.mxu0 0.0
    %1709 = vmatpush1.msra.mxu0 0.0
    %1710 = vmatprep.subr.mxu0 0.0
    %1711 = vmatpush1.msra.mxu0 0.0
    %1712 = vmatprep.subr.mxu0 0.0
    %1713 = vmatpush1.msra.mxu0 0.0
    %1714 = vmatprep.subr.mxu0 0.0
    %1715 = vmatpush1.msra.mxu0 0.0
    %1716 = vmatprep.subr.mxu0 0.0
    %1717 = vmatpush1.msra.mxu0 0.0
    %1718 = vmatprep.subr.mxu0 0.0
    %1719 = vmatpush1.msra.mxu0 0.0
    %1720 = vmatprep.subr.mxu0 0.0
    %1721 = vmatpush1.msra.mxu0 0.0
    %1722 = vmatprep.subr.mxu0 0.0
    %1723 = vmatpush1.msra.mxu0 0.0
    %1724 = vmatprep.subr.mxu0 0.0
    %1725 = vmatpush1.msra.mxu0 0.0
    %1726 = vmatprep.subr.mxu0 0.0
    %1727 = vmatpush1.msra.mxu0 0.0
    %1728 = vmatprep.subr.mxu0 0.0
    %1729 = vmatpush1.msra.mxu0 0.0
    %1730 = vmatprep.subr.mxu0 0.0
    %1731 = vmatpush1.msra.mxu0 0.0
    %1732 = vmatprep.subr.mxu0 0.0
    %1733 = vmatpush1.msra.mxu0 0.0
    %1734 = vmatprep.subr.mxu0 0.0
    %1735 = vmatpush1.msra.mxu0 0.0
    %1736 = vmatprep.subr.mxu0 0.0
    %1737 = vmatpush1.msra.mxu0 0.0
    %1738 = vmatprep.subr.mxu0 0.0
    %1739 = vmatpush1.msra.mxu0 0.0
    %1740 = vmatprep.subr.mxu0 0.0
    %1741 = vmatpush1.msra.mxu0 0.0
    %1742 = vmatprep.subr.mxu0 0.0
    %1743 = vmatpush1.msra.mxu0 0.0
    %1744 = vmatprep.subr.mxu0 0.0
    %1745 = vmatpush1.msra.mxu0 0.0
    %1746 = vmatprep.subr.mxu0 0.0
    %1747 = vmatpush1.msra.mxu0 0.0
    %1748 = vmatprep.mubr.f32.mxu0 0.0
    %1749 = vmatmul.mubr.f32.gmra.mrb[0].mxu0 %v1682
    %v1750 = vpop.f32.mrb[0].mxu0
    %v1751 = vadd.f32 0.0, %v1750
    %v1752 = vpop.f32.mrb[0].mxu0
    %1753 = vdwg.mxu0
    %v1754 = vmul.f32 %v1751, 1.442695
    %v1755 = vpow.pop %v1754
    %v1756 = vsel %vm1580, %v1755, 0.0
    %v1757 = vrot.slane %v1756, 4
    %v1758 = vadd.f32 %v1756, %v1757
    %v1759 = vrot.slane %v1758, 2
    %v1760 = vadd.f32 %v1758, %v1759
    %v1761 = vrot.slane %v1760, 1
    %v1762 = vadd.f32 %v1760, %v1761
    %v1763 = vrcp.pop %v1762
    %1765 = vset.pattern.permute.xlu0 0
    %1766 = vperm.xlu0 %1765, %v1755
    %v1767 = vpop.permute.xlu0 %1766
    %v1769 = vmul.f32 %v1767, %v1324
    %1770 = vmatprep.subr.mxu0 0.0
    %1771 = vmatpush1.msra.mxu0 %v1769
    %1772 = vmatprep.subr.mxu0 0.0
    %1773 = vmatpush1.msra.mxu0 0.0
    %1774 = vmatprep.subr.mxu0 0.0
    %1775 = vmatpush1.msra.mxu0 0.0
    %1776 = vmatprep.subr.mxu0 0.0
    %1777 = vmatpush1.msra.mxu0 0.0
    %1778 = vmatprep.subr.mxu0 0.0
    %1779 = vmatpush1.msra.mxu0 0.0
    %1780 = vmatprep.subr.mxu0 0.0
    %1781 = vmatpush1.msra.mxu0 0.0
    %1782 = vmatprep.subr.mxu0 0.0
    %1783 = vmatpush1.msra.mxu0 0.0
    %1784 = vmatprep.subr.mxu0 0.0
    %1785 = vmatpush1.msra.mxu0 0.0
    %1786 = vmatprep.subr.mxu0 0.0
    %1787 = vmatpush1.msra.mxu0 0.0
    %1788 = vmatprep.subr.mxu0 0.0
    %1789 = vmatpush1.msra.mxu0 0.0
    %1790 = vmatprep.subr.mxu0 0.0
    %1791 = vmatpush1.msra.mxu0 0.0
    %1792 = vmatprep.subr.mxu0 0.0
    %1793 = vmatpush1.msra.mxu0 0.0
    %1794 = vmatprep.subr.mxu0 0.0
    %1795 = vmatpush1.msra.mxu0 0.0
    %1796 = vmatprep.subr.mxu0 0.0
    %1797 = vmatpush1.msra.mxu0 0.0
    %1798 = vmatprep.subr.mxu0 0.0
    %1799 = vmatpush1.msra.mxu0 0.0
    %1800 = vmatprep.subr.mxu0 0.0
    %1801 = vmatpush1.msra.mxu0 0.0
    %1802 = vmatprep.subr.mxu0 0.0
    %1803 = vmatpush1.msra.mxu0 0.0
    %1804 = vmatprep.subr.mxu0 0.0
    %1805 = vmatpush1.msra.mxu0 0.0
    %1806 = vmatprep.subr.mxu0 0.0
    %1807 = vmatpush1.msra.mxu0 0.0
    %1808 = vmatprep.subr.mxu0 0.0
    %1809 = vmatpush1.msra.mxu0 0.0
    %1810 = vmatprep.subr.mxu0 0.0
    %1811 = vmatpush1.msra.mxu0 0.0
    %1812 = vmatprep.subr.mxu0 0.0
    %1813 = vmatpush1.msra.mxu0 0.0
    %1814 = vmatprep.subr.mxu0 0.0
    %1815 = vmatpush1.msra.mxu0 0.0
    %1816 = vmatprep.subr.mxu0 0.0
    %1817 = vmatpush1.msra.mxu0 0.0
    %1818 = vmatprep.subr.mxu0 0.0
    %1819 = vmatpush1.msra.mxu0 0.0
    %1820 = vmatprep.subr.mxu0 0.0
    %1821 = vmatpush1.msra.mxu0 0.0
    %1822 = vmatprep.subr.mxu0 0.0
    %1823 = vmatpush1.msra.mxu0 0.0
    %1824 = vmatprep.subr.mxu0 0.0
    %1825 = vmatpush1.msra.mxu0 0.0
    %1826 = vmatprep.subr.mxu0 0.0
    %1827 = vmatpush1.msra.mxu0 0.0
    %1828 = vmatprep.subr.mxu0 0.0
    %1829 = vmatpush1.msra.mxu0 0.0
    %1830 = vmatprep.subr.mxu0 0.0
    %1831 = vmatpush1.msra.mxu0 0.0
    %1832 = vmatprep.subr.mxu0 0.0
    %1833 = vmatpush1.msra.mxu0 0.0
    %1834 = vmatprep.mubr.f32.mxu0 0.0
    %1835 = vmatmul.mubr.f32.gmra.mrb[0].mxu0 %v1597
    %v1836 = vpop.f32.mrb[0].mxu0
    %v1837 = vadd.f32 0.0, %v1836
    %v1838 = vpop.f32.mrb[0].mxu0
    %1839 = vdwg.mxu0
    %1841 = vset.pattern.permute.xlu0 0
    %1842 = vperm.xlu0 %1841, %v1763
    %v1843 = vpop.permute.xlu0 %1842
    %v1845 = vmul.f32 %v1837, %v1843
    %v1846 = vlaneseq
    %v1847 = vshrl.u32 %v1846, 7
    %v1848 = vsub.s32 0, %v1847
    %v1849 = vrot.slane %v1845, %v1848
    %v1850 = vadd.f32 %v1251, %v1849
    %v1851 = vtanh.pop %v1850
    %v1853 = vsel %vm286, %v1851, 0
    %1855 = vmatprep.subr.mxu0 0.0
    %1856 = vmatpush1.msra.mxu0 %v1494
    %1857 = vmatprep.subr.mxu0 0.0
    %1858 = vmatpush1.msra.mxu0 %v1496
    %1859 = vmatprep.subr.mxu0 0.0
    %1860 = vmatpush1.msra.mxu0 %v1498
    %1861 = vmatprep.subr.mxu0 0.0
    %1862 = vmatpush1.msra.mxu0 %v1500
    %1863 = vmatprep.subr.mxu0 0.0
    %1864 = vmatpush1.msra.mxu0 0.0
    %1865 = vmatprep.subr.mxu0 0.0
    %1866 = vmatpush1.msra.mxu0 0.0
    %1867 = vmatprep.subr.mxu0 0.0
    %1868 = vmatpush1.msra.mxu0 0.0
    %1869 = vmatprep.subr.mxu0 0.0
    %1870 = vmatpush1.msra.mxu0 0.0
    %1871 = vmatprep.subr.mxu0 0.0
    %1872 = vmatpush1.msra.mxu0 0.0
    %1873 = vmatprep.subr.mxu0 0.0
    %1874 = vmatpush1.msra.mxu0 0.0
    %1875 = vmatprep.subr.mxu0 0.0
    %1876 = vmatpush1.msra.mxu0 0.0
    %1877 = vmatprep.subr.mxu0 0.0
    %1878 = vmatpush1.msra.mxu0 0.0
    %1879 = vmatprep.subr.mxu0 0.0
    %1880 = vmatpush1.msra.mxu0 0.0
    %1881 = vmatprep.subr.mxu0 0.0
    %1882 = vmatpush1.msra.mxu0 0.0
    %1883 = vmatprep.subr.mxu0 0.0
    %1884 = vmatpush1.msra.mxu0 0.0
    %1885 = vmatprep.subr.mxu0 0.0
    %1886 = vmatpush1.msra.mxu0 0.0
    %1887 = vmatprep.subr.mxu0 0.0
    %1888 = vmatpush1.msra.mxu0 0.0
    %1889 = vmatprep.subr.mxu0 0.0
    %1890 = vmatpush1.msra.mxu0 0.0
    %1891 = vmatprep.subr.mxu0 0.0
    %1892 = vmatpush1.msra.mxu0 0.0
    %1893 = vmatprep.subr.mxu0 0.0
    %1894 = vmatpush1.msra.mxu0 0.0
    %1895 = vmatprep.subr.mxu0 0.0
    %1896 = vmatpush1.msra.mxu0 0.0
    %1897 = vmatprep.subr.mxu0 0.0
    %1898 = vmatpush1.msra.mxu0 0.0
    %1899 = vmatprep.subr.mxu0 0.0
    %1900 = vmatpush1.msra.mxu0 0.0
    %1901 = vmatprep.subr.mxu0 0.0
    %1902 = vmatpush1.msra.mxu0 0.0
    %1903 = vmatprep.subr.mxu0 0.0
    %1904 = vmatpush1.msra.mxu0 0.0
    %1905 = vmatprep.subr.mxu0 0.0
    %1906 = vmatpush1.msra.mxu0 0.0
    %1907 = vmatprep.subr.mxu0 0.0
    %1908 = vmatpush1.msra.mxu0 0.0
    %1909 = vmatprep.subr.mxu0 0.0
    %1910 = vmatpush1.msra.mxu0 0.0
    %1911 = vmatprep.subr.mxu0 0.0
    %1912 = vmatpush1.msra.mxu0 0.0
    %1913 = vmatprep.subr.mxu0 0.0
    %1914 = vmatpush1.msra.mxu0 0.0
    %1915 = vmatprep.subr.mxu0 0.0
    %1916 = vmatpush1.msra.mxu0 0.0
    %1917 = vmatprep.subr.mxu0 0.0
    %1918 = vmatpush1.msra.mxu0 0.0
    %1919 = vmatprep.mubr.f32.mxu0 0.0
    %1920 = vmatmul.mubr.f32.gmra.mrb[0].mxu0 %v1853
    %v1921 = vpop.f32.mrb[0].mxu0
    %v1922 = vadd.f32 0.0, %v1921
    %v1923 = vpop.f32.mrb[0].mxu0
    %1924 = vdwg.mxu0
    %v1925 = vmul.f32 %v1922, 1.442695
    %v1926 = vpow.pop %v1925
    %v1927 = vsel %vm1580, %v1926, 0.0
    %v1928 = vrot.slane %v1927, 4
    %v1929 = vadd.f32 %v1927, %v1928
    %v1930 = vrot.slane %v1929, 2
    %v1931 = vadd.f32 %v1929, %v1930
    %v1932 = vrot.slane %v1931, 1
    %v1933 = vadd.f32 %v1931, %v1932
    %v1934 = vrcp.pop %v1933
    %1936 = vset.pattern.permute.xlu0 0
    %1937 = vperm.xlu0 %1936, %v1926
    %v1938 = vpop.permute.xlu0 %1937
    %v1940 = vmul.f32 %v1938, %v1324
    %1941 = vmatprep.subr.mxu0 0.0
    %1942 = vmatpush1.msra.mxu0 %v1940
    %1943 = vmatprep.subr.mxu0 0.0
    %1944 = vmatpush1.msra.mxu0 0.0
    %1945 = vmatprep.subr.mxu0 0.0
    %1946 = vmatpush1.msra.mxu0 0.0
    %1947 = vmatprep.subr.mxu0 0.0
    %1948 = vmatpush1.msra.mxu0 0.0
    %1949 = vmatprep.subr.mxu0 0.0
    %1950 = vmatpush1.msra.mxu0 0.0
    %1951 = vmatprep.subr.mxu0 0.0
    %1952 = vmatpush1.msra.mxu0 0.0
    %1953 = vmatprep.subr.mxu0 0.0
    %1954 = vmatpush1.msra.mxu0 0.0
    %1955 = vmatprep.subr.mxu0 0.0
    %1956 = vmatpush1.msra.mxu0 0.0
    %1957 = vmatprep.subr.mxu0 0.0
    %1958 = vmatpush1.msra.mxu0 0.0
    %1959 = vmatprep.subr.mxu0 0.0
    %1960 = vmatpush1.msra.mxu0 0.0
    %1961 = vmatprep.subr.mxu0 0.0
    %1962 = vmatpush1.msra.mxu0 0.0
    %1963 = vmatprep.subr.mxu0 0.0
    %1964 = vmatpush1.msra.mxu0 0.0
    %1965 = vmatprep.subr.mxu0 0.0
    %1966 = vmatpush1.msra.mxu0 0.0
    %1967 = vmatprep.subr.mxu0 0.0
    %1968 = vmatpush1.msra.mxu0 0.0
    %1969 = vmatprep.subr.mxu0 0.0
    %1970 = vmatpush1.msra.mxu0 0.0
    %1971 = vmatprep.subr.mxu0 0.0
    %1972 = vmatpush1.msra.mxu0 0.0
    %1973 = vmatprep.subr.mxu0 0.0
    %1974 = vmatpush1.msra.mxu0 0.0
    %1975 = vmatprep.subr.mxu0 0.0
    %1976 = vmatpush1.msra.mxu0 0.0
    %1977 = vmatprep.subr.mxu0 0.0
    %1978 = vmatpush1.msra.mxu0 0.0
    %1979 = vmatprep.subr.mxu0 0.0
    %1980 = vmatpush1.msra.mxu0 0.0
    %1981 = vmatprep.subr.mxu0 0.0
    %1982 = vmatpush1.msra.mxu0 0.0
    %1983 = vmatprep.subr.mxu0 0.0
    %1984 = vmatpush1.msra.mxu0 0.0
    %1985 = vmatprep.subr.mxu0 0.0
    %1986 = vmatpush1.msra.mxu0 0.0
    %1987 = vmatprep.subr.mxu0 0.0
    %1988 = vmatpush1.msra.mxu0 0.0
    %1989 = vmatprep.subr.mxu0 0.0
    %1990 = vmatpush1.msra.mxu0 0.0
    %1991 = vmatprep.subr.mxu0 0.0
    %1992 = vmatpush1.msra.mxu0 0.0
    %1993 = vmatprep.subr.mxu0 0.0
    %1994 = vmatpush1.msra.mxu0 0.0
    %1995 = vmatprep.subr.mxu0 0.0
    %1996 = vmatpush1.msra.mxu0 0.0
    %1997 = vmatprep.subr.mxu0 0.0
    %1998 = vmatpush1.msra.mxu0 0.0
    %1999 = vmatprep.subr.mxu0 0.0
    %2000 = vmatpush1.msra.mxu0 0.0
    %2001 = vmatprep.subr.mxu0 0.0
    %2002 = vmatpush1.msra.mxu0 0.0
    %2003 = vmatprep.subr.mxu0 0.0
    %2004 = vmatpush1.msra.mxu0 0.0
    %2005 = vmatprep.mubr.f32.mxu0 0.0
    %2006 = vmatmul.mubr.f32.gmra.mrb[0].mxu0 %v1597
    %v2007 = vpop.f32.mrb[0].mxu0
    %v2008 = vadd.f32 0.0, %v2007
    %v2009 = vpop.f32.mrb[0].mxu0
    %2010 = vdwg.mxu0
    %2012 = vset.pattern.permute.xlu0 0
    %2013 = vperm.xlu0 %2012, %v1934
    %v2014 = vpop.permute.xlu0 %2013
    %v2016 = vmul.f32 %v2008, %v2014
    %v2017 = vlaneseq
    %v2018 = vshrl.u32 %v2017, 7
    %v2019 = vsub.s32 0, %v2018
    %v2020 = vrot.slane %v2016, %v2019
    %v2021 = vadd.f32 %v1251, %v2020
    %v2022 = vtanh.pop %v2021
    %v2024 = vsel %vm286, %v2022, 0
    %2026 = vmatprep.subr.mxu0 0.0
    %2027 = vmatpush1.msra.mxu0 %v1494
    %2028 = vmatprep.subr.mxu0 0.0
    %2029 = vmatpush1.msra.mxu0 %v1496
    %2030 = vmatprep.subr.mxu0 0.0
    %2031 = vmatpush1.msra.mxu0 %v1498
    %2032 = vmatprep.subr.mxu0 0.0
    %2033 = vmatpush1.msra.mxu0 %v1500
    %2034 = vmatprep.subr.mxu0 0.0
    %2035 = vmatpush1.msra.mxu0 0.0
    %2036 = vmatprep.subr.mxu0 0.0
    %2037 = vmatpush1.msra.mxu0 0.0
    %2038 = vmatprep.subr.mxu0 0.0
    %2039 = vmatpush1.msra.mxu0 0.0
    %2040 = vmatprep.subr.mxu0 0.0
    %2041 = vmatpush1.msra.mxu0 0.0
    %2042 = vmatprep.subr.mxu0 0.0
    %2043 = vmatpush1.msra.mxu0 0.0
    %2044 = vmatprep.subr.mxu0 0.0
    %2045 = vmatpush1.msra.mxu0 0.0
    %2046 = vmatprep.subr.mxu0 0.0
    %2047 = vmatpush1.msra.mxu0 0.0
    %2048 = vmatprep.subr.mxu0 0.0
    %2049 = vmatpush1.msra.mxu0 0.0
    %2050 = vmatprep.subr.mxu0 0.0
    %2051 = vmatpush1.msra.mxu0 0.0
    %2052 = vmatprep.subr.mxu0 0.0
    %2053 = vmatpush1.msra.mxu0 0.0
    %2054 = vmatprep.subr.mxu0 0.0
    %2055 = vmatpush1.msra.mxu0 0.0
    %2056 = vmatprep.subr.mxu0 0.0
    %2057 = vmatpush1.msra.mxu0 0.0
    %2058 = vmatprep.subr.mxu0 0.0
    %2059 = vmatpush1.msra.mxu0 0.0
    %2060 = vmatprep.subr.mxu0 0.0
    %2061 = vmatpush1.msra.mxu0 0.0
    %2062 = vmatprep.subr.mxu0 0.0
    %2063 = vmatpush1.msra.mxu0 0.0
    %2064 = vmatprep.subr.mxu0 0.0
    %2065 = vmatpush1.msra.mxu0 0.0
    %2066 = vmatprep.subr.mxu0 0.0
    %2067 = vmatpush1.msra.mxu0 0.0
    %2068 = vmatprep.subr.mxu0 0.0
    %2069 = vmatpush1.msra.mxu0 0.0
    %2070 = vmatprep.subr.mxu0 0.0
    %2071 = vmatpush1.msra.mxu0 0.0
    %2072 = vmatprep.subr.mxu0 0.0
    %2073 = vmatpush1.msra.mxu0 0.0
    %2074 = vmatprep.subr.mxu0 0.0
    %2075 = vmatpush1.msra.mxu0 0.0
    %2076 = vmatprep.subr.mxu0 0.0
    %2077 = vmatpush1.msra.mxu0 0.0
    %2078 = vmatprep.subr.mxu0 0.0
    %2079 = vmatpush1.msra.mxu0 0.0
    %2080 = vmatprep.subr.mxu0 0.0
    %2081 = vmatpush1.msra.mxu0 0.0
    %2082 = vmatprep.subr.mxu0 0.0
    %2083 = vmatpush1.msra.mxu0 0.0
    %2084 = vmatprep.subr.mxu0 0.0
    %2085 = vmatpush1.msra.mxu0 0.0
    %2086 = vmatprep.subr.mxu0 0.0
    %2087 = vmatpush1.msra.mxu0 0.0
    %2088 = vmatprep.subr.mxu0 0.0
    %2089 = vmatpush1.msra.mxu0 0.0
    %2090 = vmatprep.mubr.f32.mxu0 0.0
    %2091 = vmatmul.mubr.f32.gmra.mrb[0].mxu0 %v2024
    %v2092 = vpop.f32.mrb[0].mxu0
    %v2093 = vadd.f32 0.0, %v2092
    %v2094 = vpop.f32.mrb[0].mxu0
    %2095 = vdwg.mxu0
    %v2096 = vmul.f32 %v2093, 1.442695
    %v2097 = vpow.pop %v2096
    %v2098 = vsel %vm1580, %v2097, 0.0
    %v2099 = vrot.slane %v2098, 4
    %v2100 = vadd.f32 %v2098, %v2099
    %v2101 = vrot.slane %v2100, 2
    %v2102 = vadd.f32 %v2100, %v2101
    %v2103 = vrot.slane %v2102, 1
    %v2104 = vadd.f32 %v2102, %v2103
    %v2105 = vrcp.pop %v2104
    %2107 = vset.pattern.permute.xlu0 0
    %2108 = vperm.xlu0 %2107, %v2097
    %v2109 = vpop.permute.xlu0 %2108
    %v2111 = vmul.f32 %v2109, %v1324
    %2112 = vmatprep.subr.mxu0 0.0
    %2113 = vmatpush1.msra.mxu0 %v2111
    %2114 = vmatprep.subr.mxu0 0.0
    %2115 = vmatpush1.msra.mxu0 0.0
    %2116 = vmatprep.subr.mxu0 0.0
    %2117 = vmatpush1.msra.mxu0 0.0
    %2118 = vmatprep.subr.mxu0 0.0
    %2119 = vmatpush1.msra.mxu0 0.0
    %2120 = vmatprep.subr.mxu0 0.0
    %2121 = vmatpush1.msra.mxu0 0.0
    %2122 = vmatprep.subr.mxu0 0.0
    %2123 = vmatpush1.msra.mxu0 0.0
    %2124 = vmatprep.subr.mxu0 0.0
    %2125 = vmatpush1.msra.mxu0 0.0
    %2126 = vmatprep.subr.mxu0 0.0
    %2127 = vmatpush1.msra.mxu0 0.0
    %2128 = vmatprep.subr.mxu0 0.0
    %2129 = vmatpush1.msra.mxu0 0.0
    %2130 = vmatprep.subr.mxu0 0.0
    %2131 = vmatpush1.msra.mxu0 0.0
    %2132 = vmatprep.subr.mxu0 0.0
    %2133 = vmatpush1.msra.mxu0 0.0
    %2134 = vmatprep.subr.mxu0 0.0
    %2135 = vmatpush1.msra.mxu0 0.0
    %2136 = vmatprep.subr.mxu0 0.0
    %2137 = vmatpush1.msra.mxu0 0.0
    %2138 = vmatprep.subr.mxu0 0.0
    %2139 = vmatpush1.msra.mxu0 0.0
    %2140 = vmatprep.subr.mxu0 0.0
    %2141 = vmatpush1.msra.mxu0 0.0
    %2142 = vmatprep.subr.mxu0 0.0
    %2143 = vmatpush1.msra.mxu0 0.0
    %2144 = vmatprep.subr.mxu0 0.0
    %2145 = vmatpush1.msra.mxu0 0.0
    %2146 = vmatprep.subr.mxu0 0.0
    %2147 = vmatpush1.msra.mxu0 0.0
    %2148 = vmatprep.subr.mxu0 0.0
    %2149 = vmatpush1.msra.mxu0 0.0
    %2150 = vmatprep.subr.mxu0 0.0
    %2151 = vmatpush1.msra.mxu0 0.0
    %2152 = vmatprep.subr.mxu0 0.0
    %2153 = vmatpush1.msra.mxu0 0.0
    %2154 = vmatprep.subr.mxu0 0.0
    %2155 = vmatpush1.msra.mxu0 0.0
    %2156 = vmatprep.subr.mxu0 0.0
    %2157 = vmatpush1.msra.mxu0 0.0
    %2158 = vmatprep.subr.mxu0 0.0
    %2159 = vmatpush1.msra.mxu0 0.0
    %2160 = vmatprep.subr.mxu0 0.0
    %2161 = vmatpush1.msra.mxu0 0.0
    %2162 = vmatprep.subr.mxu0 0.0
    %2163 = vmatpush1.msra.mxu0 0.0
    %2164 = vmatprep.subr.mxu0 0.0
    %2165 = vmatpush1.msra.mxu0 0.0
    %2166 = vmatprep.subr.mxu0 0.0
    %2167 = vmatpush1.msra.mxu0 0.0
    %2168 = vmatprep.subr.mxu0 0.0
    %2169 = vmatpush1.msra.mxu0 0.0
    %2170 = vmatprep.subr.mxu0 0.0
    %2171 = vmatpush1.msra.mxu0 0.0
    %2172 = vmatprep.subr.mxu0 0.0
    %2173 = vmatpush1.msra.mxu0 0.0
    %2174 = vmatprep.subr.mxu0 0.0
    %2175 = vmatpush1.msra.mxu0 0.0
    %2176 = vmatprep.mubr.f32.mxu0 0.0
    %2177 = vmatmul.mubr.f32.gmra.mrb[0].mxu0 %v1597
    %v2178 = vpop.f32.mrb[0].mxu0
    %v2179 = vadd.f32 0.0, %v2178
    %v2180 = vpop.f32.mrb[0].mxu0
    %2181 = vdwg.mxu0
    %2183 = vset.pattern.permute.xlu0 0
    %2184 = vperm.xlu0 %2183, %v2105
    %v2185 = vpop.permute.xlu0 %2184
    %v2187 = vmul.f32 %v2179, %v2185
    %v2188 = vlaneseq
    %v2189 = vshrl.u32 %v2188, 7
    %v2190 = vsub.s32 0, %v2189
    %v2191 = vrot.slane %v2187, %v2190
    %v2192 = vadd.f32 %v1251, %v2191
    %v2193 = vtanh.pop %v2192
    %v2195 = vsel %vm286, %v2193, 0
    %2197 = vmatprep.subr.mxu0 0.0
    %2198 = vmatpush1.msra.mxu0 %v1494
    %2199 = vmatprep.subr.mxu0 0.0
    %2200 = vmatpush1.msra.mxu0 %v1496
    %2201 = vmatprep.subr.mxu0 0.0
    %2202 = vmatpush1.msra.mxu0 %v1498
    %2203 = vmatprep.subr.mxu0 0.0
    %2204 = vmatpush1.msra.mxu0 %v1500
    %2205 = vmatprep.subr.mxu0 0.0
    %2206 = vmatpush1.msra.mxu0 0.0
    %2207 = vmatprep.subr.mxu0 0.0
    %2208 = vmatpush1.msra.mxu0 0.0
    %2209 = vmatprep.subr.mxu0 0.0
    %2210 = vmatpush1.msra.mxu0 0.0
    %2211 = vmatprep.subr.mxu0 0.0
    %2212 = vmatpush1.msra.mxu0 0.0
    %2213 = vmatprep.subr.mxu0 0.0
    %2214 = vmatpush1.msra.mxu0 0.0
    %2215 = vmatprep.subr.mxu0 0.0
    %2216 = vmatpush1.msra.mxu0 0.0
    %2217 = vmatprep.subr.mxu0 0.0
    %2218 = vmatpush1.msra.mxu0 0.0
    %2219 = vmatprep.subr.mxu0 0.0
    %2220 = vmatpush1.msra.mxu0 0.0
    %2221 = vmatprep.subr.mxu0 0.0
    %2222 = vmatpush1.msra.mxu0 0.0
    %2223 = vmatprep.subr.mxu0 0.0
    %2224 = vmatpush1.msra.mxu0 0.0
    %2225 = vmatprep.subr.mxu0 0.0
    %2226 = vmatpush1.msra.mxu0 0.0
    %2227 = vmatprep.subr.mxu0 0.0
    %2228 = vmatpush1.msra.mxu0 0.0
    %2229 = vmatprep.subr.mxu0 0.0
    %2230 = vmatpush1.msra.mxu0 0.0
    %2231 = vmatprep.subr.mxu0 0.0
    %2232 = vmatpush1.msra.mxu0 0.0
    %2233 = vmatprep.subr.mxu0 0.0
    %2234 = vmatpush1.msra.mxu0 0.0
    %2235 = vmatprep.subr.mxu0 0.0
    %2236 = vmatpush1.msra.mxu0 0.0
    %2237 = vmatprep.subr.mxu0 0.0
    %2238 = vmatpush1.msra.mxu0 0.0
    %2239 = vmatprep.subr.mxu0 0.0
    %2240 = vmatpush1.msra.mxu0 0.0
    %2241 = vmatprep.subr.mxu0 0.0
    %2242 = vmatpush1.msra.mxu0 0.0
    %2243 = vmatprep.subr.mxu0 0.0
    %2244 = vmatpush1.msra.mxu0 0.0
    %2245 = vmatprep.subr.mxu0 0.0
    %2246 = vmatpush1.msra.mxu0 0.0
    %2247 = vmatprep.subr.mxu0 0.0
    %2248 = vmatpush1.msra.mxu0 0.0
    %2249 = vmatprep.subr.mxu0 0.0
    %2250 = vmatpush1.msra.mxu0 0.0
    %2251 = vmatprep.subr.mxu0 0.0
    %2252 = vmatpush1.msra.mxu0 0.0
    %2253 = vmatprep.subr.mxu0 0.0
    %2254 = vmatpush1.msra.mxu0 0.0
    %2255 = vmatprep.subr.mxu0 0.0
    %2256 = vmatpush1.msra.mxu0 0.0
    %2257 = vmatprep.subr.mxu0 0.0
    %2258 = vmatpush1.msra.mxu0 0.0
    %2259 = vmatprep.subr.mxu0 0.0
    %2260 = vmatpush1.msra.mxu0 0.0
    %2261 = vmatprep.mubr.f32.mxu0 0.0
    %2262 = vmatmul.mubr.f32.gmra.mrb[0].mxu0 %v2195
    %v2263 = vpop.f32.mrb[0].mxu0
    %v2264 = vadd.f32 0.0, %v2263
    %v2265 = vpop.f32.mrb[0].mxu0
    %2266 = vdwg.mxu0
    %v2267 = vmul.f32 %v2264, 1.442695
    %v2268 = vpow.pop %v2267
    %v2269 = vsel %vm1580, %v2268, 0.0
    %v2270 = vrot.slane %v2269, 4
    %v2271 = vadd.f32 %v2269, %v2270
    %v2272 = vrot.slane %v2271, 2
    %v2273 = vadd.f32 %v2271, %v2272
    %v2274 = vrot.slane %v2273, 1
    %v2275 = vadd.f32 %v2273, %v2274
    %v2276 = vrcp.pop %v2275
    %2278 = vset.pattern.permute.xlu0 0
    %2279 = vperm.xlu0 %2278, %v2268
    %v2280 = vpop.permute.xlu0 %2279
    %v2282 = vmul.f32 %v2280, %v1324
    %2283 = vmatprep.subr.mxu0 0.0
    %2284 = vmatpush1.msra.mxu0 %v2282
    %2285 = vmatprep.subr.mxu0 0.0
    %2286 = vmatpush1.msra.mxu0 0.0
    %2287 = vmatprep.subr.mxu0 0.0
    %2288 = vmatpush1.msra.mxu0 0.0
    %2289 = vmatprep.subr.mxu0 0.0
    %2290 = vmatpush1.msra.mxu0 0.0
    %2291 = vmatprep.subr.mxu0 0.0
    %2292 = vmatpush1.msra.mxu0 0.0
    %2293 = vmatprep.subr.mxu0 0.0
    %2294 = vmatpush1.msra.mxu0 0.0
    %2295 = vmatprep.subr.mxu0 0.0
    %2296 = vmatpush1.msra.mxu0 0.0
    %2297 = vmatprep.subr.mxu0 0.0
    %2298 = vmatpush1.msra.mxu0 0.0
    %2299 = vmatprep.subr.mxu0 0.0
    %2300 = vmatpush1.msra.mxu0 0.0
    %2301 = vmatprep.subr.mxu0 0.0
    %2302 = vmatpush1.msra.mxu0 0.0
    %2303 = vmatprep.subr.mxu0 0.0
    %2304 = vmatpush1.msra.mxu0 0.0
    %2305 = vmatprep.subr.mxu0 0.0
    %2306 = vmatpush1.msra.mxu0 0.0
    %2307 = vmatprep.subr.mxu0 0.0
    %2308 = vmatpush1.msra.mxu0 0.0
    %2309 = vmatprep.subr.mxu0 0.0
    %2310 = vmatpush1.msra.mxu0 0.0
    %2311 = vmatprep.subr.mxu0 0.0
    %2312 = vmatpush1.msra.mxu0 0.0
    %2313 = vmatprep.subr.mxu0 0.0
    %2314 = vmatpush1.msra.mxu0 0.0
    %2315 = vmatprep.subr.mxu0 0.0
    %2316 = vmatpush1.msra.mxu0 0.0
    %2317 = vmatprep.subr.mxu0 0.0
    %2318 = vmatpush1.msra.mxu0 0.0
    %2319 = vmatprep.subr.mxu0 0.0
    %2320 = vmatpush1.msra.mxu0 0.0
    %2321 = vmatprep.subr.mxu0 0.0
    %2322 = vmatpush1.msra.mxu0 0.0
    %2323 = vmatprep.subr.mxu0 0.0
    %2324 = vmatpush1.msra.mxu0 0.0
    %2325 = vmatprep.subr.mxu0 0.0
    %2326 = vmatpush1.msra.mxu0 0.0
    %2327 = vmatprep.subr.mxu0 0.0
    %2328 = vmatpush1.msra.mxu0 0.0
    %2329 = vmatprep.subr.mxu0 0.0
    %2330 = vmatpush1.msra.mxu0 0.0
    %2331 = vmatprep.subr.mxu0 0.0
    %2332 = vmatpush1.msra.mxu0 0.0
    %2333 = vmatprep.subr.mxu0 0.0
    %2334 = vmatpush1.msra.mxu0 0.0
    %2335 = vmatprep.subr.mxu0 0.0
    %2336 = vmatpush1.msra.mxu0 0.0
    %2337 = vmatprep.subr.mxu0 0.0
    %2338 = vmatpush1.msra.mxu0 0.0
    %2339 = vmatprep.subr.mxu0 0.0
    %2340 = vmatpush1.msra.mxu0 0.0
    %2341 = vmatprep.subr.mxu0 0.0
    %2342 = vmatpush1.msra.mxu0 0.0
    %2343 = vmatprep.subr.mxu0 0.0
    %2344 = vmatpush1.msra.mxu0 0.0
    %2345 = vmatprep.subr.mxu0 0.0
    %2346 = vmatpush1.msra.mxu0 0.0
    %2347 = vmatprep.mubr.f32.mxu0 0.0
    %2348 = vmatmul.mubr.f32.gmra.mrb[0].mxu0 %v1597
    %v2349 = vpop.f32.mrb[0].mxu0
    %v2350 = vadd.f32 0.0, %v2349
    %v2351 = vpop.f32.mrb[0].mxu0
    %2352 = vdwg.mxu0
    %2354 = vset.pattern.permute.xlu0 0
    %2355 = vperm.xlu0 %2354, %v2276
    %v2356 = vpop.permute.xlu0 %2355
    %v2358 = vmul.f32 %v2350, %v2356
    %v2359 = vlaneseq
    %v2360 = vshrl.u32 %v2359, 7
    %v2361 = vsub.s32 0, %v2360
    %v2362 = vrot.slane %v2358, %v2361
    %v2363 = vadd.f32 %v1251, %v2362
    %v2364 = vtanh.pop %v2363
    %v2366 = vsel %vm286, %v2364, 0
    %2368 = vmatprep.subr.mxu0 0.0
    %2369 = vmatpush1.msra.mxu0 %v1494
    %2370 = vmatprep.subr.mxu0 0.0
    %2371 = vmatpush1.msra.mxu0 %v1496
    %2372 = vmatprep.subr.mxu0 0.0
    %2373 = vmatpush1.msra.mxu0 %v1498
    %2374 = vmatprep.subr.mxu0 0.0
    %2375 = vmatpush1.msra.mxu0 %v1500
    %2376 = vmatprep.subr.mxu0 0.0
    %2377 = vmatpush1.msra.mxu0 0.0
    %2378 = vmatprep.subr.mxu0 0.0
    %2379 = vmatpush1.msra.mxu0 0.0
    %2380 = vmatprep.subr.mxu0 0.0
    %2381 = vmatpush1.msra.mxu0 0.0
    %2382 = vmatprep.subr.mxu0 0.0
    %2383 = vmatpush1.msra.mxu0 0.0
    %2384 = vmatprep.subr.mxu0 0.0
    %2385 = vmatpush1.msra.mxu0 0.0
    %2386 = vmatprep.subr.mxu0 0.0
    %2387 = vmatpush1.msra.mxu0 0.0
    %2388 = vmatprep.subr.mxu0 0.0
    %2389 = vmatpush1.msra.mxu0 0.0
    %2390 = vmatprep.subr.mxu0 0.0
    %2391 = vmatpush1.msra.mxu0 0.0
    %2392 = vmatprep.subr.mxu0 0.0
    %2393 = vmatpush1.msra.mxu0 0.0
    %2394 = vmatprep.subr.mxu0 0.0
    %2395 = vmatpush1.msra.mxu0 0.0
    %2396 = vmatprep.subr.mxu0 0.0
    %2397 = vmatpush1.msra.mxu0 0.0
    %2398 = vmatprep.subr.mxu0 0.0
    %2399 = vmatpush1.msra.mxu0 0.0
    %2400 = vmatprep.subr.mxu0 0.0
    %2401 = vmatpush1.msra.mxu0 0.0
    %2402 = vmatprep.subr.mxu0 0.0
    %2403 = vmatpush1.msra.mxu0 0.0
    %2404 = vmatprep.subr.mxu0 0.0
    %2405 = vmatpush1.msra.mxu0 0.0
    %2406 = vmatprep.subr.mxu0 0.0
    %2407 = vmatpush1.msra.mxu0 0.0
    %2408 = vmatprep.subr.mxu0 0.0
    %2409 = vmatpush1.msra.mxu0 0.0
    %2410 = vmatprep.subr.mxu0 0.0
    %2411 = vmatpush1.msra.mxu0 0.0
    %2412 = vmatprep.subr.mxu0 0.0
    %2413 = vmatpush1.msra.mxu0 0.0
    %2414 = vmatprep.subr.mxu0 0.0
    %2415 = vmatpush1.msra.mxu0 0.0
    %2416 = vmatprep.subr.mxu0 0.0
    %2417 = vmatpush1.msra.mxu0 0.0
    %2418 = vmatprep.subr.mxu0 0.0
    %2419 = vmatpush1.msra.mxu0 0.0
    %2420 = vmatprep.subr.mxu0 0.0
    %2421 = vmatpush1.msra.mxu0 0.0
    %2422 = vmatprep.subr.mxu0 0.0
    %2423 = vmatpush1.msra.mxu0 0.0
    %2424 = vmatprep.subr.mxu0 0.0
    %2425 = vmatpush1.msra.mxu0 0.0
    %2426 = vmatprep.subr.mxu0 0.0
    %2427 = vmatpush1.msra.mxu0 0.0
    %2428 = vmatprep.subr.mxu0 0.0
    %2429 = vmatpush1.msra.mxu0 0.0
    %2430 = vmatprep.subr.mxu0 0.0
    %2431 = vmatpush1.msra.mxu0 0.0
    %2432 = vmatprep.mubr.f32.mxu0 0.0
    %2433 = vmatmul.mubr.f32.gmra.mrb[0].mxu0 %v2366
    %v2434 = vpop.f32.mrb[0].mxu0
    %v2435 = vadd.f32 0.0, %v2434
    %v2436 = vpop.f32.mrb[0].mxu0
    %2437 = vdwg.mxu0
    %v2438 = vmul.f32 %v2435, 1.442695
    %v2439 = vpow.pop %v2438
    %v2440 = vsel %vm1580, %v2439, 0.0
    %v2441 = vrot.slane %v2440, 4
    %v2442 = vadd.f32 %v2440, %v2441
    %v2443 = vrot.slane %v2442, 2
    %v2444 = vadd.f32 %v2442, %v2443
    %v2445 = vrot.slane %v2444, 1
    %v2446 = vadd.f32 %v2444, %v2445
    %v2447 = vrcp.pop %v2446
    %2449 = vset.pattern.permute.xlu0 0
    %2450 = vperm.xlu0 %2449, %v2439
    %v2451 = vpop.permute.xlu0 %2450
    %v2453 = vmul.f32 %v2451, %v1324
    %2454 = vmatprep.subr.mxu0 0.0
    %2455 = vmatpush1.msra.mxu0 %v2453
    %2456 = vmatprep.subr.mxu0 0.0
    %2457 = vmatpush1.msra.mxu0 0.0
    %2458 = vmatprep.subr.mxu0 0.0
    %2459 = vmatpush1.msra.mxu0 0.0
    %2460 = vmatprep.subr.mxu0 0.0
    %2461 = vmatpush1.msra.mxu0 0.0
    %2462 = vmatprep.subr.mxu0 0.0
    %2463 = vmatpush1.msra.mxu0 0.0
    %2464 = vmatprep.subr.mxu0 0.0
    %2465 = vmatpush1.msra.mxu0 0.0
    %2466 = vmatprep.subr.mxu0 0.0
    %2467 = vmatpush1.msra.mxu0 0.0
    %2468 = vmatprep.subr.mxu0 0.0
    %2469 = vmatpush1.msra.mxu0 0.0
    %2470 = vmatprep.subr.mxu0 0.0
    %2471 = vmatpush1.msra.mxu0 0.0
    %2472 = vmatprep.subr.mxu0 0.0
    %2473 = vmatpush1.msra.mxu0 0.0
    %2474 = vmatprep.subr.mxu0 0.0
    %2475 = vmatpush1.msra.mxu0 0.0
    %2476 = vmatprep.subr.mxu0 0.0
    %2477 = vmatpush1.msra.mxu0 0.0
    %2478 = vmatprep.subr.mxu0 0.0
    %2479 = vmatpush1.msra.mxu0 0.0
    %2480 = vmatprep.subr.mxu0 0.0
    %2481 = vmatpush1.msra.mxu0 0.0
    %2482 = vmatprep.subr.mxu0 0.0
    %2483 = vmatpush1.msra.mxu0 0.0
    %2484 = vmatprep.subr.mxu0 0.0
    %2485 = vmatpush1.msra.mxu0 0.0
    %2486 = vmatprep.subr.mxu0 0.0
    %2487 = vmatpush1.msra.mxu0 0.0
    %2488 = vmatprep.subr.mxu0 0.0
    %2489 = vmatpush1.msra.mxu0 0.0
    %2490 = vmatprep.subr.mxu0 0.0
    %2491 = vmatpush1.msra.mxu0 0.0
    %2492 = vmatprep.subr.mxu0 0.0
    %2493 = vmatpush1.msra.mxu0 0.0
    %2494 = vmatprep.subr.mxu0 0.0
    %2495 = vmatpush1.msra.mxu0 0.0
    %2496 = vmatprep.subr.mxu0 0.0
    %2497 = vmatpush1.msra.mxu0 0.0
    %2498 = vmatprep.subr.mxu0 0.0
    %2499 = vmatpush1.msra.mxu0 0.0
    %2500 = vmatprep.subr.mxu0 0.0
    %2501 = vmatpush1.msra.mxu0 0.0
    %2502 = vmatprep.subr.mxu0 0.0
    %2503 = vmatpush1.msra.mxu0 0.0
    %2504 = vmatprep.subr.mxu0 0.0
    %2505 = vmatpush1.msra.mxu0 0.0
    %2506 = vmatprep.subr.mxu0 0.0
    %2507 = vmatpush1.msra.mxu0 0.0
    %2508 = vmatprep.subr.mxu0 0.0
    %2509 = vmatpush1.msra.mxu0 0.0
    %2510 = vmatprep.subr.mxu0 0.0
    %2511 = vmatpush1.msra.mxu0 0.0
    %2512 = vmatprep.subr.mxu0 0.0
    %2513 = vmatpush1.msra.mxu0 0.0
    %2514 = vmatprep.subr.mxu0 0.0
    %2515 = vmatpush1.msra.mxu0 0.0
    %2516 = vmatprep.subr.mxu0 0.0
    %2517 = vmatpush1.msra.mxu0 0.0
    %2518 = vmatprep.mubr.f32.mxu0 0.0
    %2519 = vmatmul.mubr.f32.gmra.mrb[0].mxu0 %v1597
    %v2520 = vpop.f32.mrb[0].mxu0
    %v2521 = vadd.f32 0.0, %v2520
    %v2522 = vpop.f32.mrb[0].mxu0
    %2523 = vdwg.mxu0
    %2525 = vset.pattern.permute.xlu0 0
    %2526 = vperm.xlu0 %2525, %v2447
    %v2527 = vpop.permute.xlu0 %2526
    %v2529 = vmul.f32 %v2521, %v2527
    %v2530 = vlaneseq
    %v2531 = vshrl.u32 %v2530, 7
    %v2532 = vsub.s32 0, %v2531
    %v2533 = vrot.slane %v2529, %v2532
    %v2534 = vadd.f32 %v1251, %v2533
    %v2535 = vtanh.pop %v2534
    %v2537 = vsel %vm286, %v2535, 0
    %2539 = vmatprep.subr.mxu0 0.0
    %2540 = vmatpush1.msra.mxu0 %v1494
    %2541 = vmatprep.subr.mxu0 0.0
    %2542 = vmatpush1.msra.mxu0 %v1496
    %2543 = vmatprep.subr.mxu0 0.0
    %2544 = vmatpush1.msra.mxu0 %v1498
    %2545 = vmatprep.subr.mxu0 0.0
    %2546 = vmatpush1.msra.mxu0 %v1500
    %2547 = vmatprep.subr.mxu0 0.0
    %2548 = vmatpush1.msra.mxu0 0.0
    %2549 = vmatprep.subr.mxu0 0.0
    %2550 = vmatpush1.msra.mxu0 0.0
    %2551 = vmatprep.subr.mxu0 0.0
    %2552 = vmatpush1.msra.mxu0 0.0
    %2553 = vmatprep.subr.mxu0 0.0
    %2554 = vmatpush1.msra.mxu0 0.0
    %2555 = vmatprep.subr.mxu0 0.0
    %2556 = vmatpush1.msra.mxu0 0.0
    %2557 = vmatprep.subr.mxu0 0.0
    %2558 = vmatpush1.msra.mxu0 0.0
    %2559 = vmatprep.subr.mxu0 0.0
    %2560 = vmatpush1.msra.mxu0 0.0
    %2561 = vmatprep.subr.mxu0 0.0
    %2562 = vmatpush1.msra.mxu0 0.0
    %2563 = vmatprep.subr.mxu0 0.0
    %2564 = vmatpush1.msra.mxu0 0.0
    %2565 = vmatprep.subr.mxu0 0.0
    %2566 = vmatpush1.msra.mxu0 0.0
    %2567 = vmatprep.subr.mxu0 0.0
    %2568 = vmatpush1.msra.mxu0 0.0
    %2569 = vmatprep.subr.mxu0 0.0
    %2570 = vmatpush1.msra.mxu0 0.0
    %2571 = vmatprep.subr.mxu0 0.0
    %2572 = vmatpush1.msra.mxu0 0.0
    %2573 = vmatprep.subr.mxu0 0.0
    %2574 = vmatpush1.msra.mxu0 0.0
    %2575 = vmatprep.subr.mxu0 0.0
    %2576 = vmatpush1.msra.mxu0 0.0
    %2577 = vmatprep.subr.mxu0 0.0
    %2578 = vmatpush1.msra.mxu0 0.0
    %2579 = vmatprep.subr.mxu0 0.0
    %2580 = vmatpush1.msra.mxu0 0.0
    %2581 = vmatprep.subr.mxu0 0.0
    %2582 = vmatpush1.msra.mxu0 0.0
    %2583 = vmatprep.subr.mxu0 0.0
    %2584 = vmatpush1.msra.mxu0 0.0
    %2585 = vmatprep.subr.mxu0 0.0
    %2586 = vmatpush1.msra.mxu0 0.0
    %2587 = vmatprep.subr.mxu0 0.0
    %2588 = vmatpush1.msra.mxu0 0.0
    %2589 = vmatprep.subr.mxu0 0.0
    %2590 = vmatpush1.msra.mxu0 0.0
    %2591 = vmatprep.subr.mxu0 0.0
    %2592 = vmatpush1.msra.mxu0 0.0
    %2593 = vmatprep.subr.mxu0 0.0
    %2594 = vmatpush1.msra.mxu0 0.0
    %2595 = vmatprep.subr.mxu0 0.0
    %2596 = vmatpush1.msra.mxu0 0.0
    %2597 = vmatprep.subr.mxu0 0.0
    %2598 = vmatpush1.msra.mxu0 0.0
    %2599 = vmatprep.subr.mxu0 0.0
    %2600 = vmatpush1.msra.mxu0 0.0
    %2601 = vmatprep.subr.mxu0 0.0
    %2602 = vmatpush1.msra.mxu0 0.0
    %2603 = vmatprep.mubr.f32.mxu0 0.0
    %2604 = vmatmul.mubr.f32.gmra.mrb[0].mxu0 %v2537
    %v2605 = vpop.f32.mrb[0].mxu0
    %v2606 = vadd.f32 0.0, %v2605
    %v2607 = vpop.f32.mrb[0].mxu0
    %2608 = vdwg.mxu0
    %v2609 = vmul.f32 %v2606, 1.442695
    %v2610 = vpow.pop %v2609
    %v2611 = vsel %vm1580, %v2610, 0.0
    %v2612 = vrot.slane %v2611, 4
    %v2613 = vadd.f32 %v2611, %v2612
    %v2614 = vrot.slane %v2613, 2
    %v2615 = vadd.f32 %v2613, %v2614
    %v2616 = vrot.slane %v2615, 1
    %v2617 = vadd.f32 %v2615, %v2616
    %v2618 = vrcp.pop %v2617
    %2620 = vset.pattern.permute.xlu0 0
    %2621 = vperm.xlu0 %2620, %v2610
    %v2622 = vpop.permute.xlu0 %2621
    %v2624 = vmul.f32 %v2622, %v1324
    %2625 = vmatprep.subr.mxu0 0.0
    %2626 = vmatpush1.msra.mxu0 %v2624
    %2627 = vmatprep.subr.mxu0 0.0
    %2628 = vmatpush1.msra.mxu0 0.0
    %2629 = vmatprep.subr.mxu0 0.0
    %2630 = vmatpush1.msra.mxu0 0.0
    %2631 = vmatprep.subr.mxu0 0.0
    %2632 = vmatpush1.msra.mxu0 0.0
    %2633 = vmatprep.subr.mxu0 0.0
    %2634 = vmatpush1.msra.mxu0 0.0
    %2635 = vmatprep.subr.mxu0 0.0
    %2636 = vmatpush1.msra.mxu0 0.0
    %2637 = vmatprep.subr.mxu0 0.0
    %2638 = vmatpush1.msra.mxu0 0.0
    %2639 = vmatprep.subr.mxu0 0.0
    %2640 = vmatpush1.msra.mxu0 0.0
    %2641 = vmatprep.subr.mxu0 0.0
    %2642 = vmatpush1.msra.mxu0 0.0
    %2643 = vmatprep.subr.mxu0 0.0
    %2644 = vmatpush1.msra.mxu0 0.0
    %2645 = vmatprep.subr.mxu0 0.0
    %2646 = vmatpush1.msra.mxu0 0.0
    %2647 = vmatprep.subr.mxu0 0.0
    %2648 = vmatpush1.msra.mxu0 0.0
    %2649 = vmatprep.subr.mxu0 0.0
    %2650 = vmatpush1.msra.mxu0 0.0
    %2651 = vmatprep.subr.mxu0 0.0
    %2652 = vmatpush1.msra.mxu0 0.0
    %2653 = vmatprep.subr.mxu0 0.0
    %2654 = vmatpush1.msra.mxu0 0.0
    %2655 = vmatprep.subr.mxu0 0.0
    %2656 = vmatpush1.msra.mxu0 0.0
    %2657 = vmatprep.subr.mxu0 0.0
    %2658 = vmatpush1.msra.mxu0 0.0
    %2659 = vmatprep.subr.mxu0 0.0
    %2660 = vmatpush1.msra.mxu0 0.0
    %2661 = vmatprep.subr.mxu0 0.0
    %2662 = vmatpush1.msra.mxu0 0.0
    %2663 = vmatprep.subr.mxu0 0.0
    %2664 = vmatpush1.msra.mxu0 0.0
    %2665 = vmatprep.subr.mxu0 0.0
    %2666 = vmatpush1.msra.mxu0 0.0
    %2667 = vmatprep.subr.mxu0 0.0
    %2668 = vmatpush1.msra.mxu0 0.0
    %2669 = vmatprep.subr.mxu0 0.0
    %2670 = vmatpush1.msra.mxu0 0.0
    %2671 = vmatprep.subr.mxu0 0.0
    %2672 = vmatpush1.msra.mxu0 0.0
    %2673 = vmatprep.subr.mxu0 0.0
    %2674 = vmatpush1.msra.mxu0 0.0
    %2675 = vmatprep.subr.mxu0 0.0
    %2676 = vmatpush1.msra.mxu0 0.0
    %2677 = vmatprep.subr.mxu0 0.0
    %2678 = vmatpush1.msra.mxu0 0.0
    %2679 = vmatprep.subr.mxu0 0.0
    %2680 = vmatpush1.msra.mxu0 0.0
    %2681 = vmatprep.subr.mxu0 0.0
    %2682 = vmatpush1.msra.mxu0 0.0
    %2683 = vmatprep.subr.mxu0 0.0
    %2684 = vmatpush1.msra.mxu0 0.0
    %2685 = vmatprep.subr.mxu0 0.0
    %2686 = vmatpush1.msra.mxu0 0.0
    %2687 = vmatprep.subr.mxu0 0.0
    %2688 = vmatpush1.msra.mxu0 0.0
    %2689 = vmatprep.mubr.f32.mxu0 0.0
    %2690 = vmatmul.mubr.f32.gmra.mrb[0].mxu0 %v1597
    %v2691 = vpop.f32.mrb[0].mxu0
    %v2692 = vadd.f32 0.0, %v2691
    %v2693 = vpop.f32.mrb[0].mxu0
    %2694 = vdwg.mxu0
    %2696 = vset.pattern.permute.xlu0 0
    %2697 = vperm.xlu0 %2696, %v2618
    %v2698 = vpop.permute.xlu0 %2697
    %v2700 = vmul.f32 %v2692, %v2698
    %v2701 = vlaneseq
    %v2702 = vshrl.u32 %v2701, 7
    %v2703 = vsub.s32 0, %v2702
    %v2704 = vrot.slane %v2700, %v2703
    %v2705 = vadd.f32 %v1251, %v2704
    %v2706 = vtanh.pop %v2705
    %v2708 = vsel %vm286, %v2706, 0
    %2710 = vmatprep.subr.mxu0 0.0
    %2711 = vmatpush1.msra.mxu0 %v1494
    %2712 = vmatprep.subr.mxu0 0.0
    %2713 = vmatpush1.msra.mxu0 %v1496
    %2714 = vmatprep.subr.mxu0 0.0
    %2715 = vmatpush1.msra.mxu0 %v1498
    %2716 = vmatprep.subr.mxu0 0.0
    %2717 = vmatpush1.msra.mxu0 %v1500
    %2718 = vmatprep.subr.mxu0 0.0
    %2719 = vmatpush1.msra.mxu0 0.0
    %2720 = vmatprep.subr.mxu0 0.0
    %2721 = vmatpush1.msra.mxu0 0.0
    %2722 = vmatprep.subr.mxu0 0.0
    %2723 = vmatpush1.msra.mxu0 0.0
    %2724 = vmatprep.subr.mxu0 0.0
    %2725 = vmatpush1.msra.mxu0 0.0
    %2726 = vmatprep.subr.mxu0 0.0
    %2727 = vmatpush1.msra.mxu0 0.0
    %2728 = vmatprep.subr.mxu0 0.0
    %2729 = vmatpush1.msra.mxu0 0.0
    %2730 = vmatprep.subr.mxu0 0.0
    %2731 = vmatpush1.msra.mxu0 0.0
    %2732 = vmatprep.subr.mxu0 0.0
    %2733 = vmatpush1.msra.mxu0 0.0
    %2734 = vmatprep.subr.mxu0 0.0
    %2735 = vmatpush1.msra.mxu0 0.0
    %2736 = vmatprep.subr.mxu0 0.0
    %2737 = vmatpush1.msra.mxu0 0.0
    %2738 = vmatprep.subr.mxu0 0.0
    %2739 = vmatpush1.msra.mxu0 0.0
    %2740 = vmatprep.subr.mxu0 0.0
    %2741 = vmatpush1.msra.mxu0 0.0
    %2742 = vmatprep.subr.mxu0 0.0
    %2743 = vmatpush1.msra.mxu0 0.0
    %2744 = vmatprep.subr.mxu0 0.0
    %2745 = vmatpush1.msra.mxu0 0.0
    %2746 = vmatprep.subr.mxu0 0.0
    %2747 = vmatpush1.msra.mxu0 0.0
    %2748 = vmatprep.subr.mxu0 0.0
    %2749 = vmatpush1.msra.mxu0 0.0
    %2750 = vmatprep.subr.mxu0 0.0
    %2751 = vmatpush1.msra.mxu0 0.0
    %2752 = vmatprep.subr.mxu0 0.0
    %2753 = vmatpush1.msra.mxu0 0.0
    %2754 = vmatprep.subr.mxu0 0.0
    %2755 = vmatpush1.msra.mxu0 0.0
    %2756 = vmatprep.subr.mxu0 0.0
    %2757 = vmatpush1.msra.mxu0 0.0
    %2758 = vmatprep.subr.mxu0 0.0
    %2759 = vmatpush1.msra.mxu0 0.0
    %2760 = vmatprep.subr.mxu0 0.0
    %2761 = vmatpush1.msra.mxu0 0.0
    %2762 = vmatprep.subr.mxu0 0.0
    %2763 = vmatpush1.msra.mxu0 0.0
    %2764 = vmatprep.subr.mxu0 0.0
    %2765 = vmatpush1.msra.mxu0 0.0
    %2766 = vmatprep.subr.mxu0 0.0
    %2767 = vmatpush1.msra.mxu0 0.0
    %2768 = vmatprep.subr.mxu0 0.0
    %2769 = vmatpush1.msra.mxu0 0.0
    %2770 = vmatprep.subr.mxu0 0.0
    %2771 = vmatpush1.msra.mxu0 0.0
    %2772 = vmatprep.subr.mxu0 0.0
    %2773 = vmatpush1.msra.mxu0 0.0
    %2774 = vmatprep.mubr.f32.mxu0 0.0
    %2775 = vmatmul.mubr.f32.gmra.mrb[0].mxu0 %v2708
    %v2776 = vpop.f32.mrb[0].mxu0
    %v2777 = vadd.f32 0.0, %v2776
    %v2778 = vpop.f32.mrb[0].mxu0
    %2779 = vdwg.mxu0
    %v2780 = vmul.f32 %v2777, 1.442695
    %v2781 = vpow.pop %v2780
    %v2782 = vsel %vm1580, %v2781, 0.0
    %v2783 = vrot.slane %v2782, 4
    %v2784 = vadd.f32 %v2782, %v2783
    %v2785 = vrot.slane %v2784, 2
    %v2786 = vadd.f32 %v2784, %v2785
    %v2787 = vrot.slane %v2786, 1
    %v2788 = vadd.f32 %v2786, %v2787
    %v2789 = vrcp.pop %v2788
    %2791 = vset.pattern.permute.xlu0 0
    %2792 = vperm.xlu0 %2791, %v2781
    %v2793 = vpop.permute.xlu0 %2792
    %v2795 = vmul.f32 %v2793, %v1324
    %2796 = vmatprep.subr.mxu0 0.0
    %2797 = vmatpush1.msra.mxu0 %v2795
    %2798 = vmatprep.subr.mxu0 0.0
    %2799 = vmatpush1.msra.mxu0 0.0
    %2800 = vmatprep.subr.mxu0 0.0
    %2801 = vmatpush1.msra.mxu0 0.0
    %2802 = vmatprep.subr.mxu0 0.0
    %2803 = vmatpush1.msra.mxu0 0.0
    %2804 = vmatprep.subr.mxu0 0.0
    %2805 = vmatpush1.msra.mxu0 0.0
    %2806 = vmatprep.subr.mxu0 0.0
    %2807 = vmatpush1.msra.mxu0 0.0
    %2808 = vmatprep.subr.mxu0 0.0
    %2809 = vmatpush1.msra.mxu0 0.0
    %2810 = vmatprep.subr.mxu0 0.0
    %2811 = vmatpush1.msra.mxu0 0.0
    %2812 = vmatprep.subr.mxu0 0.0
    %2813 = vmatpush1.msra.mxu0 0.0
    %2814 = vmatprep.subr.mxu0 0.0
    %2815 = vmatpush1.msra.mxu0 0.0
    %2816 = vmatprep.subr.mxu0 0.0
    %2817 = vmatpush1.msra.mxu0 0.0
    %2818 = vmatprep.subr.mxu0 0.0
    %2819 = vmatpush1.msra.mxu0 0.0
    %2820 = vmatprep.subr.mxu0 0.0
    %2821 = vmatpush1.msra.mxu0 0.0
    %2822 = vmatprep.subr.mxu0 0.0
    %2823 = vmatpush1.msra.mxu0 0.0
    %2824 = vmatprep.subr.mxu0 0.0
    %2825 = vmatpush1.msra.mxu0 0.0
    %2826 = vmatprep.subr.mxu0 0.0
    %2827 = vmatpush1.msra.mxu0 0.0
    %2828 = vmatprep.subr.mxu0 0.0
    %2829 = vmatpush1.msra.mxu0 0.0
    %2830 = vmatprep.subr.mxu0 0.0
    %2831 = vmatpush1.msra.mxu0 0.0
    %2832 = vmatprep.subr.mxu0 0.0
    %2833 = vmatpush1.msra.mxu0 0.0
    %2834 = vmatprep.subr.mxu0 0.0
    %2835 = vmatpush1.msra.mxu0 0.0
    %2836 = vmatprep.subr.mxu0 0.0
    %2837 = vmatpush1.msra.mxu0 0.0
    %2838 = vmatprep.subr.mxu0 0.0
    %2839 = vmatpush1.msra.mxu0 0.0
    %2840 = vmatprep.subr.mxu0 0.0
    %2841 = vmatpush1.msra.mxu0 0.0
    %2842 = vmatprep.subr.mxu0 0.0
    %2843 = vmatpush1.msra.mxu0 0.0
    %2844 = vmatprep.subr.mxu0 0.0
    %2845 = vmatpush1.msra.mxu0 0.0
    %2846 = vmatprep.subr.mxu0 0.0
    %2847 = vmatpush1.msra.mxu0 0.0
    %2848 = vmatprep.subr.mxu0 0.0
    %2849 = vmatpush1.msra.mxu0 0.0
    %2850 = vmatprep.subr.mxu0 0.0
    %2851 = vmatpush1.msra.mxu0 0.0
    %2852 = vmatprep.subr.mxu0 0.0
    %2853 = vmatpush1.msra.mxu0 0.0
    %2854 = vmatprep.subr.mxu0 0.0
    %2855 = vmatpush1.msra.mxu0 0.0
    %2856 = vmatprep.subr.mxu0 0.0
    %2857 = vmatpush1.msra.mxu0 0.0
    %2858 = vmatprep.subr.mxu0 0.0
    %2859 = vmatpush1.msra.mxu0 0.0
    %2860 = vmatprep.mubr.f32.mxu0 0.0
    %2861 = vmatmul.mubr.f32.gmra.mrb[0].mxu0 %v1597
    %v2862 = vpop.f32.mrb[0].mxu0
    %v2863 = vadd.f32 0.0, %v2862
    %v2864 = vpop.f32.mrb[0].mxu0
    %2865 = vdwg.mxu0
    %2867 = vset.pattern.permute.xlu0 0
    %2868 = vperm.xlu0 %2867, %v2789
    %v2869 = vpop.permute.xlu0 %2868
    %v2871 = vmul.f32 %v2863, %v2869
    %v2872 = vlaneseq
    %v2873 = vshrl.u32 %v2872, 7
    %v2874 = vsub.s32 0, %v2873
    %v2875 = vrot.slane %v2871, %v2874
    %v2876 = vadd.f32 %v1251, %v2875
    %v2877 = vtanh.pop %v2876
    %v2879 = vsel %vm286, %v2877, 0
    %2881 = vmatprep.subr.mxu0 0.0
    %2882 = vmatpush1.msra.mxu0 %v1494
    %2883 = vmatprep.subr.mxu0 0.0
    %2884 = vmatpush1.msra.mxu0 %v1496
    %2885 = vmatprep.subr.mxu0 0.0
    %2886 = vmatpush1.msra.mxu0 %v1498
    %2887 = vmatprep.subr.mxu0 0.0
    %2888 = vmatpush1.msra.mxu0 %v1500
    %2889 = vmatprep.subr.mxu0 0.0
    %2890 = vmatpush1.msra.mxu0 0.0
    %2891 = vmatprep.subr.mxu0 0.0
    %2892 = vmatpush1.msra.mxu0 0.0
    %2893 = vmatprep.subr.mxu0 0.0
    %2894 = vmatpush1.msra.mxu0 0.0
    %2895 = vmatprep.subr.mxu0 0.0
    %2896 = vmatpush1.msra.mxu0 0.0
    %2897 = vmatprep.subr.mxu0 0.0
    %2898 = vmatpush1.msra.mxu0 0.0
    %2899 = vmatprep.subr.mxu0 0.0
    %2900 = vmatpush1.msra.mxu0 0.0
    %2901 = vmatprep.subr.mxu0 0.0
    %2902 = vmatpush1.msra.mxu0 0.0
    %2903 = vmatprep.subr.mxu0 0.0
    %2904 = vmatpush1.msra.mxu0 0.0
    %2905 = vmatprep.subr.mxu0 0.0
    %2906 = vmatpush1.msra.mxu0 0.0
    %2907 = vmatprep.subr.mxu0 0.0
    %2908 = vmatpush1.msra.mxu0 0.0
    %2909 = vmatprep.subr.mxu0 0.0
    %2910 = vmatpush1.msra.mxu0 0.0
    %2911 = vmatprep.subr.mxu0 0.0
    %2912 = vmatpush1.msra.mxu0 0.0
    %2913 = vmatprep.subr.mxu0 0.0
    %2914 = vmatpush1.msra.mxu0 0.0
    %2915 = vmatprep.subr.mxu0 0.0
    %2916 = vmatpush1.msra.mxu0 0.0
    %2917 = vmatprep.subr.mxu0 0.0
    %2918 = vmatpush1.msra.mxu0 0.0
    %2919 = vmatprep.subr.mxu0 0.0
    %2920 = vmatpush1.msra.mxu0 0.0
    %2921 = vmatprep.subr.mxu0 0.0
    %2922 = vmatpush1.msra.mxu0 0.0
    %2923 = vmatprep.subr.mxu0 0.0
    %2924 = vmatpush1.msra.mxu0 0.0
    %2925 = vmatprep.subr.mxu0 0.0
    %2926 = vmatpush1.msra.mxu0 0.0
    %2927 = vmatprep.subr.mxu0 0.0
    %2928 = vmatpush1.msra.mxu0 0.0
    %2929 = vmatprep.subr.mxu0 0.0
    %2930 = vmatpush1.msra.mxu0 0.0
    %2931 = vmatprep.subr.mxu0 0.0
    %2932 = vmatpush1.msra.mxu0 0.0
    %2933 = vmatprep.subr.mxu0 0.0
    %2934 = vmatpush1.msra.mxu0 0.0
    %2935 = vmatprep.subr.mxu0 0.0
    %2936 = vmatpush1.msra.mxu0 0.0
    %2937 = vmatprep.subr.mxu0 0.0
    %2938 = vmatpush1.msra.mxu0 0.0
    %2939 = vmatprep.subr.mxu0 0.0
    %2940 = vmatpush1.msra.mxu0 0.0
    %2941 = vmatprep.subr.mxu0 0.0
    %2942 = vmatpush1.msra.mxu0 0.0
    %2943 = vmatprep.subr.mxu0 0.0
    %2944 = vmatpush1.msra.mxu0 0.0
    %2945 = vmatprep.mubr.f32.mxu0 0.0
    %2946 = vmatmul.mubr.f32.gmra.mrb[0].mxu0 %v2879
    %v2947 = vpop.f32.mrb[0].mxu0
    %v2948 = vadd.f32 0.0, %v2947
    %v2949 = vpop.f32.mrb[0].mxu0
    %2950 = vdwg.mxu0
    %v2951 = vmul.f32 %v2948, 1.442695
    %v2952 = vpow.pop %v2951
    %v2953 = vsel %vm1580, %v2952, 0.0
    %v2954 = vrot.slane %v2953, 4
    %v2955 = vadd.f32 %v2953, %v2954
    %v2956 = vrot.slane %v2955, 2
    %v2957 = vadd.f32 %v2955, %v2956
    %v2958 = vrot.slane %v2957, 1
    %v2959 = vadd.f32 %v2957, %v2958
    %v2960 = vrcp.pop %v2959
    %2962 = vset.pattern.permute.xlu0 0
    %2963 = vperm.xlu0 %2962, %v2952
    %v2964 = vpop.permute.xlu0 %2963
    %v2966 = vmul.f32 %v2964, %v1324
    %2967 = vmatprep.subr.mxu0 0.0
    %2968 = vmatpush1.msra.mxu0 %v2966
    %2969 = vmatprep.subr.mxu0 0.0
    %2970 = vmatpush1.msra.mxu0 0.0
    %2971 = vmatprep.subr.mxu0 0.0
    %2972 = vmatpush1.msra.mxu0 0.0
    %2973 = vmatprep.subr.mxu0 0.0
    %2974 = vmatpush1.msra.mxu0 0.0
    %2975 = vmatprep.subr.mxu0 0.0
    %2976 = vmatpush1.msra.mxu0 0.0
    %2977 = vmatprep.subr.mxu0 0.0
    %2978 = vmatpush1.msra.mxu0 0.0
    %2979 = vmatprep.subr.mxu0 0.0
    %2980 = vmatpush1.msra.mxu0 0.0
    %2981 = vmatprep.subr.mxu0 0.0
    %2982 = vmatpush1.msra.mxu0 0.0
    %2983 = vmatprep.subr.mxu0 0.0
    %2984 = vmatpush1.msra.mxu0 0.0
    %2985 = vmatprep.subr.mxu0 0.0
    %2986 = vmatpush1.msra.mxu0 0.0
    %2987 = vmatprep.subr.mxu0 0.0
    %2988 = vmatpush1.msra.mxu0 0.0
    %2989 = vmatprep.subr.mxu0 0.0
    %2990 = vmatpush1.msra.mxu0 0.0
    %2991 = vmatprep.subr.mxu0 0.0
    %2992 = vmatpush1.msra.mxu0 0.0
    %2993 = vmatprep.subr.mxu0 0.0
    %2994 = vmatpush1.msra.mxu0 0.0
    %2995 = vmatprep.subr.mxu0 0.0
    %2996 = vmatpush1.msra.mxu0 0.0
    %2997 = vmatprep.subr.mxu0 0.0
    %2998 = vmatpush1.msra.mxu0 0.0
    %2999 = vmatprep.subr.mxu0 0.0
    %3000 = vmatpush1.msra.mxu0 0.0
    %3001 = vmatprep.subr.mxu0 0.0
    %3002 = vmatpush1.msra.mxu0 0.0
    %3003 = vmatprep.subr.mxu0 0.0
    %3004 = vmatpush1.msra.mxu0 0.0
    %3005 = vmatprep.subr.mxu0 0.0
    %3006 = vmatpush1.msra.mxu0 0.0
    %3007 = vmatprep.subr.mxu0 0.0
    %3008 = vmatpush1.msra.mxu0 0.0
    %3009 = vmatprep.subr.mxu0 0.0
    %3010 = vmatpush1.msra.mxu0 0.0
    %3011 = vmatprep.subr.mxu0 0.0
    %3012 = vmatpush1.msra.mxu0 0.0
    %3013 = vmatprep.subr.mxu0 0.0
    %3014 = vmatpush1.msra.mxu0 0.0
    %3015 = vmatprep.subr.mxu0 0.0
    %3016 = vmatpush1.msra.mxu0 0.0
    %3017 = vmatprep.subr.mxu0 0.0
    %3018 = vmatpush1.msra.mxu0 0.0
    %3019 = vmatprep.subr.mxu0 0.0
    %3020 = vmatpush1.msra.mxu0 0.0
    %3021 = vmatprep.subr.mxu0 0.0
    %3022 = vmatpush1.msra.mxu0 0.0
    %3023 = vmatprep.subr.mxu0 0.0
    %3024 = vmatpush1.msra.mxu0 0.0
    %3025 = vmatprep.subr.mxu0 0.0
    %3026 = vmatpush1.msra.mxu0 0.0
    %3027 = vmatprep.subr.mxu0 0.0
    %3028 = vmatpush1.msra.mxu0 0.0
    %3029 = vmatprep.subr.mxu0 0.0
    %3030 = vmatpush1.msra.mxu0 0.0
    %3031 = vmatprep.mubr.f32.mxu0 0.0
    %3032 = vmatmul.mubr.f32.gmra.mrb[0].mxu0 %v1597
    %v3033 = vpop.f32.mrb[0].mxu0
    %v3034 = vadd.f32 0.0, %v3033
    %v3035 = vpop.f32.mrb[0].mxu0
    %3036 = vdwg.mxu0
    %3038 = vset.pattern.permute.xlu0 0
    %3039 = vperm.xlu0 %3038, %v2960
    %v3040 = vpop.permute.xlu0 %3039
    %v3042 = vmul.f32 %v3034, %v3040
    %v3043 = vlaneseq
    %v3044 = vshrl.u32 %v3043, 7
    %v3045 = vsub.s32 0, %v3044
    %v3046 = vrot.slane %v3042, %v3045
    %v3047 = vadd.f32 %v1251, %v3046
    %v3048 = vtanh.pop %v3047
    %v3050 = vsel %vm286, %v3048, 0
    %3052 = vmatprep.subr.mxu0 0.0
    %3053 = vmatpush1.msra.mxu0 %v1494
    %3054 = vmatprep.subr.mxu0 0.0
    %3055 = vmatpush1.msra.mxu0 %v1496
    %3056 = vmatprep.subr.mxu0 0.0
    %3057 = vmatpush1.msra.mxu0 %v1498
    %3058 = vmatprep.subr.mxu0 0.0
    %3059 = vmatpush1.msra.mxu0 %v1500
    %3060 = vmatprep.subr.mxu0 0.0
    %3061 = vmatpush1.msra.mxu0 0.0
    %3062 = vmatprep.subr.mxu0 0.0
    %3063 = vmatpush1.msra.mxu0 0.0
    %3064 = vmatprep.subr.mxu0 0.0
    %3065 = vmatpush1.msra.mxu0 0.0
    %3066 = vmatprep.subr.mxu0 0.0
    %3067 = vmatpush1.msra.mxu0 0.0
    %3068 = vmatprep.subr.mxu0 0.0
    %3069 = vmatpush1.msra.mxu0 0.0
    %3070 = vmatprep.subr.mxu0 0.0
    %3071 = vmatpush1.msra.mxu0 0.0
    %3072 = vmatprep.subr.mxu0 0.0
    %3073 = vmatpush1.msra.mxu0 0.0
    %3074 = vmatprep.subr.mxu0 0.0
    %3075 = vmatpush1.msra.mxu0 0.0
    %3076 = vmatprep.subr.mxu0 0.0
    %3077 = vmatpush1.msra.mxu0 0.0
    %3078 = vmatprep.subr.mxu0 0.0
    %3079 = vmatpush1.msra.mxu0 0.0
    %3080 = vmatprep.subr.mxu0 0.0
    %3081 = vmatpush1.msra.mxu0 0.0
    %3082 = vmatprep.subr.mxu0 0.0
    %3083 = vmatpush1.msra.mxu0 0.0
    %3084 = vmatprep.subr.mxu0 0.0
    %3085 = vmatpush1.msra.mxu0 0.0
    %3086 = vmatprep.subr.mxu0 0.0
    %3087 = vmatpush1.msra.mxu0 0.0
    %3088 = vmatprep.subr.mxu0 0.0
    %3089 = vmatpush1.msra.mxu0 0.0
    %3090 = vmatprep.subr.mxu0 0.0
    %3091 = vmatpush1.msra.mxu0 0.0
    %3092 = vmatprep.subr.mxu0 0.0
    %3093 = vmatpush1.msra.mxu0 0.0
    %3094 = vmatprep.subr.mxu0 0.0
    %3095 = vmatpush1.msra.mxu0 0.0
    %3096 = vmatprep.subr.mxu0 0.0
    %3097 = vmatpush1.msra.mxu0 0.0
    %3098 = vmatprep.subr.mxu0 0.0
    %3099 = vmatpush1.msra.mxu0 0.0
    %3100 = vmatprep.subr.mxu0 0.0
    %3101 = vmatpush1.msra.mxu0 0.0
    %3102 = vmatprep.subr.mxu0 0.0
    %3103 = vmatpush1.msra.mxu0 0.0
    %3104 = vmatprep.subr.mxu0 0.0
    %3105 = vmatpush1.msra.mxu0 0.0
    %3106 = vmatprep.subr.mxu0 0.0
    %3107 = vmatpush1.msra.mxu0 0.0
    %3108 = vmatprep.subr.mxu0 0.0
    %3109 = vmatpush1.msra.mxu0 0.0
    %3110 = vmatprep.subr.mxu0 0.0
    %3111 = vmatpush1.msra.mxu0 0.0
    %3112 = vmatprep.subr.mxu0 0.0
    %3113 = vmatpush1.msra.mxu0 0.0
    %3114 = vmatprep.subr.mxu0 0.0
    %3115 = vmatpush1.msra.mxu0 0.0
    %3116 = vmatprep.mubr.f32.mxu0 0.0
    %3117 = vmatmul.mubr.f32.gmra.mrb[0].mxu0 %v3050
    %v3118 = vpop.f32.mrb[0].mxu0
    %v3119 = vadd.f32 0.0, %v3118
    %v3120 = vpop.f32.mrb[0].mxu0
    %3121 = vdwg.mxu0
    %v3122 = vmul.f32 %v3119, 1.442695
    %v3123 = vpow.pop %v3122
    %v3124 = vsel %vm1580, %v3123, 0.0
    %v3125 = vrot.slane %v3124, 4
    %v3126 = vadd.f32 %v3124, %v3125
    %v3127 = vrot.slane %v3126, 2
    %v3128 = vadd.f32 %v3126, %v3127
    %v3129 = vrot.slane %v3128, 1
    %v3130 = vadd.f32 %v3128, %v3129
    %v3131 = vrcp.pop %v3130
    %3133 = vset.pattern.permute.xlu0 0
    %3134 = vperm.xlu0 %3133, %v3123
    %v3135 = vpop.permute.xlu0 %3134
    %v3137 = vmul.f32 %v3135, %v1409
    %3138 = vmatprep.subr.mxu0 0.0
    %3139 = vmatpush1.msra.mxu0 %v3137
    %3140 = vmatprep.subr.mxu0 0.0
    %3141 = vmatpush1.msra.mxu0 0.0
    %3142 = vmatprep.subr.mxu0 0.0
    %3143 = vmatpush1.msra.mxu0 0.0
    %3144 = vmatprep.subr.mxu0 0.0
    %3145 = vmatpush1.msra.mxu0 0.0
    %3146 = vmatprep.subr.mxu0 0.0
    %3147 = vmatpush1.msra.mxu0 0.0
    %3148 = vmatprep.subr.mxu0 0.0
    %3149 = vmatpush1.msra.mxu0 0.0
    %3150 = vmatprep.subr.mxu0 0.0
    %3151 = vmatpush1.msra.mxu0 0.0
    %3152 = vmatprep.subr.mxu0 0.0
    %3153 = vmatpush1.msra.mxu0 0.0
    %3154 = vmatprep.subr.mxu0 0.0
    %3155 = vmatpush1.msra.mxu0 0.0
    %3156 = vmatprep.subr.mxu0 0.0
    %3157 = vmatpush1.msra.mxu0 0.0
    %3158 = vmatprep.subr.mxu0 0.0
    %3159 = vmatpush1.msra.mxu0 0.0
    %3160 = vmatprep.subr.mxu0 0.0
    %3161 = vmatpush1.msra.mxu0 0.0
    %3162 = vmatprep.subr.mxu0 0.0
    %3163 = vmatpush1.msra.mxu0 0.0
    %3164 = vmatprep.subr.mxu0 0.0
    %3165 = vmatpush1.msra.mxu0 0.0
    %3166 = vmatprep.subr.mxu0 0.0
    %3167 = vmatpush1.msra.mxu0 0.0
    %3168 = vmatprep.subr.mxu0 0.0
    %3169 = vmatpush1.msra.mxu0 0.0
    %3170 = vmatprep.subr.mxu0 0.0
    %3171 = vmatpush1.msra.mxu0 0.0
    %3172 = vmatprep.subr.mxu0 0.0
    %3173 = vmatpush1.msra.mxu0 0.0
    %3174 = vmatprep.subr.mxu0 0.0
    %3175 = vmatpush1.msra.mxu0 0.0
    %3176 = vmatprep.subr.mxu0 0.0
    %3177 = vmatpush1.msra.mxu0 0.0
    %3178 = vmatprep.subr.mxu0 0.0
    %3179 = vmatpush1.msra.mxu0 0.0
    %3180 = vmatprep.subr.mxu0 0.0
    %3181 = vmatpush1.msra.mxu0 0.0
    %3182 = vmatprep.subr.mxu0 0.0
    %3183 = vmatpush1.msra.mxu0 0.0
    %3184 = vmatprep.subr.mxu0 0.0
    %3185 = vmatpush1.msra.mxu0 0.0
    %3186 = vmatprep.subr.mxu0 0.0
    %3187 = vmatpush1.msra.mxu0 0.0
    %3188 = vmatprep.subr.mxu0 0.0
    %3189 = vmatpush1.msra.mxu0 0.0
    %3190 = vmatprep.subr.mxu0 0.0
    %3191 = vmatpush1.msra.mxu0 0.0
    %3192 = vmatprep.subr.mxu0 0.0
    %3193 = vmatpush1.msra.mxu0 0.0
    %3194 = vmatprep.subr.mxu0 0.0
    %3195 = vmatpush1.msra.mxu0 0.0
    %3196 = vmatprep.subr.mxu0 0.0
    %3197 = vmatpush1.msra.mxu0 0.0
    %3198 = vmatprep.subr.mxu0 0.0
    %3199 = vmatpush1.msra.mxu0 0.0
    %3200 = vmatprep.subr.mxu0 0.0
    %3201 = vmatpush1.msra.mxu0 0.0
    %3202 = vmatprep.mubr.f32.mxu0 0.0
    %3203 = vmatmul.mubr.f32.gmra.mrb[0].mxu0 %v1597
    %v3204 = vpop.f32.mrb[0].mxu0
    %v3205 = vadd.f32 0.0, %v3204
    %v3206 = vpop.f32.mrb[0].mxu0
    %3207 = vdwg.mxu0
    %3209 = vset.pattern.permute.xlu0 0
    %3210 = vperm.xlu0 %3209, %v3131
    %v3211 = vpop.permute.xlu0 %3210
    %v3213 = vmul.f32 %v3205, %v3211
    %v3214 = vmax.f32 %v3213, 0.0
    %3215 = vrot.lane.b32.xlu0 %v38, 31
    %v3216 = vpop.permute.xlu0 %3215
    %3217 = vrot.lane.b32.xlu0 %v39, 31
    %v3218 = vpop.permute.xlu0 %3217
    %3219 = vrot.lane.b32.xlu0 %v40, 31
    %v3220 = vpop.permute.xlu0 %3219
    %3221 = vrot.lane.b32.xlu0 %v41, 31
    %v3222 = vpop.permute.xlu0 %3221
    %3228 = vrot.lane.b32.xlu0 %v29, 32
    %v3229 = vpop.permute.xlu0 %3228
    %v3232 = vsel %vm286, %v3214, 0
    %3234 = vmatprep.subr.mxu0 0.0
    %3235 = vmatpush1.msra.mxu0 %v3216
    %3236 = vmatprep.subr.mxu0 0.0
    %3237 = vmatpush1.msra.mxu0 %v3218
    %3238 = vmatprep.subr.mxu0 0.0
    %3239 = vmatpush1.msra.mxu0 %v3220
    %3240 = vmatprep.subr.mxu0 0.0
    %3241 = vmatpush1.msra.mxu0 %v3222
    %3242 = vmatprep.subr.mxu0 0.0
    %3243 = vmatpush1.msra.mxu0 0.0
    %3244 = vmatprep.subr.mxu0 0.0
    %3245 = vmatpush1.msra.mxu0 0.0
    %3246 = vmatprep.subr.mxu0 0.0
    %3247 = vmatpush1.msra.mxu0 0.0
    %3248 = vmatprep.subr.mxu0 0.0
    %3249 = vmatpush1.msra.mxu0 0.0
    %3250 = vmatprep.subr.mxu0 0.0
    %3251 = vmatpush1.msra.mxu0 0.0
    %3252 = vmatprep.subr.mxu0 0.0
    %3253 = vmatpush1.msra.mxu0 0.0
    %3254 = vmatprep.subr.mxu0 0.0
    %3255 = vmatpush1.msra.mxu0 0.0
    %3256 = vmatprep.subr.mxu0 0.0
    %3257 = vmatpush1.msra.mxu0 0.0
    %3258 = vmatprep.subr.mxu0 0.0
    %3259 = vmatpush1.msra.mxu0 0.0
    %3260 = vmatprep.subr.mxu0 0.0
    %3261 = vmatpush1.msra.mxu0 0.0
    %3262 = vmatprep.subr.mxu0 0.0
    %3263 = vmatpush1.msra.mxu0 0.0
    %3264 = vmatprep.subr.mxu0 0.0
    %3265 = vmatpush1.msra.mxu0 0.0
    %3266 = vmatprep.subr.mxu0 0.0
    %3267 = vmatpush1.msra.mxu0 0.0
    %3268 = vmatprep.subr.mxu0 0.0
    %3269 = vmatpush1.msra.mxu0 0.0
    %3270 = vmatprep.subr.mxu0 0.0
    %3271 = vmatpush1.msra.mxu0 0.0
    %3272 = vmatprep.subr.mxu0 0.0
    %3273 = vmatpush1.msra.mxu0 0.0
    %3274 = vmatprep.subr.mxu0 0.0
    %3275 = vmatpush1.msra.mxu0 0.0
    %3276 = vmatprep.subr.mxu0 0.0
    %3277 = vmatpush1.msra.mxu0 0.0
    %3278 = vmatprep.subr.mxu0 0.0
    %3279 = vmatpush1.msra.mxu0 0.0
    %3280 = vmatprep.subr.mxu0 0.0
    %3281 = vmatpush1.msra.mxu0 0.0
    %3282 = vmatprep.subr.mxu0 0.0
    %3283 = vmatpush1.msra.mxu0 0.0
    %3284 = vmatprep.subr.mxu0 0.0
    %3285 = vmatpush1.msra.mxu0 0.0
    %3286 = vmatprep.subr.mxu0 0.0
    %3287 = vmatpush1.msra.mxu0 0.0
    %3288 = vmatprep.subr.mxu0 0.0
    %3289 = vmatpush1.msra.mxu0 0.0
    %3290 = vmatprep.subr.mxu0 0.0
    %3291 = vmatpush1.msra.mxu0 0.0
    %3292 = vmatprep.subr.mxu0 0.0
    %3293 = vmatpush1.msra.mxu0 0.0
    %3294 = vmatprep.subr.mxu0 0.0
    %3295 = vmatpush1.msra.mxu0 0.0
    %3296 = vmatprep.subr.mxu0 0.0
    %3297 = vmatpush1.msra.mxu0 0.0
    %3298 = vmatprep.mubr.f32.mxu0 0.0
    %3299 = vmatmul.mubr.f32.gmra.mrb[0].mxu0 %v3232
    %v3300 = vpop.f32.mrb[0].mxu0
    %v3301 = vadd.f32 %v3229, %v3300
    %v3302 = vpop.f32.mrb[0].mxu0
    %3303 = vdwg.mxu0
    %vm3304 = vcmask 0
    %3305 = vst.msk [vmem:[#allocation6] sm:$0x1] %vm3304, %v3301
    // Predicated region
    $region14: #{critic_forward.1} parent=1 // pred_check
      _
    $region15: #{critic_forward.1} parent=1 // pred_check_branch
      %3307 = sbr.rel (0) target = $region17
    $region16: #{critic_forward.1} parent=1 // pred_region
      %s3309 = ssub.s32 16, 16
      %3310 = vsyncadd [#allocation5], %s3309
      %s3312 = sshll.u32 [#allocation6], 4
      %s3313 = int_to_ptr.vmem [resolvable:$true] %s3312
      %3315 = dma.vmem_to_hbm [thread:$0]  %s3313, 16, %s2, [#allocation5]
    $region17: #{critic_forward.1} parent=1 // pred_fallthru
      _
    // Predicated region
    $region18: #{critic_forward.1} parent=1 // pred_check
      _
    $region19: #{critic_forward.1} parent=1 // pred_check_branch
      %3317 = sbr.rel (0) target = $region21
    $region20: #{critic_forward.1} parent=1 // pred_region
      %3318 = dma.done [#allocation5], 16
    $region21: #{critic_forward.1} parent=1 // pred_fallthru
      _
    %3319 = vsyncpa [#allocation4], 1
    %3320 = vsyncpa [#allocation5], 1

</llo_original>
